<compile_context>
chip_gen: v5e
topology: v5e:2x2
jax: 0.10.0
libtpu: 0.0.40
codegen_flags: <defaults>
</compile_context>

<pallas_src>
import functools

import numpy as np
import jax
import jax.numpy as jnp
from jax.experimental import pallas as pl
from jax.experimental.pallas import tpu as pltpu


_SUBLANES = 8
_LANES = 128
_NSUB = 16                          # radix-select sub-buckets per pass (15 pivots)
_VMEM_BUDGET = 40 * 1024 * 1024

# Lane slots of the packed per-tile partials block written by kernel 1.
_POS, _SALL, _RIGHT, _SAME, _LT = range(5)


def _round_up(x, m):
    return ((x + m - 1) // m) * m


def _vmem_estimate(tm, tn, f_pad, materialize_d):
    x_in = 2 * (tm + tn) * f_pad * 4            # double-buffered X row/col tiles
    d_out = 2 * tm * tn * 4 if materialize_d else 0
    tmp = 6 * tm * tn * 4                       # gram / distance / mask temporaries
    return x_in + d_out + tmp + (1 << 20)


def _pack_scalars(values):
    """Pack a short list of scalars into one lane-dense (8,128) f32 block."""
    lane = jax.lax.broadcasted_iota(jnp.int32, (_SUBLANES, _LANES), 1)
    blk = jnp.zeros((_SUBLANES, _LANES), jnp.float32)
    for idx, val in enumerate(values):
        blk = jnp.where(lane == idx, val, blk)
    return blk


def _tile_distance(x_r_ref, x_c_ref, sq_r_ref, sq_c_ref):
    """Euclidean distances of one (TM, TN) tile; cross term on the MXU."""
    gram = jnp.einsum("mf,nf->mn", x_r_ref[...], x_c_ref[...],
                      preferred_element_type=jnp.float32)
    return jnp.sqrt(jnp.maximum(sq_r_ref[...] + sq_c_ref[...] - 2.0 * gram, 0.0))


def _tile_masks(lab_r_ref, lab_c_ref, b, tm, tn):
    i = pl.program_id(0)
    j = pl.program_id(1)
    same = lab_r_ref[...] == lab_c_ref[...]                          # (TM, TN)
    row_ids = i * tm + jax.lax.broadcasted_iota(jnp.int32, (tm, tn), 0)
    col_ids = j * tn + jax.lax.broadcasted_iota(jnp.int32, (tm, tn), 1)
    valid = (row_ids < b) & (col_ids < b)
    return same, valid


def _dist_stats_kernel(x_r_ref, x_c_ref, sq_r_ref, sq_c_ref, lab_r_ref,
                       lab_c_ref, part_ref, *d_out_ref,
                       b, tm, tn, margin, extra_margin):
    """One distance tile + every threshold-independent partial reduction."""
    d = _tile_distance(x_r_ref, x_c_ref, sq_r_ref, sq_c_ref)
    if d_out_ref:                    # D only materialised for large feature dims
        d_out_ref[0][...] = d

    same, valid = _tile_masks(lab_r_ref, lab_c_ref, b, tm, tn)
    m_lo = margin - extra_margin
    m_hi = margin + extra_margin
    neg_lt = valid & (~same) & (d < m_hi)

    pos_sum = jnp.sum(jnp.where(valid & same & (d > m_lo), d - m_lo, 0.0))
    s_all = jnp.sum(jnp.where(neg_lt, m_hi - d, 0.0))     # hinge if thr >= m_hi
    right = jnp.sum(jnp.where(valid & (same == (d < margin)), 1.0, 0.0))
    same_cnt = jnp.sum(jnp.where(valid & same, 1.0, 0.0))
    lt_cnt = jnp.sum(neg_lt.astype(jnp.float32))

    part_ref[...] = _pack_scalars([pos_sum, s_all, right, same_cnt, lt_cnt])


def _select_count_kernel(state_ref, *refs, b, tm, tn, recompute):
    """Per-tile counts of valid-negative distance bit patterns in [lo, pivot_q]
    for the 15 pivots of the current radix-select pass."""
    if recompute:
        (x_r_ref, x_c_ref, sq_r_ref, sq_c_ref,
         lab_r_ref, lab_c_ref, cnt_ref) = refs
        d = _tile_distance(x_r_ref, x_c_ref, sq_r_ref, sq_c_ref)
    else:
        d_ref, lab_r_ref, lab_c_ref, cnt_ref = refs
        d = d_ref[...]
    same, valid = _tile_masks(lab_r_ref, lab_c_ref, b, tm, tn)
    neg = valid & (~same)

    # d >= 0, so its f32 bit pattern is order-preserving as int32.
    bits = pltpu.bitcast(d, jnp.int32)
    masked = jnp.where(neg, bits, jnp.int32(0x7F800000))   # +inf bits when masked
    ge_lo = masked >= state_ref[0, 0]
    counts = []
    for q in range(_NSUB - 1):
        in_rng = ge_lo & (masked <= state_ref[0, 1 + q])
        counts.append(jnp.sum(in_rng.astype(jnp.float32)))
    cnt_ref[...] = _pack_scalars(counts)


def _neg_loss_kernel(thr_ref, *refs, b, tm, tn, margin, extra_margin, recompute):
    """Threshold-dependent negative hinge partial sum (only when thr < m_hi)."""
    if recompute:
        (x_r_ref, x_c_ref, sq_r_ref, sq_c_ref,
         lab_r_ref, lab_c_ref, out_ref) = refs
        d = _tile_distance(x_r_ref, x_c_ref, sq_r_ref, sq_c_ref)
    else:
        d_ref, lab_r_ref, lab_c_ref, out_ref = refs
        d = d_ref[...]
    same, valid = _tile_masks(lab_r_ref, lab_c_ref, b, tm, tn)
    m_hi = margin + extra_margin
    thr = thr_ref[0, 0]
    hinge = jnp.where(valid & (~same) & (d < m_hi) & (d < thr), m_hi - d, 0.0)
    out_ref[...] = _pack_scalars([jnp.sum(hinge)])


def _partial_spec():
    return pl.BlockSpec((_SUBLANES, _LANES), lambda i, j: (i, j))


def _partial_shape(gi, gj):
    return jax.ShapeDtypeStruct((gi * _SUBLANES, gj * _LANES), jnp.float32)


@functools.partial(jax.jit, static_argnames=("margin", "extra_margin"))
def mahalanobis_metric_loss(outputs, targets, margin=0.6, extra_margin=0.04):
    outputs = outputs.astype(jnp.float32)
    b, f = outputs.shape
    labels = targets.reshape(b).astype(jnp.int32)
    m_hi = margin + extra_margin

    # ---- tiling: lane-dense, explicit VMEM budget, asymmetric row tiles ----
    f_pad = _round_up(f, _LANES)
    tn = 128 if b <= 128 else 256
    if tn > 128 and _vmem_estimate(tn, tn, f_pad, f_pad > tn) > _VMEM_BUDGET:
        tn = 128                                      # very large feature dims
    b_pad = _round_up(b, tn)
    tm = tn
    for mult in (4, 2):                               # grow the row tile if it fits
        cand = tn * mult
        if (cand <= b_pad and b_pad % cand == 0
                and _vmem_estimate(cand, tn, f_pad, f_pad > cand) <= _VMEM_BUDGET):
            tm = cand
            break
    # TODO(synk): for feature dims so large that even 128x128 tiles blow the
    # budget, add a K ("arbitrary") grid axis with a VMEM gram accumulator.
    materialize_d = f_pad > tm                # recompute D when features are small
    gi = b_pad // tm
    gj = b_pad // tn

    est = _vmem_estimate(tm, tn, f_pad, materialize_d)
    if est > 12 * 1024 * 1024:
        comp = pltpu.CompilerParams(
            dimension_semantics=("parallel", "parallel"),
            vmem_limit_bytes=int(min(60 * 1024 * 1024, est + est // 2)))
    else:
        comp = pltpu.CompilerParams(dimension_semantics=("parallel", "parallel"))

    # ---- padded operands (norms precomputed once, labels as row/col tiles) ----
    x_pad = jnp.zeros((b_pad, f_pad), jnp.float32).at[:b, :f].set(outputs)
    sq = jnp.sum(x_pad * x_pad, axis=1)
    sq_row = sq.reshape(b_pad, 1)
    sq_col = sq.reshape(1, b_pad)
    lab_pad = jnp.full((b_pad,), -1, jnp.int32).at[:b].set(labels)
    lab_row = lab_pad.reshape(b_pad, 1)
    lab_col = lab_pad.reshape(1, b_pad)

    x_in_specs = [
        pl.BlockSpec((tm, f_pad), lambda i, j: (i, 0)),     # X row tile
        pl.BlockSpec((tn, f_pad), lambda i, j: (j, 0)),     # X col tile
        pl.BlockSpec((tm, 1), lambda i, j: (i, 0)),         # |x|^2 row
        pl.BlockSpec((1, tn), lambda i, j: (0, j)),         # |x|^2 col
        pl.BlockSpec((tm, 1), lambda i, j: (i, 0)),         # labels row
        pl.BlockSpec((1, tn), lambda i, j: (0, j)),         # labels col
    ]
    x_operands = (x_pad, x_pad, sq_row, sq_col, lab_row, lab_col)

    # ---- kernel 1: distances + all threshold-independent partials ----------
    if materialize_d:
        out_specs = (_partial_spec(), pl.BlockSpec((tm, tn), lambda i, j: (i, j)))
        out_shape = (_partial_shape(gi, gj),
                     jax.ShapeDtypeStruct((b_pad, b_pad), jnp.float32))
    else:
        out_specs = _partial_spec()
        out_shape = _partial_shape(gi, gj)

    k1 = pl.pallas_call(
        functools.partial(_dist_stats_kernel, b=b, tm=tm, tn=tn,
                          margin=margin, extra_margin=extra_margin),
        grid=(gi, gj),
        in_specs=x_in_specs,
        out_specs=out_specs,
        out_shape=out_shape,
        compiler_params=comp,
    )(*x_operands)

    if materialize_d:
        parts, dists = k1
        dist_in_specs = [pl.BlockSpec((tm, tn), lambda i, j: (i, j)),
                         pl.BlockSpec((tm, 1), lambda i, j: (i, 0)),
                         pl.BlockSpec((1, tn), lambda i, j: (0, j))]
        dist_operands = (dists, lab_row, lab_col)
    else:
        parts = k1
        dist_in_specs = x_in_specs
        dist_operands = x_operands

    part = parts.reshape(gi, _SUBLANES, gj, _LANES)[:, 0, :, :]
    pos_sum = jnp.sum(part[..., _POS])
    s_all = jnp.sum(part[..., _SALL])
    right_total = jnp.sum(part[..., _RIGHT].astype(jnp.int32))
    same_total = jnp.sum(part[..., _SAME].astype(jnp.int32))
    lt_total = jnp.sum(part[..., _LT].astype(jnp.int32))

    num_pairs = (same_total - b) // 2                 # unordered same-label pairs
    k = num_pairs

    # The k-th smallest negative distance only changes the loss when it lies
    # below margin+extra_margin; otherwise the hinge condition collapses to
    # d < margin+extra_margin, whose sum (s_all) was already fused in kernel 1.
    need_threshold = lt_total >= k + 1
    bits_mhi = int(np.asarray(m_hi, np.float32).view(np.int32))

    def _without_threshold(_):
        return s_all

    def _with_threshold(_):
        # Exact radix-select of the k-th smallest valid-negative distance,
        # restricted to f32 bit patterns in [0, bits(m_hi)); 15 pivots/pass ->
        # at most ~8 passes, negative mask rebuilt in-kernel from label tiles.
        count_call = pl.pallas_call(
            functools.partial(_select_count_kernel, b=b, tm=tm, tn=tn,
                              recompute=not materialize_d),
            grid=(gi, gj),
            in_specs=[pl.BlockSpec(memory_space=pltpu.MemorySpace.SMEM)]
                     + dist_in_specs,
            out_specs=_partial_spec(),
            out_shape=_partial_shape(gi, gj),
            compiler_params=comp,
        )

        def cond_fn(state):
            lo, hi, _ = state
            return lo < hi

        def body_fn(state):
            lo, hi, r = state
            span = hi - lo + 1
            w = (span + _NSUB - 1) // _NSUB
            qs = jnp.arange(1, _NSUB, dtype=jnp.int32)
            piv = jnp.minimum(lo + qs * w - 1, hi)                     # (15,)
            search_state = jnp.concatenate([lo.reshape(1), piv]).reshape(1, _NSUB)
            cparts = count_call(search_state, *dist_operands)
            cp = cparts.reshape(gi, _SUBLANES, gj, _LANES)[:, 0, :, :_NSUB - 1]
            c = jnp.sum(cp.astype(jnp.int32), axis=(0, 1))             # exact
            ge = c >= r + 1
            has = jnp.any(ge)
            q = jnp.argmax(ge).astype(jnp.int32)
            below = jnp.where(q == 0, jnp.int32(0), c[q - 1])
            lo_new = jnp.where(has, jnp.where(q == 0, lo, piv[q - 1] + 1),
                               piv[_NSUB - 2] + 1)
            hi_new = jnp.where(has, piv[q], hi)
            r_new = jnp.where(has, r - below, r - c[_NSUB - 2])
            return lo_new, hi_new, r_new

        init = (jnp.int32(0), jnp.int32(bits_mhi - 1), k.astype(jnp.int32))
        thr_bits, _, _ = jax.lax.while_loop(cond_fn, body_fn, init)
        thr = jax.lax.bitcast_convert_type(thr_bits, jnp.float32)

        # TODO(synk): folding per-sub-bucket hinge sums into the radix passes
        # would remove this final threshold-dependent pass entirely.
        nparts = pl.pallas_call(
            functools.partial(_neg_loss_kernel, b=b, tm=tm, tn=tn,
                              margin=margin, extra_margin=extra_margin,
                              recompute=not materialize_d),
            grid=(gi, gj),
            in_specs=[pl.BlockSpec(memory_space=pltpu.MemorySpace.SMEM)]
                     + dist_in_specs,
            out_specs=_partial_spec(),
            out_shape=_partial_shape(gi, gj),
            compiler_params=comp,
        )(thr.reshape(1, 1), *dist_operands)
        return jnp.sum(nparts.reshape(gi, _SUBLANES, gj, _LANES)[:, 0, :, 0])

    neg_sum = jax.lax.cond(need_threshold, _with_threshold, _without_threshold, 0)

    num_pairs_f = num_pairs.astype(jnp.float32)
    loss = ((pos_sum + neg_sum) / (2.0 * num_pairs_f)).reshape(1)
    accuracy = right_total.astype(jnp.float32) / jnp.float32(b * b)
    return loss, accuracy


if __name__ == "__main__":
    key = jax.random.PRNGKey(0)
    B, F = 8, 32
    # Scaled so pairwise distances straddle the 0.6 margin: exercises the
    # positive hinge, the negative-threshold radix-select path and the
    # negative hinge (both lax.cond branches are compiled either way).
    outputs = 0.08 * jax.random.normal(key, (B, F), dtype=jnp.float32)
    targets = jnp.array([0, 0, 1, 1, 0, 2, 1, 2], dtype=jnp.int32).reshape(B, 1)

    loss, acc = mahalanobis_metric_loss(outputs, targets)
    jax.block_until_ready((loss, acc))
    print("KERNEL_OK")
</pallas_src>

<mosaic_0001>
module attributes {stable_mosaic.version = 11 : i64} {
  func.func @_dist_stats_kernel(%arg0: i32, %arg1: i32, %arg2: memref<128x128xf32, #tpu.memory_space<vmem>>, %arg3: memref<128x128xf32, #tpu.memory_space<vmem>>, %arg4: memref<128x1xf32, #tpu.memory_space<vmem>>, %arg5: memref<1x128xf32, #tpu.memory_space<vmem>>, %arg6: memref<128x1xi32, #tpu.memory_space<vmem>>, %arg7: memref<1x128xi32, #tpu.memory_space<vmem>>, %arg8: memref<8x128xf32, #tpu.memory_space<vmem>>) attributes {dimension_semantics = [#tpu.dimension_semantics<parallel>, #tpu.dimension_semantics<parallel>], iteration_bounds = array<i64: 1, 1>, scalar_prefetch = 0 : i64, scratch_operands = 0 : i64, tpu.core_type = #tpu.core_type<tc>, window_params = [{transform_indices = @transform_0, window_bounds = array<i64: 128, 128>}, {transform_indices = @transform_1, window_bounds = array<i64: 128, 128>}, {transform_indices = @transform_2, window_bounds = array<i64: 128, 1>}, {transform_indices = @transform_3, window_bounds = array<i64: 1, 128>}, {transform_indices = @transform_4, window_bounds = array<i64: 128, 1>}, {transform_indices = @transform_5, window_bounds = array<i64: 1, 128>}, {transform_indices = @transform_6, window_bounds = array<i64: 8, 128>}]} {
    %c0 = arith.constant 0 : index
    %c0_0 = arith.constant 0 : index
    %0 = vector.load %arg2[%c0, %c0_0] : memref<128x128xf32, #tpu.memory_space<vmem>>, vector<128x128xf32>
    %c0_1 = arith.constant 0 : index
    %c0_2 = arith.constant 0 : index
    %1 = vector.load %arg3[%c0_1, %c0_2] : memref<128x128xf32, #tpu.memory_space<vmem>>, vector<128x128xf32>
    "tpu.trace_start"() <{level = 10 : i32, message = "mf,nf->mn"}> : () -> ()
    %cst = arith.constant dense<0.000000e+00> : vector<128x128xf32>
    %2 = tpu.matmul %0, %1, %cst {dimension_numbers = #tpu.dot_dimension_numbers<[1], [1], [0], [0], [0, 0, 1, 0], [], []>} : vector<128x128xf32>, vector<128x128xf32>, vector<128x128xf32> -> vector<128x128xf32>
    "tpu.trace_stop"() : () -> ()
    %c0_3 = arith.constant 0 : index
    %c0_4 = arith.constant 0 : index
    %3 = vector.load %arg4[%c0_3, %c0_4] : memref<128x1xf32, #tpu.memory_space<vmem>>, vector<128x1xf32>
    %c0_5 = arith.constant 0 : index
    %c0_6 = arith.constant 0 : index
    %4 = vector.load %arg5[%c0_5, %c0_6] : memref<1x128xf32, #tpu.memory_space<vmem>>, vector<1x128xf32>
    %5 = vector.broadcast %3 : vector<128x1xf32> to vector<128x128xf32>
    %6 = vector.broadcast %4 : vector<1x128xf32> to vector<128x128xf32>
    %7 = arith.addf %5, %6 : vector<128x128xf32>
    %cst_7 = arith.constant 2.000000e+00 : f32
    %8 = vector.broadcast %cst_7 : f32 to vector<128x128xf32>
    %9 = arith.mulf %8, %2 : vector<128x128xf32>
    %10 = arith.subf %7, %9 : vector<128x128xf32>
    %cst_8 = arith.constant 0.000000e+00 : f32
    %11 = vector.broadcast %cst_8 : f32 to vector<128x128xf32>
    %12 = arith.maximumf %10, %11 : vector<128x128xf32>
    %13 = math.sqrt %12 : vector<128x128xf32>
    %c0_9 = arith.constant 0 : index
    %c0_10 = arith.constant 0 : index
    %14 = vector.load %arg6[%c0_9, %c0_10] : memref<128x1xi32, #tpu.memory_space<vmem>>, vector<128x1xi32>
    %c0_11 = arith.constant 0 : index
    %c0_12 = arith.constant 0 : index
    %15 = vector.load %arg7[%c0_11, %c0_12] : memref<1x128xi32, #tpu.memory_space<vmem>>, vector<1x128xi32>
    %16 = vector.broadcast %14 : vector<128x1xi32> to vector<128x128xi32>
    %17 = vector.broadcast %15 : vector<1x128xi32> to vector<128x128xi32>
    %18 = arith.cmpi eq, %16, %17 : vector<128x128xi32>
    %c128_i32 = arith.constant 128 : i32
    %19 = arith.muli %arg0, %c128_i32 : i32
    %20 = tpu.iota {dimensions = array<i32: 0>} : vector<128x128xi32>
    %21 = vector.broadcast %19 : i32 to vector<128x128xi32>
    %22 = arith.addi %21, %20 : vector<128x128xi32>
    %c128_i32_13 = arith.constant 128 : i32
    %23 = arith.muli %arg1, %c128_i32_13 : i32
    %24 = tpu.iota {dimensions = array<i32: 1>} : vector<128x128xi32>
    %25 = vector.broadcast %23 : i32 to vector<128x128xi32>
    %26 = arith.addi %25, %24 : vector<128x128xi32>
    %c8_i32 = arith.constant 8 : i32
    %27 = vector.broadcast %c8_i32 : i32 to vector<128x128xi32>
    %28 = arith.cmpi slt, %22, %27 : vector<128x128xi32>
    %c8_i32_14 = arith.constant 8 : i32
    %29 = vector.broadcast %c8_i32_14 : i32 to vector<128x128xi32>
    %30 = arith.cmpi slt, %26, %29 : vector<128x128xi32>
    %31 = arith.andi %28, %30 : vector<128x128xi1>
    %cst_15 = arith.constant dense<true> : vector<128x128xi1>
    %32 = arith.xori %18, %cst_15 : vector<128x128xi1>
    %33 = arith.andi %31, %32 : vector<128x128xi1>
    %cst_16 = arith.constant 6.400000e-01 : f32
    %34 = vector.broadcast %cst_16 : f32 to vector<128x128xf32>
    %35 = arith.cmpf olt, %13, %34 : vector<128x128xf32>
    %36 = arith.andi %33, %35 : vector<128x128xi1>
    %37 = arith.andi %31, %18 : vector<128x128xi1>
    %cst_17 = arith.constant 5.600000e-01 : f32
    %38 = vector.broadcast %cst_17 : f32 to vector<128x128xf32>
    %39 = arith.cmpf ogt, %13, %38 : vector<128x128xf32>
    %40 = arith.andi %37, %39 : vector<128x128xi1>
    %cst_18 = arith.constant 5.600000e-01 : f32
    %41 = vector.broadcast %cst_18 : f32 to vector<128x128xf32>
    %42 = arith.subf %13, %41 : vector<128x128xf32>
    %cst_19 = arith.constant 0.000000e+00 : f32
    %43 = vector.broadcast %cst_19 : f32 to vector<128x128xf32>
    %44 = arith.select %40, %42, %43 : vector<128x128xi1>, vector<128x128xf32>
    %45 = vector.shape_cast %44 : vector<128x128xf32> to vector<1x128x128xf32>
    %cst_20 = arith.constant dense<0.000000e+00> : vector<1xf32>
    %46 = vector.multi_reduction <add>, %45, %cst_20 [1, 2] : vector<1x128x128xf32> to vector<1xf32>
    %47 = vector.shape_cast %46 : vector<1xf32> to vector<1x1x1xf32>
    %48 = vector.extract %47[0, 0, 0] : f32 from vector<1x1x1xf32>
    %cst_21 = arith.constant 6.400000e-01 : f32
    %49 = vector.broadcast %cst_21 : f32 to vector<128x128xf32>
    %50 = arith.subf %49, %13 : vector<128x128xf32>
    %cst_22 = arith.constant 0.000000e+00 : f32
    %51 = vector.broadcast %cst_22 : f32 to vector<128x128xf32>
    %52 = arith.select %36, %50, %51 : vector<128x128xi1>, vector<128x128xf32>
    %53 = vector.shape_cast %52 : vector<128x128xf32> to vector<1x128x128xf32>
    %cst_23 = arith.constant dense<0.000000e+00> : vector<1xf32>
    %54 = vector.multi_reduction <add>, %53, %cst_23 [1, 2] : vector<1x128x128xf32> to vector<1xf32>
    %55 = vector.shape_cast %54 : vector<1xf32> to vector<1x1x1xf32>
    %56 = vector.extract %55[0, 0, 0] : f32 from vector<1x1x1xf32>
    %cst_24 = arith.constant 6.000000e-01 : f32
    %57 = vector.broadcast %cst_24 : f32 to vector<128x128xf32>
    %58 = arith.cmpf olt, %13, %57 : vector<128x128xf32>
    %59 = arith.xori %18, %58 : vector<128x128xi1>
    %cst_25 = arith.constant dense<true> : vector<128x128xi1>
    %60 = arith.xori %59, %cst_25 : vector<128x128xi1>
    %61 = arith.andi %31, %60 : vector<128x128xi1>
    %cst_26 = arith.constant 1.000000e+00 : f32
    %cst_27 = arith.constant 0.000000e+00 : f32
    %62 = vector.broadcast %cst_26 : f32 to vector<128x128xf32>
    %63 = vector.broadcast %cst_27 : f32 to vector<128x128xf32>
    %64 = arith.select %61, %62, %63 : vector<128x128xi1>, vector<128x128xf32>
    %65 = vector.shape_cast %64 : vector<128x128xf32> to vector<1x128x128xf32>
    %cst_28 = arith.constant dense<0.000000e+00> : vector<1xf32>
    %66 = vector.multi_reduction <add>, %65, %cst_28 [1, 2] : vector<1x128x128xf32> to vector<1xf32>
    %67 = vector.shape_cast %66 : vector<1xf32> to vector<1x1x1xf32>
    %68 = vector.extract %67[0, 0, 0] : f32 from vector<1x1x1xf32>
    %69 = arith.andi %31, %18 : vector<128x128xi1>
    %cst_29 = arith.constant 1.000000e+00 : f32
    %cst_30 = arith.constant 0.000000e+00 : f32
    %70 = vector.broadcast %cst_29 : f32 to vector<128x128xf32>
    %71 = vector.broadcast %cst_30 : f32 to vector<128x128xf32>
    %72 = arith.select %69, %70, %71 : vector<128x128xi1>, vector<128x128xf32>
    %73 = vector.shape_cast %72 : vector<128x128xf32> to vector<1x128x128xf32>
    %cst_31 = arith.constant dense<0.000000e+00> : vector<1xf32>
    %74 = vector.multi_reduction <add>, %73, %cst_31 [1, 2] : vector<1x128x128xf32> to vector<1xf32>
    %75 = vector.shape_cast %74 : vector<1xf32> to vector<1x1x1xf32>
    %76 = vector.extract %75[0, 0, 0] : f32 from vector<1x1x1xf32>
    %77 = arith.extui %36 : vector<128x128xi1> to vector<128x128xi32>
    %78 = arith.sitofp %77 : vector<128x128xi32> to vector<128x128xf32>
    %79 = vector.shape_cast %78 : vector<128x128xf32> to vector<1x128x128xf32>
    %cst_32 = arith.constant dense<0.000000e+00> : vector<1xf32>
    %80 = vector.multi_reduction <add>, %79, %cst_32 [1, 2] : vector<1x128x128xf32> to vector<1xf32>
    %81 = vector.shape_cast %80 : vector<1xf32> to vector<1x1x1xf32>
    %82 = vector.extract %81[0, 0, 0] : f32 from vector<1x1x1xf32>
    %83 = tpu.iota {dimensions = array<i32: 1>} : vector<8x128xi32>
    %cst_33 = arith.constant 0.000000e+00 : f32
    %84 = vector.broadcast %cst_33 : f32 to vector<8x128xf32>
    %c0_i32 = arith.constant 0 : i32
    %85 = vector.broadcast %c0_i32 : i32 to vector<8x128xi32>
    %86 = arith.cmpi eq, %83, %85 : vector<8x128xi32>
    %87 = vector.broadcast %48 : f32 to vector<8x128xf32>
    %88 = arith.select %86, %87, %84 : vector<8x128xi1>, vector<8x128xf32>
    %c1_i32 = arith.constant 1 : i32
    %89 = vector.broadcast %c1_i32 : i32 to vector<8x128xi32>
    %90 = arith.cmpi eq, %83, %89 : vector<8x128xi32>
    %91 = vector.broadcast %56 : f32 to vector<8x128xf32>
    %92 = arith.select %90, %91, %88 : vector<8x128xi1>, vector<8x128xf32>
    %c2_i32 = arith.constant 2 : i32
    %93 = vector.broadcast %c2_i32 : i32 to vector<8x128xi32>
    %94 = arith.cmpi eq, %83, %93 : vector<8x128xi32>
    %95 = vector.broadcast %68 : f32 to vector<8x128xf32>
    %96 = arith.select %94, %95, %92 : vector<8x128xi1>, vector<8x128xf32>
    %c3_i32 = arith.constant 3 : i32
    %97 = vector.broadcast %c3_i32 : i32 to vector<8x128xi32>
    %98 = arith.cmpi eq, %83, %97 : vector<8x128xi32>
    %99 = vector.broadcast %76 : f32 to vector<8x128xf32>
    %100 = arith.select %98, %99, %96 : vector<8x128xi1>, vector<8x128xf32>
    %c4_i32 = arith.constant 4 : i32
    %101 = vector.broadcast %c4_i32 : i32 to vector<8x128xi32>
    %102 = arith.cmpi eq, %83, %101 : vector<8x128xi32>
    %103 = vector.broadcast %82 : f32 to vector<8x128xf32>
    %104 = arith.select %102, %103, %100 : vector<8x128xi1>, vector<8x128xf32>
    %c0_34 = arith.constant 0 : index
    %c0_35 = arith.constant 0 : index
    %105 = vector.load %arg8[%c0_34, %c0_35] : memref<8x128xf32, #tpu.memory_space<vmem>>, vector<8x128xf32>
    tpu.vector_store %arg8[%c0_34, %c0_35], %104 {strides = array<i32>} : memref<8x128xf32, #tpu.memory_space<vmem>>, vector<8x128xf32>,
    return
  }
  func.func @transform_0(%arg0: i32, %arg1: i32) -> (i32, i32) {
    %c0_i32 = arith.constant 0 : i32
    %c0_i32_0 = arith.constant 0 : i32
    return %arg0, %c0_i32 : i32, i32
  }
  func.func @transform_1(%arg0: i32, %arg1: i32) -> (i32, i32) {
    %c0_i32 = arith.constant 0 : i32
    %c0_i32_0 = arith.constant 0 : i32
    return %arg1, %c0_i32 : i32, i32
  }
  func.func @transform_2(%arg0: i32, %arg1: i32) -> (i32, i32) {
    %c0_i32 = arith.constant 0 : i32
    %c0_i32_0 = arith.constant 0 : i32
    return %arg0, %c0_i32 : i32, i32
  }
  func.func @transform_3(%arg0: i32, %arg1: i32) -> (i32, i32) {
    %c0_i32 = arith.constant 0 : i32
    %c0_i32_0 = arith.constant 0 : i32
    return %c0_i32, %arg1 : i32, i32
  }
  func.func @transform_4(%arg0: i32, %arg1: i32) -> (i32, i32) {
    %c0_i32 = arith.constant 0 : i32
    %c0_i32_0 = arith.constant 0 : i32
    return %arg0, %c0_i32 : i32, i32
  }
  func.func @transform_5(%arg0: i32, %arg1: i32) -> (i32, i32) {
    %c0_i32 = arith.constant 0 : i32
    %c0_i32_0 = arith.constant 0 : i32
    return %c0_i32, %arg1 : i32, i32
  }
  func.func @transform_6(%arg0: i32, %arg1: i32) -> (i32, i32) {
    %c0_i32 = arith.constant 0 : i32
    return %arg0, %arg1 : i32, i32
  }
}

module attributes {stable_mosaic.version = 11 : i64} {
  func.func @_select_count_kernel(%arg0: i32, %arg1: i32, %arg2: memref<1x16xi32, #tpu.memory_space<smem>>, %arg3: memref<128x128xf32, #tpu.memory_space<vmem>>, %arg4: memref<128x128xf32, #tpu.memory_space<vmem>>, %arg5: memref<128x1xf32, #tpu.memory_space<vmem>>, %arg6: memref<1x128xf32, #tpu.memory_space<vmem>>, %arg7: memref<128x1xi32, #tpu.memory_space<vmem>>, %arg8: memref<1x128xi32, #tpu.memory_space<vmem>>, %arg9: memref<8x128xf32, #tpu.memory_space<vmem>>) attributes {dimension_semantics = [#tpu.dimension_semantics<parallel>, #tpu.dimension_semantics<parallel>], iteration_bounds = array<i64: 1, 1>, scalar_prefetch = 0 : i64, scratch_operands = 0 : i64, tpu.core_type = #tpu.core_type<tc>, window_params = [{transform_indices = @transform_0, window_bounds = array<i64: 1, 16>}, {transform_indices = @transform_1, window_bounds = array<i64: 128, 128>}, {transform_indices = @transform_2, window_bounds = array<i64: 128, 128>}, {transform_indices = @transform_3, window_bounds = array<i64: 128, 1>}, {transform_indices = @transform_4, window_bounds = array<i64: 1, 128>}, {transform_indices = @transform_5, window_bounds = array<i64: 128, 1>}, {transform_indices = @transform_6, window_bounds = array<i64: 1, 128>}, {transform_indices = @transform_7, window_bounds = array<i64: 8, 128>}]} {
    %c0 = arith.constant 0 : index
    %c0_0 = arith.constant 0 : index
    %0 = vector.load %arg3[%c0, %c0_0] : memref<128x128xf32, #tpu.memory_space<vmem>>, vector<128x128xf32>
    %c0_1 = arith.constant 0 : index
    %c0_2 = arith.constant 0 : index
    %1 = vector.load %arg4[%c0_1, %c0_2] : memref<128x128xf32, #tpu.memory_space<vmem>>, vector<128x128xf32>
    "tpu.trace_start"() <{level = 10 : i32, message = "mf,nf->mn"}> : () -> ()
    %cst = arith.constant dense<0.000000e+00> : vector<128x128xf32>
    %2 = tpu.matmul %0, %1, %cst {dimension_numbers = #tpu.dot_dimension_numbers<[1], [1], [0], [0], [0, 0, 1, 0], [], []>} : vector<128x128xf32>, vector<128x128xf32>, vector<128x128xf32> -> vector<128x128xf32>
    "tpu.trace_stop"() : () -> ()
    %c0_3 = arith.constant 0 : index
    %c0_4 = arith.constant 0 : index
    %3 = vector.load %arg5[%c0_3, %c0_4] : memref<128x1xf32, #tpu.memory_space<vmem>>, vector<128x1xf32>
    %c0_5 = arith.constant 0 : index
    %c0_6 = arith.constant 0 : index
    %4 = vector.load %arg6[%c0_5, %c0_6] : memref<1x128xf32, #tpu.memory_space<vmem>>, vector<1x128xf32>
    %5 = vector.broadcast %3 : vector<128x1xf32> to vector<128x128xf32>
    %6 = vector.broadcast %4 : vector<1x128xf32> to vector<128x128xf32>
    %7 = arith.addf %5, %6 : vector<128x128xf32>
    %cst_7 = arith.constant 2.000000e+00 : f32
    %8 = vector.broadcast %cst_7 : f32 to vector<128x128xf32>
    %9 = arith.mulf %8, %2 : vector<128x128xf32>
    %10 = arith.subf %7, %9 : vector<128x128xf32>
    %cst_8 = arith.constant 0.000000e+00 : f32
    %11 = vector.broadcast %cst_8 : f32 to vector<128x128xf32>
    %12 = arith.maximumf %10, %11 : vector<128x128xf32>
    %13 = math.sqrt %12 : vector<128x128xf32>
    %c0_9 = arith.constant 0 : index
    %c0_10 = arith.constant 0 : index
    %14 = vector.load %arg7[%c0_9, %c0_10] : memref<128x1xi32, #tpu.memory_space<vmem>>, vector<128x1xi32>
    %c0_11 = arith.constant 0 : index
    %c0_12 = arith.constant 0 : index
    %15 = vector.load %arg8[%c0_11, %c0_12] : memref<1x128xi32, #tpu.memory_space<vmem>>, vector<1x128xi32>
    %16 = vector.broadcast %14 : vector<128x1xi32> to vector<128x128xi32>
    %17 = vector.broadcast %15 : vector<1x128xi32> to vector<128x128xi32>
    %18 = arith.cmpi eq, %16, %17 : vector<128x128xi32>
    %c128_i32 = arith.constant 128 : i32
    %19 = arith.muli %arg0, %c128_i32 : i32
    %20 = tpu.iota {dimensions = array<i32: 0>} : vector<128x128xi32>
    %21 = vector.broadcast %19 : i32 to vector<128x128xi32>
    %22 = arith.addi %21, %20 : vector<128x128xi32>
    %c128_i32_13 = arith.constant 128 : i32
    %23 = arith.muli %arg1, %c128_i32_13 : i32
    %24 = tpu.iota {dimensions = array<i32: 1>} : vector<128x128xi32>
    %25 = vector.broadcast %23 : i32 to vector<128x128xi32>
    %26 = arith.addi %25, %24 : vector<128x128xi32>
    %c8_i32 = arith.constant 8 : i32
    %27 = vector.broadcast %c8_i32 : i32 to vector<128x128xi32>
    %28 = arith.cmpi slt, %22, %27 : vector<128x128xi32>
    %c8_i32_14 = arith.constant 8 : i32
    %29 = vector.broadcast %c8_i32_14 : i32 to vector<128x128xi32>
    %30 = arith.cmpi slt, %26, %29 : vector<128x128xi32>
    %31 = arith.andi %28, %30 : vector<128x128xi1>
    %cst_15 = arith.constant dense<true> : vector<128x128xi1>
    %32 = arith.xori %18, %cst_15 : vector<128x128xi1>
    %33 = arith.andi %31, %32 : vector<128x128xi1>
    %34 = tpu.bitcast %13 : vector<128x128xf32> -> vector<128x128xi32>
    %c2139095040_i32 = arith.constant 2139095040 : i32
    %35 = vector.broadcast %c2139095040_i32 : i32 to vector<128x128xi32>
    %36 = arith.select %33, %34, %35 : vector<128x128xi1>, vector<128x128xi32>
    %c0_16 = arith.constant 0 : index
    %c0_17 = arith.constant 0 : index
    %37 = memref.load %arg2[%c0_16, %c0_17] : memref<1x16xi32, #tpu.memory_space<smem>>
    %38 = vector.broadcast %37 : i32 to vector<128x128xi32>
    %39 = arith.cmpi sge, %36, %38 : vector<128x128xi32>
    %c0_18 = arith.constant 0 : index
    %c1 = arith.constant 1 : index
    %40 = memref.load %arg2[%c0_18, %c1] : memref<1x16xi32, #tpu.memory_space<smem>>
    %41 = vector.broadcast %40 : i32 to vector<128x128xi32>
    %42 = arith.cmpi sle, %36, %41 : vector<128x128xi32>
    %43 = arith.andi %39, %42 : vector<128x128xi1>
    %44 = arith.extui %43 : vector<128x128xi1> to vector<128x128xi32>
    %45 = arith.sitofp %44 : vector<128x128xi32> to vector<128x128xf32>
    %46 = vector.shape_cast %45 : vector<128x128xf32> to vector<1x128x128xf32>
    %cst_19 = arith.constant dense<0.000000e+00> : vector<1xf32>
    %47 = vector.multi_reduction <add>, %46, %cst_19 [1, 2] : vector<1x128x128xf32> to vector<1xf32>
    %48 = vector.shape_cast %47 : vector<1xf32> to vector<1x1x1xf32>
    %49 = vector.extract %48[0, 0, 0] : f32 from vector<1x1x1xf32>
    %c0_20 = arith.constant 0 : index
    %c2 = arith.constant 2 : index
    %50 = memref.load %arg2[%c0_20, %c2] : memref<1x16xi32, #tpu.memory_space<smem>>
    %51 = vector.broadcast %50 : i32 to vector<128x128xi32>
    %52 = arith.cmpi sle, %36, %51 : vector<128x128xi32>
    %53 = arith.andi %39, %52 : vector<128x128xi1>
    %54 = arith.extui %53 : vector<128x128xi1> to vector<128x128xi32>
    %55 = arith.sitofp %54 : vector<128x128xi32> to vector<128x128xf32>
    %56 = vector.shape_cast %55 : vector<128x128xf32> to vector<1x128x128xf32>
    %cst_21 = arith.constant dense<0.000000e+00> : vector<1xf32>
    %57 = vector.multi_reduction <add>, %56, %cst_21 [1, 2] : vector<1x128x128xf32> to vector<1xf32>
    %58 = vector.shape_cast %57 : vector<1xf32> to vector<1x1x1xf32>
    %59 = vector.extract %58[0, 0, 0] : f32 from vector<1x1x1xf32>
    %c0_22 = arith.constant 0 : index
    %c3 = arith.constant 3 : index
    %60 = memref.load %arg2[%c0_22, %c3] : memref<1x16xi32, #tpu.memory_space<smem>>
    %61 = vector.broadcast %60 : i32 to vector<128x128xi32>
    %62 = arith.cmpi sle, %36, %61 : vector<128x128xi32>
    %63 = arith.andi %39, %62 : vector<128x128xi1>
    %64 = arith.extui %63 : vector<128x128xi1> to vector<128x128xi32>
    %65 = arith.sitofp %64 : vector<128x128xi32> to vector<128x128xf32>
    %66 = vector.shape_cast %65 : vector<128x128xf32> to vector<1x128x128xf32>
    %cst_23 = arith.constant dense<0.000000e+00> : vector<1xf32>
    %67 = vector.multi_reduction <add>, %66, %cst_23 [1, 2] : vector<1x128x128xf32> to vector<1xf32>
    %68 = vector.shape_cast %67 : vector<1xf32> to vector<1x1x1xf32>
    %69 = vector.extract %68[0, 0, 0] : f32 from vector<1x1x1xf32>
    %c0_24 = arith.constant 0 : index
    %c4 = arith.constant 4 : index
    %70 = memref.load %arg2[%c0_24, %c4] : memref<1x16xi32, #tpu.memory_space<smem>>
    %71 = vector.broadcast %70 : i32 to vector<128x128xi32>
    %72 = arith.cmpi sle, %36, %71 : vector<128x128xi32>
    %73 = arith.andi %39, %72 : vector<128x128xi1>
    %74 = arith.extui %73 : vector<128x128xi1> to vector<128x128xi32>
    %75 = arith.sitofp %74 : vector<128x128xi32> to vector<128x128xf32>
    %76 = vector.shape_cast %75 : vector<128x128xf32> to vector<1x128x128xf32>
    %cst_25 = arith.constant dense<0.000000e+00> : vector<1xf32>
    %77 = vector.multi_reduction <add>, %76, %cst_25 [1, 2] : vector<1x128x128xf32> to vector<1xf32>
    %78 = vector.shape_cast %77 : vector<1xf32> to vector<1x1x1xf32>
    %79 = vector.extract %78[0, 0, 0] : f32 from vector<1x1x1xf32>
    %c0_26 = arith.constant 0 : index
    %c5 = arith.constant 5 : index
    %80 = memref.load %arg2[%c0_26, %c5] : memref<1x16xi32, #tpu.memory_space<smem>>
    %81 = vector.broadcast %80 : i32 to vector<128x128xi32>
    %82 = arith.cmpi sle, %36, %81 : vector<128x128xi32>
    %83 = arith.andi %39, %82 : vector<128x128xi1>
    %84 = arith.extui %83 : vector<128x128xi1> to vector<128x128xi32>
    %85 = arith.sitofp %84 : vector<128x128xi32> to vector<128x128xf32>
    %86 = vector.shape_cast %85 : vector<128x128xf32> to vector<1x128x128xf32>
    %cst_27 = arith.constant dense<0.000000e+00> : vector<1xf32>
    %87 = vector.multi_reduction <add>, %86, %cst_27 [1, 2] : vector<1x128x128xf32> to vector<1xf32>
    %88 = vector.shape_cast %87 : vector<1xf32> to vector<1x1x1xf32>
    %89 = vector.extract %88[0, 0, 0] : f32 from vector<1x1x1xf32>
    %c0_28 = arith.constant 0 : index
    %c6 = arith.constant 6 : index
    %90 = memref.load %arg2[%c0_28, %c6] : memref<1x16xi32, #tpu.memory_space<smem>>
    %91 = vector.broadcast %90 : i32 to vector<128x128xi32>
    %92 = arith.cmpi sle, %36, %91 : vector<128x128xi32>
    %93 = arith.andi %39, %92 : vector<128x128xi1>
    %94 = arith.extui %93 : vector<128x128xi1> to vector<128x128xi32>
    %95 = arith.sitofp %94 : vector<128x128xi32> to vector<128x128xf32>
    %96 = vector.shape_cast %95 : vector<128x128xf32> to vector<1x128x128xf32>
    %cst_29 = arith.constant dense<0.000000e+00> : vector<1xf32>
    %97 = vector.multi_reduction <add>, %96, %cst_29 [1, 2] : vector<1x128x128xf32> to vector<1xf32>
    %98 = vector.shape_cast %97 : vector<1xf32> to vector<1x1x1xf32>
    %99 = vector.extract %98[0, 0, 0] : f32 from vector<1x1x1xf32>
    %c0_30 = arith.constant 0 : index
    %c7 = arith.constant 7 : index
    %100 = memref.load %arg2[%c0_30, %c7] : memref<1x16xi32, #tpu.memory_space<smem>>
    %101 = vector.broadcast %100 : i32 to vector<128x128xi32>
    %102 = arith.cmpi sle, %36, %101 : vector<128x128xi32>
    %103 = arith.andi %39, %102 : vector<128x128xi1>
    %104 = arith.extui %103 : vector<128x128xi1> to vector<128x128xi32>
    %105 = arith.sitofp %104 : vector<128x128xi32> to vector<128x128xf32>
    %106 = vector.shape_cast %105 : vector<128x128xf32> to vector<1x128x128xf32>
    %cst_31 = arith.constant dense<0.000000e+00> : vector<1xf32>
    %107 = vector.multi_reduction <add>, %106, %cst_31 [1, 2] : vector<1x128x128xf32> to vector<1xf32>
    %108 = vector.shape_cast %107 : vector<1xf32> to vector<1x1x1xf32>
    %109 = vector.extract %108[0, 0, 0] : f32 from vector<1x1x1xf32>
    %c0_32 = arith.constant 0 : index
    %c8 = arith.constant 8 : index
    %110 = memref.load %arg2[%c0_32, %c8] : memref<1x16xi32, #tpu.memory_space<smem>>
    %111 = vector.broadcast %110 : i32 to vector<128x128xi32>
    %112 = arith.cmpi sle, %36, %111 : vector<128x128xi32>
    %113 = arith.andi %39, %112 : vector<128x128xi1>
    %114 = arith.extui %113 : vector<128x128xi1> to vector<128x128xi32>
    %115 = arith.sitofp %114 : vector<128x128xi32> to vector<128x128xf32>
    %116 = vector.shape_cast %115 : vector<128x128xf32> to vector<1x128x128xf32>
    %cst_33 = arith.constant dense<0.000000e+00> : vector<1xf32>
    %117 = vector.multi_reduction <add>, %116, %cst_33 [1, 2] : vector<1x128x128xf32> to vector<1xf32>
    %118 = vector.shape_cast %117 : vector<1xf32> to vector<1x1x1xf32>
    %119 = vector.extract %118[0, 0, 0] : f32 from vector<1x1x1xf32>
    %c0_34 = arith.constant 0 : index
    %c9 = arith.constant 9 : index
    %120 = memref.load %arg2[%c0_34, %c9] : memref<1x16xi32, #tpu.memory_space<smem>>
    %121 = vector.broadcast %120 : i32 to vector<128x128xi32>
    %122 = arith.cmpi sle, %36, %121 : vector<128x128xi32>
    %123 = arith.andi %39, %122 : vector<128x128xi1>
    %124 = arith.extui %123 : vector<128x128xi1> to vector<128x128xi32>
    %125 = arith.sitofp %124 : vector<128x128xi32> to vector<128x128xf32>
    %126 = vector.shape_cast %125 : vector<128x128xf32> to vector<1x128x128xf32>
    %cst_35 = arith.constant dense<0.000000e+00> : vector<1xf32>
    %127 = vector.multi_reduction <add>, %126, %cst_35 [1, 2] : vector<1x128x128xf32> to vector<1xf32>
    %128 = vector.shape_cast %127 : vector<1xf32> to vector<1x1x1xf32>
    %129 = vector.extract %128[0, 0, 0] : f32 from vector<1x1x1xf32>
    %c0_36 = arith.constant 0 : index
    %c10 = arith.constant 10 : index
    %130 = memref.load %arg2[%c0_36, %c10] : memref<1x16xi32, #tpu.memory_space<smem>>
    %131 = vector.broadcast %130 : i32 to vector<128x128xi32>
    %132 = arith.cmpi sle, %36, %131 : vector<128x128xi32>
    %133 = arith.andi %39, %132 : vector<128x128xi1>
    %134 = arith.extui %133 : vector<128x128xi1> to vector<128x128xi32>
    %135 = arith.sitofp %134 : vector<128x128xi32> to vector<128x128xf32>
    %136 = vector.shape_cast %135 : vector<128x128xf32> to vector<1x128x128xf32>
    %cst_37 = arith.constant dense<0.000000e+00> : vector<1xf32>
    %137 = vector.multi_reduction <add>, %136, %cst_37 [1, 2] : vector<1x128x128xf32> to vector<1xf32>
    %138 = vector.shape_cast %137 : vector<1xf32> to vector<1x1x1xf32>
    %139 = vector.extract %138[0, 0, 0] : f32 from vector<1x1x1xf32>
    %c0_38 = arith.constant 0 : index
    %c11 = arith.constant 11 : index
    %140 = memref.load %arg2[%c0_38, %c11] : memref<1x16xi32, #tpu.memory_space<smem>>
    %141 = vector.broadcast %140 : i32 to vector<128x128xi32>
    %142 = arith.cmpi sle, %36, %141 : vector<128x128xi32>
    %143 = arith.andi %39, %142 : vector<128x128xi1>
    %144 = arith.extui %143 : vector<128x128xi1> to vector<128x128xi32>
    %145 = arith.sitofp %144 : vector<128x128xi32> to vector<128x128xf32>
    %146 = vector.shape_cast %145 : vector<128x128xf32> to vector<1x128x128xf32>
    %cst_39 = arith.constant dense<0.000000e+00> : vector<1xf32>
    %147 = vector.multi_reduction <add>, %146, %cst_39 [1, 2] : vector<1x128x128xf32> to vector<1xf32>
    %148 = vector.shape_cast %147 : vector<1xf32> to vector<1x1x1xf32>
    %149 = vector.extract %148[0, 0, 0] : f32 from vector<1x1x1xf32>
    %c0_40 = arith.constant 0 : index
    %c12 = arith.constant 12 : index
    %150 = memref.load %arg2[%c0_40, %c12] : memref<1x16xi32, #tpu.memory_space<smem>>
    %151 = vector.broadcast %150 : i32 to vector<128x128xi32>
    %152 = arith.cmpi sle, %36, %151 : vector<128x128xi32>
    %153 = arith.andi %39, %152 : vector<128x128xi1>
    %154 = arith.extui %153 : vector<128x128xi1> to vector<128x128xi32>
    %155 = arith.sitofp %154 : vector<128x128xi32> to vector<128x128xf32>
    %156 = vector.shape_cast %155 : vector<128x128xf32> to vector<1x128x128xf32>
    %cst_41 = arith.constant dense<0.000000e+00> : vector<1xf32>
    %157 = vector.multi_reduction <add>, %156, %cst_41 [1, 2] : vector<1x128x128xf32> to vector<1xf32>
    %158 = vector.shape_cast %157 : vector<1xf32> to vector<1x1x1xf32>
    %159 = vector.extract %158[0, 0, 0] : f32 from vector<1x1x1xf32>
    %c0_42 = arith.constant 0 : index
    %c13 = arith.constant 13 : index
    %160 = memref.load %arg2[%c0_42, %c13] : memref<1x16xi32, #tpu.memory_space<smem>>
    %161 = vector.broadcast %160 : i32 to vector<128x128xi32>
    %162 = arith.cmpi sle, %36, %161 : vector<128x128xi32>
    %163 = arith.andi %39, %162 : vector<128x128xi1>
    %164 = arith.extui %163 : vector<128x128xi1> to vector<128x128xi32>
    %165 = arith.sitofp %164 : vector<128x128xi32> to vector<128x128xf32>
    %166 = vector.shape_cast %165 : vector<128x128xf32> to vector<1x128x128xf32>
    %cst_43 = arith.constant dense<0.000000e+00> : vector<1xf32>
    %167 = vector.multi_reduction <add>, %166, %cst_43 [1, 2] : vector<1x128x128xf32> to vector<1xf32>
    %168 = vector.shape_cast %167 : vector<1xf32> to vector<1x1x1xf32>
    %169 = vector.extract %168[0, 0, 0] : f32 from vector<1x1x1xf32>
    %c0_44 = arith.constant 0 : index
    %c14 = arith.constant 14 : index
    %170 = memref.load %arg2[%c0_44, %c14] : memref<1x16xi32, #tpu.memory_space<smem>>
    %171 = vector.broadcast %170 : i32 to vector<128x128xi32>
    %172 = arith.cmpi sle, %36, %171 : vector<128x128xi32>
    %173 = arith.andi %39, %172 : vector<128x128xi1>
    %174 = arith.extui %173 : vector<128x128xi1> to vector<128x128xi32>
    %175 = arith.sitofp %174 : vector<128x128xi32> to vector<128x128xf32>
    %176 = vector.shape_cast %175 : vector<128x128xf32> to vector<1x128x128xf32>
    %cst_45 = arith.constant dense<0.000000e+00> : vector<1xf32>
    %177 = vector.multi_reduction <add>, %176, %cst_45 [1, 2] : vector<1x128x128xf32> to vector<1xf32>
    %178 = vector.shape_cast %177 : vector<1xf32> to vector<1x1x1xf32>
    %179 = vector.extract %178[0, 0, 0] : f32 from vector<1x1x1xf32>
    %c0_46 = arith.constant 0 : index
    %c15 = arith.constant 15 : index
    %180 = memref.load %arg2[%c0_46, %c15] : memref<1x16xi32, #tpu.memory_space<smem>>
    %181 = vector.broadcast %180 : i32 to vector<128x128xi32>
    %182 = arith.cmpi sle, %36, %181 : vector<128x128xi32>
    %183 = arith.andi %39, %182 : vector<128x128xi1>
    %184 = arith.extui %183 : vector<128x128xi1> to vector<128x128xi32>
    %185 = arith.sitofp %184 : vector<128x128xi32> to vector<128x128xf32>
    %186 = vector.shape_cast %185 : vector<128x128xf32> to vector<1x128x128xf32>
    %cst_47 = arith.constant dense<0.000000e+00> : vector<1xf32>
    %187 = vector.multi_reduction <add>, %186, %cst_47 [1, 2] : vector<1x128x128xf32> to vector<1xf32>
    %188 = vector.shape_cast %187 : vector<1xf32> to vector<1x1x1xf32>
    %189 = vector.extract %188[0, 0, 0] : f32 from vector<1x1x1xf32>
    %190 = tpu.iota {dimensions = array<i32: 1>} : vector<8x128xi32>
    %cst_48 = arith.constant 0.000000e+00 : f32
    %191 = vector.broadcast %cst_48 : f32 to vector<8x128xf32>
    %c0_i32 = arith.constant 0 : i32
    %192 = vector.broadcast %c0_i32 : i32 to vector<8x128xi32>
    %193 = arith.cmpi eq, %190, %192 : vector<8x128xi32>
    %194 = vector.broadcast %49 : f32 to vector<8x128xf32>
    %195 = arith.select %193, %194, %191 : vector<8x128xi1>, vector<8x128xf32>
    %c1_i32 = arith.constant 1 : i32
    %196 = vector.broadcast %c1_i32 : i32 to vector<8x128xi32>
    %197 = arith.cmpi eq, %190, %196 : vector<8x128xi32>
    %198 = vector.broadcast %59 : f32 to vector<8x128xf32>
    %199 = arith.select %197, %198, %195 : vector<8x128xi1>, vector<8x128xf32>
    %c2_i32 = arith.constant 2 : i32
    %200 = vector.broadcast %c2_i32 : i32 to vector<8x128xi32>
    %201 = arith.cmpi eq, %190, %200 : vector<8x128xi32>
    %202 = vector.broadcast %69 : f32 to vector<8x128xf32>
    %203 = arith.select %201, %202, %199 : vector<8x128xi1>, vector<8x128xf32>
    %c3_i32 = arith.constant 3 : i32
    %204 = vector.broadcast %c3_i32 : i32 to vector<8x128xi32>
    %205 = arith.cmpi eq, %190, %204 : vector<8x128xi32>
    %206 = vector.broadcast %79 : f32 to vector<8x128xf32>
    %207 = arith.select %205, %206, %203 : vector<8x128xi1>, vector<8x128xf32>
    %c4_i32 = arith.constant 4 : i32
    %208 = vector.broadcast %c4_i32 : i32 to vector<8x128xi32>
    %209 = arith.cmpi eq, %190, %208 : vector<8x128xi32>
    %210 = vector.broadcast %89 : f32 to vector<8x128xf32>
    %211 = arith.select %209, %210, %207 : vector<8x128xi1>, vector<8x128xf32>
    %c5_i32 = arith.constant 5 : i32
    %212 = vector.broadcast %c5_i32 : i32 to vector<8x128xi32>
    %213 = arith.cmpi eq, %190, %212 : vector<8x128xi32>
    %214 = vector.broadcast %99 : f32 to vector<8x128xf32>
    %215 = arith.select %213, %214, %211 : vector<8x128xi1>, vector<8x128xf32>
    %c6_i32 = arith.constant 6 : i32
    %216 = vector.broadcast %c6_i32 : i32 to vector<8x128xi32>
    %217 = arith.cmpi eq, %190, %216 : vector<8x128xi32>
    %218 = vector.broadcast %109 : f32 to vector<8x128xf32>
    %219 = arith.select %217, %218, %215 : vector<8x128xi1>, vector<8x128xf32>
    %c7_i32 = arith.constant 7 : i32
    %220 = vector.broadcast %c7_i32 : i32 to vector<8x128xi32>
    %221 = arith.cmpi eq, %190, %220 : vector<8x128xi32>
    %222 = vector.broadcast %119 : f32 to vector<8x128xf32>
    %223 = arith.select %221, %222, %219 : vector<8x128xi1>, vector<8x128xf32>
    %c8_i32_49 = arith.constant 8 : i32
    %224 = vector.broadcast %c8_i32_49 : i32 to vector<8x128xi32>
    %225 = arith.cmpi eq, %190, %224 : vector<8x128xi32>
    %226 = vector.broadcast %129 : f32 to vector<8x128xf32>
    %227 = arith.select %225, %226, %223 : vector<8x128xi1>, vector<8x128xf32>
    %c9_i32 = arith.constant 9 : i32
    %228 = vector.broadcast %c9_i32 : i32 to vector<8x128xi32>
    %229 = arith.cmpi eq, %190, %228 : vector<8x128xi32>
    %230 = vector.broadcast %139 : f32 to vector<8x128xf32>
    %231 = arith.select %229, %230, %227 : vector<8x128xi1>, vector<8x128xf32>
    %c10_i32 = arith.constant 10 : i32
    %232 = vector.broadcast %c10_i32 : i32 to vector<8x128xi32>
    %233 = arith.cmpi eq, %190, %232 : vector<8x128xi32>
    %234 = vector.broadcast %149 : f32 to vector<8x128xf32>
    %235 = arith.select %233, %234, %231 : vector<8x128xi1>, vector<8x128xf32>
    %c11_i32 = arith.constant 11 : i32
    %236 = vector.broadcast %c11_i32 : i32 to vector<8x128xi32>
    %237 = arith.cmpi eq, %190, %236 : vector<8x128xi32>
    %238 = vector.broadcast %159 : f32 to vector<8x128xf32>
    %239 = arith.select %237, %238, %235 : vector<8x128xi1>, vector<8x128xf32>
    %c12_i32 = arith.constant 12 : i32
    %240 = vector.broadcast %c12_i32 : i32 to vector<8x128xi32>
    %241 = arith.cmpi eq, %190, %240 : vector<8x128xi32>
    %242 = vector.broadcast %169 : f32 to vector<8x128xf32>
    %243 = arith.select %241, %242, %239 : vector<8x128xi1>, vector<8x128xf32>
    %c13_i32 = arith.constant 13 : i32
    %244 = vector.broadcast %c13_i32 : i32 to vector<8x128xi32>
    %245 = arith.cmpi eq, %190, %244 : vector<8x128xi32>
    %246 = vector.broadcast %179 : f32 to vector<8x128xf32>
    %247 = arith.select %245, %246, %243 : vector<8x128xi1>, vector<8x128xf32>
    %c14_i32 = arith.constant 14 : i32
    %248 = vector.broadcast %c14_i32 : i32 to vector<8x128xi32>
    %249 = arith.cmpi eq, %190, %248 : vector<8x128xi32>
    %250 = vector.broadcast %189 : f32 to vector<8x128xf32>
    %251 = arith.select %249, %250, %247 : vector<8x128xi1>, vector<8x128xf32>
    %c0_50 = arith.constant 0 : index
    %c0_51 = arith.constant 0 : index
    %252 = vector.load %arg9[%c0_50, %c0_51] : memref<8x128xf32, #tpu.memory_space<vmem>>, vector<8x128xf32>
    tpu.vector_store %arg9[%c0_50, %c0_51], %251 {strides = array<i32>} : memref<8x128xf32, #tpu.memory_space<vmem>>, vector<8x128xf32>,
    return
  }
  func.func @transform_0(%arg0: i32, %arg1: i32) -> (i32, i32) {
    %c0_i32 = arith.constant 0 : i32
    %c0_i32_0 = arith.constant 0 : i32
    %c0_i32_1 = arith.constant 0 : i32
    return %c0_i32, %c0_i32_0 : i32, i32
  }
  func.func @transform_1(%arg0: i32, %arg1: i32) -> (i32, i32) {
    %c0_i32 = arith.constant 0 : i32
    %c0_i32_0 = arith.constant 0 : i32
    return %arg0, %c0_i32 : i32, i32
  }
  func.func @transform_2(%arg0: i32, %arg1: i32) -> (i32, i32) {
    %c0_i32 = arith.constant 0 : i32
    %c0_i32_0 = arith.constant 0 : i32
    return %arg1, %c0_i32 : i32, i32
  }
  func.func @transform_3(%arg0: i32, %arg1: i32) -> (i32, i32) {
    %c0_i32 = arith.constant 0 : i32
    %c0_i32_0 = arith.constant 0 : i32
    return %arg0, %c0_i32 : i32, i32
  }
  func.func @transform_4(%arg0: i32, %arg1: i32) -> (i32, i32) {
    %c0_i32 = arith.constant 0 : i32
    %c0_i32_0 = arith.constant 0 : i32
    return %c0_i32, %arg1 : i32, i32
  }
  func.func @transform_5(%arg0: i32, %arg1: i32) -> (i32, i32) {
    %c0_i32 = arith.constant 0 : i32
    %c0_i32_0 = arith.constant 0 : i32
    return %arg0, %c0_i32 : i32, i32
  }
  func.func @transform_6(%arg0: i32, %arg1: i32) -> (i32, i32) {
    %c0_i32 = arith.constant 0 : i32
    %c0_i32_0 = arith.constant 0 : i32
    return %c0_i32, %arg1 : i32, i32
  }
  func.func @transform_7(%arg0: i32, %arg1: i32) -> (i32, i32) {
    %c0_i32 = arith.constant 0 : i32
    return %arg0, %arg1 : i32, i32
  }
}

module attributes {stable_mosaic.version = 11 : i64} {
  func.func @_neg_loss_kernel(%arg0: i32, %arg1: i32, %arg2: memref<1x1xf32, #tpu.memory_space<smem>>, %arg3: memref<128x128xf32, #tpu.memory_space<vmem>>, %arg4: memref<128x128xf32, #tpu.memory_space<vmem>>, %arg5: memref<128x1xf32, #tpu.memory_space<vmem>>, %arg6: memref<1x128xf32, #tpu.memory_space<vmem>>, %arg7: memref<128x1xi32, #tpu.memory_space<vmem>>, %arg8: memref<1x128xi32, #tpu.memory_space<vmem>>, %arg9: memref<8x128xf32, #tpu.memory_space<vmem>>) attributes {dimension_semantics = [#tpu.dimension_semantics<parallel>, #tpu.dimension_semantics<parallel>], iteration_bounds = array<i64: 1, 1>, scalar_prefetch = 0 : i64, scratch_operands = 0 : i64, tpu.core_type = #tpu.core_type<tc>, window_params = [{transform_indices = @transform_0, window_bounds = array<i64: 1, 1>}, {transform_indices = @transform_1, window_bounds = array<i64: 128, 128>}, {transform_indices = @transform_2, window_bounds = array<i64: 128, 128>}, {transform_indices = @transform_3, window_bounds = array<i64: 128, 1>}, {transform_indices = @transform_4, window_bounds = array<i64: 1, 128>}, {transform_indices = @transform_5, window_bounds = array<i64: 128, 1>}, {transform_indices = @transform_6, window_bounds = array<i64: 1, 128>}, {transform_indices = @transform_7, window_bounds = array<i64: 8, 128>}]} {
    %c0 = arith.constant 0 : index
    %c0_0 = arith.constant 0 : index
    %0 = vector.load %arg3[%c0, %c0_0] : memref<128x128xf32, #tpu.memory_space<vmem>>, vector<128x128xf32>
    %c0_1 = arith.constant 0 : index
    %c0_2 = arith.constant 0 : index
    %1 = vector.load %arg4[%c0_1, %c0_2] : memref<128x128xf32, #tpu.memory_space<vmem>>, vector<128x128xf32>
    "tpu.trace_start"() <{level = 10 : i32, message = "mf,nf->mn"}> : () -> ()
    %cst = arith.constant dense<0.000000e+00> : vector<128x128xf32>
    %2 = tpu.matmul %0, %1, %cst {dimension_numbers = #tpu.dot_dimension_numbers<[1], [1], [0], [0], [0, 0, 1, 0], [], []>} : vector<128x128xf32>, vector<128x128xf32>, vector<128x128xf32> -> vector<128x128xf32>
    "tpu.trace_stop"() : () -> ()
    %c0_3 = arith.constant 0 : index
    %c0_4 = arith.constant 0 : index
    %3 = vector.load %arg5[%c0_3, %c0_4] : memref<128x1xf32, #tpu.memory_space<vmem>>, vector<128x1xf32>
    %c0_5 = arith.constant 0 : index
    %c0_6 = arith.constant 0 : index
    %4 = vector.load %arg6[%c0_5, %c0_6] : memref<1x128xf32, #tpu.memory_space<vmem>>, vector<1x128xf32>
    %5 = vector.broadcast %3 : vector<128x1xf32> to vector<128x128xf32>
    %6 = vector.broadcast %4 : vector<1x128xf32> to vector<128x128xf32>
    %7 = arith.addf %5, %6 : vector<128x128xf32>
    %cst_7 = arith.constant 2.000000e+00 : f32
    %8 = vector.broadcast %cst_7 : f32 to vector<128x128xf32>
    %9 = arith.mulf %8, %2 : vector<128x128xf32>
    %10 = arith.subf %7, %9 : vector<128x128xf32>
    %cst_8 = arith.constant 0.000000e+00 : f32
    %11 = vector.broadcast %cst_8 : f32 to vector<128x128xf32>
    %12 = arith.maximumf %10, %11 : vector<128x128xf32>
    %13 = math.sqrt %12 : vector<128x128xf32>
    %c0_9 = arith.constant 0 : index
    %c0_10 = arith.constant 0 : index
    %14 = vector.load %arg7[%c0_9, %c0_10] : memref<128x1xi32, #tpu.memory_space<vmem>>, vector<128x1xi32>
    %c0_11 = arith.constant 0 : index
    %c0_12 = arith.constant 0 : index
    %15 = vector.load %arg8[%c0_11, %c0_12] : memref<1x128xi32, #tpu.memory_space<vmem>>, vector<1x128xi32>
    %16 = vector.broadcast %14 : vector<128x1xi32> to vector<128x128xi32>
    %17 = vector.broadcast %15 : vector<1x128xi32> to vector<128x128xi32>
    %18 = arith.cmpi eq, %16, %17 : vector<128x128xi32>
    %c128_i32 = arith.constant 128 : i32
    %19 = arith.muli %arg0, %c128_i32 : i32
    %20 = tpu.iota {dimensions = array<i32: 0>} : vector<128x128xi32>
    %21 = vector.broadcast %19 : i32 to vector<128x128xi32>
    %22 = arith.addi %21, %20 : vector<128x128xi32>
    %c128_i32_13 = arith.constant 128 : i32
    %23 = arith.muli %arg1, %c128_i32_13 : i32
    %24 = tpu.iota {dimensions = array<i32: 1>} : vector<128x128xi32>
    %25 = vector.broadcast %23 : i32 to vector<128x128xi32>
    %26 = arith.addi %25, %24 : vector<128x128xi32>
    %c8_i32 = arith.constant 8 : i32
    %27 = vector.broadcast %c8_i32 : i32 to vector<128x128xi32>
    %28 = arith.cmpi slt, %22, %27 : vector<128x128xi32>
    %c8_i32_14 = arith.constant 8 : i32
    %29 = vector.broadcast %c8_i32_14 : i32 to vector<128x128xi32>
    %30 = arith.cmpi slt, %26, %29 : vector<128x128xi32>
    %31 = arith.andi %28, %30 : vector<128x128xi1>
    %c0_15 = arith.constant 0 : index
    %c0_16 = arith.constant 0 : index
    %32 = memref.load %arg2[%c0_15, %c0_16] : memref<1x1xf32, #tpu.memory_space<smem>>
    %cst_17 = arith.constant dense<true> : vector<128x128xi1>
    %33 = arith.xori %18, %cst_17 : vector<128x128xi1>
    %34 = arith.andi %31, %33 : vector<128x128xi1>
    %cst_18 = arith.constant 6.400000e-01 : f32
    %35 = vector.broadcast %cst_18 : f32 to vector<128x128xf32>
    %36 = arith.cmpf olt, %13, %35 : vector<128x128xf32>
    %37 = arith.andi %34, %36 : vector<128x128xi1>
    %38 = vector.broadcast %32 : f32 to vector<128x128xf32>
    %39 = arith.cmpf olt, %13, %38 : vector<128x128xf32>
    %40 = arith.andi %37, %39 : vector<128x128xi1>
    %cst_19 = arith.constant 6.400000e-01 : f32
    %41 = vector.broadcast %cst_19 : f32 to vector<128x128xf32>
    %42 = arith.subf %41, %13 : vector<128x128xf32>
    %cst_20 = arith.constant 0.000000e+00 : f32
    %43 = vector.broadcast %cst_20 : f32 to vector<128x128xf32>
    %44 = arith.select %40, %42, %43 : vector<128x128xi1>, vector<128x128xf32>
    %45 = vector.shape_cast %44 : vector<128x128xf32> to vector<1x128x128xf32>
    %cst_21 = arith.constant dense<0.000000e+00> : vector<1xf32>
    %46 = vector.multi_reduction <add>, %45, %cst_21 [1, 2] : vector<1x128x128xf32> to vector<1xf32>
    %47 = vector.shape_cast %46 : vector<1xf32> to vector<1x1x1xf32>
    %48 = vector.extract %47[0, 0, 0] : f32 from vector<1x1x1xf32>
    %49 = tpu.iota {dimensions = array<i32: 1>} : vector<8x128xi32>
    %cst_22 = arith.constant 0.000000e+00 : f32
    %50 = vector.broadcast %cst_22 : f32 to vector<8x128xf32>
    %c0_i32 = arith.constant 0 : i32
    %51 = vector.broadcast %c0_i32 : i32 to vector<8x128xi32>
    %52 = arith.cmpi eq, %49, %51 : vector<8x128xi32>
    %53 = vector.broadcast %48 : f32 to vector<8x128xf32>
    %54 = arith.select %52, %53, %50 : vector<8x128xi1>, vector<8x128xf32>
    %c0_23 = arith.constant 0 : index
    %c0_24 = arith.constant 0 : index
    %55 = vector.load %arg9[%c0_23, %c0_24] : memref<8x128xf32, #tpu.memory_space<vmem>>, vector<8x128xf32>
    tpu.vector_store %arg9[%c0_23, %c0_24], %54 {strides = array<i32>} : memref<8x128xf32, #tpu.memory_space<vmem>>, vector<8x128xf32>,
    return
  }
  func.func @transform_0(%arg0: i32, %arg1: i32) -> (i32, i32) {
    %c0_i32 = arith.constant 0 : i32
    %c0_i32_0 = arith.constant 0 : i32
    %c0_i32_1 = arith.constant 0 : i32
    return %c0_i32, %c0_i32_0 : i32, i32
  }
  func.func @transform_1(%arg0: i32, %arg1: i32) -> (i32, i32) {
    %c0_i32 = arith.constant 0 : i32
    %c0_i32_0 = arith.constant 0 : i32
    return %arg0, %c0_i32 : i32, i32
  }
  func.func @transform_2(%arg0: i32, %arg1: i32) -> (i32, i32) {
    %c0_i32 = arith.constant 0 : i32
    %c0_i32_0 = arith.constant 0 : i32
    return %arg1, %c0_i32 : i32, i32
  }
  func.func @transform_3(%arg0: i32, %arg1: i32) -> (i32, i32) {
    %c0_i32 = arith.constant 0 : i32
    %c0_i32_0 = arith.constant 0 : i32
    return %arg0, %c0_i32 : i32, i32
  }
  func.func @transform_4(%arg0: i32, %arg1: i32) -> (i32, i32) {
    %c0_i32 = arith.constant 0 : i32
    %c0_i32_0 = arith.constant 0 : i32
    return %c0_i32, %arg1 : i32, i32
  }
  func.func @transform_5(%arg0: i32, %arg1: i32) -> (i32, i32) {
    %c0_i32 = arith.constant 0 : i32
    %c0_i32_0 = arith.constant 0 : i32
    return %arg0, %c0_i32 : i32, i32
  }
  func.func @transform_6(%arg0: i32, %arg1: i32) -> (i32, i32) {
    %c0_i32 = arith.constant 0 : i32
    %c0_i32_0 = arith.constant 0 : i32
    return %c0_i32, %arg1 : i32, i32
  }
  func.func @transform_7(%arg0: i32, %arg1: i32) -> (i32, i32) {
    %c0_i32 = arith.constant 0 : i32
    return %arg0, %arg1 : i32, i32
  }
}

</mosaic_0001>

<llo_original>
// kernel: branch_1_fun.1
$region0: #{branch_1_fun.1}
  #allocation0 [shape = 'u32[]', space=smem, size = 0x4, offset = 0x4, fixed_abs, tag = 'smem constant byte address 0x4 - core index']
  #allocation1 [shape = 'u32[72,128]{1,0:T(1,128)}', space=vmem, size = 0x9000, scoped, tag = 'internal scratch']
  #allocation2 [shape = 'f32[1,1]{1,0:T(1,128)S(6)}', space=smem, size = 0x200, scoped, tag = 'scoped memory for branch_1_fun.1']
  %s0 = inlined_call_operand.<no memory space> [shape: f32[1,1], index: 0, kind: input, shape index: {}]
  %s1 = inlined_call_operand.vmem [shape: f32[128,128], index: 1, kind: input, shape index: {}, may-alias: {1,2}]
  %s2 = inlined_call_operand.vmem [shape: f32[128,128], index: 2, kind: input, shape index: {}, may-alias: {1,2}]
  %s3 = inlined_call_operand.vmem [shape: f32[128,1], index: 3, kind: input, shape index: {}]
  %s4 = inlined_call_operand.vmem [shape: f32[1,128], index: 4, kind: input, shape index: {}]
  %s5 = inlined_call_operand.vmem [shape: s32[128,1], index: 5, kind: input, shape index: {}]
  %s6 = inlined_call_operand.vmem [shape: s32[1,128], index: 6, kind: input, shape index: {}]
  %s7 = inlined_call_operand.vmem [shape: f32[8,128], index: 7, kind: output, shape index: {}]
  %s8 = sld [smem:[#allocation0]]
  $region38: #{branch_1_fun.1} parent=0
    _
  %s10 = ssub.s32 1, %s8
  %s11 = scalar_select 0, %s10, %s8
  %12 = sst [smem:[#allocation2]] %s0
  // Predicated region
  $region2: #{branch_1_fun.1} parent=0 // pred_check
    _
  $region3: #{branch_1_fun.1} parent=0 // pred_check_branch
    %14 = sbr.rel (0) target = $region5
  $region4: #{branch_1_fun.1} parent=0 // pred_region
    _
  $region5: #{branch_1_fun.1} parent=0 // pred_fallthru
    _
  // Predicated region
  $region6: #{branch_1_fun.1} parent=0 // pred_check
    _
  $region7: #{branch_1_fun.1} parent=0 // pred_check_branch
    %16 = sbr.rel (0) target = $region9
  $region8: #{branch_1_fun.1} parent=0 // pred_region
    _
  $region9: #{branch_1_fun.1} parent=0 // pred_fallthru
    _
  // Predicated region
  $region10: #{branch_1_fun.1} parent=0 // pred_check
    _
  $region11: #{branch_1_fun.1} parent=0 // pred_check_branch
    %18 = sbr.rel (0) target = $region13
  $region12: #{branch_1_fun.1} parent=0 // pred_region
    _
  $region13: #{branch_1_fun.1} parent=0 // pred_fallthru
    _
  // Predicated region
  $region14: #{branch_1_fun.1} parent=0 // pred_check
    _
  $region15: #{branch_1_fun.1} parent=0 // pred_check_branch
    %20 = sbr.rel (0) target = $region17
  $region16: #{branch_1_fun.1} parent=0 // pred_region
    _
  $region17: #{branch_1_fun.1} parent=0 // pred_fallthru
    _
  // Predicated region
  $region18: #{branch_1_fun.1} parent=0 // pred_check
    _
  $region19: #{branch_1_fun.1} parent=0 // pred_check_branch
    %22 = sbr.rel (0) target = $region21
  $region20: #{branch_1_fun.1} parent=0 // pred_region
    _
  $region21: #{branch_1_fun.1} parent=0 // pred_fallthru
    _
  // Predicated region
  $region22: #{branch_1_fun.1} parent=0 // pred_check
    _
  $region23: #{branch_1_fun.1} parent=0 // pred_check_branch
    %24 = sbr.rel (0) target = $region25
  $region24: #{branch_1_fun.1} parent=0 // pred_region
    _
  $region25: #{branch_1_fun.1} parent=0 // pred_fallthru
    _
  // Predicated region
  $region26: #{branch_1_fun.1} parent=0 // pred_check
    _
  $region27: #{branch_1_fun.1} parent=0 // pred_check_branch
    %26 = sbr.rel (0) target = $region29
  $region28: #{branch_1_fun.1} parent=0 // pred_region
    _
  $region29: #{branch_1_fun.1} parent=0 // pred_fallthru
    _
  %v27 = vld [vmem:[%s1] sm:$0xff]
  %v28 = vld [vmem:[%s1 + $0x8] sm:$0xff]
  %v29 = vld [vmem:[%s1 + $0x10] sm:$0xff]
  %v30 = vld [vmem:[%s1 + $0x18] sm:$0xff]
  %v31 = vld [vmem:[%s1 + $0x20] sm:$0xff]
  %v32 = vld [vmem:[%s1 + $0x28] sm:$0xff]
  %v33 = vld [vmem:[%s1 + $0x30] sm:$0xff]
  %v34 = vld [vmem:[%s1 + $0x38] sm:$0xff]
  %v35 = vld [vmem:[%s1 + $0x40] sm:$0xff]
  %v36 = vld [vmem:[%s1 + $0x48] sm:$0xff]
  %v37 = vld [vmem:[%s1 + $0x50] sm:$0xff]
  %v38 = vld [vmem:[%s1 + $0x58] sm:$0xff]
  %v39 = vld [vmem:[%s1 + $0x60] sm:$0xff]
  %v40 = vld [vmem:[%s1 + $0x68] sm:$0xff]
  %v41 = vld [vmem:[%s1 + $0x70] sm:$0xff]
  %v42 = vld [vmem:[%s1 + $0x78] sm:$0xff]
  %v43 = vld [vmem:[%s2] sm:$0xff]
  %v44 = vld [vmem:[%s2 + $0x8] sm:$0xff]
  %v45 = vld [vmem:[%s2 + $0x10] sm:$0xff]
  %v46 = vld [vmem:[%s2 + $0x18] sm:$0xff]
  %v47 = vld [vmem:[%s2 + $0x20] sm:$0xff]
  %v48 = vld [vmem:[%s2 + $0x28] sm:$0xff]
  %v49 = vld [vmem:[%s2 + $0x30] sm:$0xff]
  %v50 = vld [vmem:[%s2 + $0x38] sm:$0xff]
  %v51 = vld [vmem:[%s2 + $0x40] sm:$0xff]
  %v52 = vld [vmem:[%s2 + $0x48] sm:$0xff]
  %v53 = vld [vmem:[%s2 + $0x50] sm:$0xff]
  %v54 = vld [vmem:[%s2 + $0x58] sm:$0xff]
  %v55 = vld [vmem:[%s2 + $0x60] sm:$0xff]
  %v56 = vld [vmem:[%s2 + $0x68] sm:$0xff]
  %v57 = vld [vmem:[%s2 + $0x70] sm:$0xff]
  %v58 = vld [vmem:[%s2 + $0x78] sm:$0xff]
  %59 = vmatpush.xpose.msra.mxu0 %v58
  %60 = vmatpush.xpose.msra.mxu0 %v57
  %61 = vmatpush.xpose.msra.mxu0 %v56
  %62 = vmatpush.xpose.msra.mxu0 %v55
  %63 = vmatpush.xpose.msra.mxu0 %v54
  %64 = vmatpush.xpose.msra.mxu0 %v53
  %65 = vmatpush.xpose.msra.mxu0 %v52
  %66 = vmatpush.xpose.msra.mxu0 %v51
  %67 = vmatpush.xpose.msra.mxu0 %v50
  %68 = vmatpush.xpose.msra.mxu0 %v49
  %69 = vmatpush.xpose.msra.mxu0 %v48
  %70 = vmatpush.xpose.msra.mxu0 %v47
  %71 = vmatpush.xpose.msra.mxu0 %v46
  %72 = vmatpush.xpose.msra.mxu0 %v45
  %73 = vmatpush.xpose.msra.mxu0 %v44
  %74 = vmatpush.xpose.msra.mxu0 %v43
  %75 = vmatmul.f32.gmra.mxu0 %v27
  %v76 = vpop.f32.mrf.mxu0
  %v77 = vadd.f32 0.0, %v76
  %78 = vmatmul.f32.gmra.mxu0 %v28
  %v79 = vpop.f32.mrf.mxu0
  %v80 = vadd.f32 0.0, %v79
  %81 = vmatmul.f32.gmra.mxu0 %v29
  %v82 = vpop.f32.mrf.mxu0
  %v83 = vadd.f32 0.0, %v82
  %84 = vmatmul.f32.gmra.mxu0 %v30
  %v85 = vpop.f32.mrf.mxu0
  %v86 = vadd.f32 0.0, %v85
  %87 = vmatmul.f32.gmra.mxu0 %v31
  %v88 = vpop.f32.mrf.mxu0
  %v89 = vadd.f32 0.0, %v88
  %90 = vmatmul.f32.gmra.mxu0 %v32
  %v91 = vpop.f32.mrf.mxu0
  %v92 = vadd.f32 0.0, %v91
  %93 = vmatmul.f32.gmra.mxu0 %v33
  %v94 = vpop.f32.mrf.mxu0
  %v95 = vadd.f32 0.0, %v94
  %96 = vmatmul.f32.gmra.mxu0 %v34
  %v97 = vpop.f32.mrf.mxu0
  %v98 = vadd.f32 0.0, %v97
  %99 = vmatmul.f32.gmra.mxu0 %v35
  %v100 = vpop.f32.mrf.mxu0
  %v101 = vadd.f32 0.0, %v100
  %102 = vmatmul.f32.gmra.mxu0 %v36
  %v103 = vpop.f32.mrf.mxu0
  %v104 = vadd.f32 0.0, %v103
  %105 = vmatmul.f32.gmra.mxu0 %v37
  %v106 = vpop.f32.mrf.mxu0
  %v107 = vadd.f32 0.0, %v106
  %108 = vmatmul.f32.gmra.mxu0 %v38
  %v109 = vpop.f32.mrf.mxu0
  %v110 = vadd.f32 0.0, %v109
  %111 = vmatmul.f32.gmra.mxu0 %v39
  %v112 = vpop.f32.mrf.mxu0
  %v113 = vadd.f32 0.0, %v112
  %114 = vmatmul.f32.gmra.mxu0 %v40
  %v115 = vpop.f32.mrf.mxu0
  %v116 = vadd.f32 0.0, %v115
  %117 = vmatmul.f32.gmra.mxu0 %v41
  %v118 = vpop.f32.mrf.mxu0
  %v119 = vadd.f32 0.0, %v118
  %120 = vmatmul.f32.gmra.mxu0 %v42
  %v121 = vpop.f32.mrf.mxu0
  %v122 = vadd.f32 0.0, %v121
  %123 = vdwg.mxu0
  %v124 = vld [vmem:[%s3] sm:$0xff]
  %v125 = vld [vmem:[%s3 + $0x8] sm:$0xff]
  %v126 = vld [vmem:[%s3 + $0x10] sm:$0xff]
  %v127 = vld [vmem:[%s3 + $0x18] sm:$0xff]
  %v128 = vld [vmem:[%s3 + $0x20] sm:$0xff]
  %v129 = vld [vmem:[%s3 + $0x28] sm:$0xff]
  %v130 = vld [vmem:[%s3 + $0x30] sm:$0xff]
  %v131 = vld [vmem:[%s3 + $0x38] sm:$0xff]
  %v132 = vld [vmem:[%s3 + $0x40] sm:$0xff]
  %v133 = vld [vmem:[%s3 + $0x48] sm:$0xff]
  %v134 = vld [vmem:[%s3 + $0x50] sm:$0xff]
  %v135 = vld [vmem:[%s3 + $0x58] sm:$0xff]
  %v136 = vld [vmem:[%s3 + $0x60] sm:$0xff]
  %v137 = vld [vmem:[%s3 + $0x68] sm:$0xff]
  %v138 = vld [vmem:[%s3 + $0x70] sm:$0xff]
  %v139 = vld [vmem:[%s3 + $0x78] sm:$0xff]
  %v140 = vld [vmem:[%s4] sm:$0x1]
  %142 = vset.pattern.permute.xlu0 0
  %143 = vperm.xlu0 %142, %v124
  %v144 = vpop.permute.xlu0 %143
  %147 = vset.pattern.permute.xlu0 0
  %148 = vperm.xlu0 %147, %v125
  %v149 = vpop.permute.xlu0 %148
  %152 = vset.pattern.permute.xlu0 0
  %153 = vperm.xlu0 %152, %v126
  %v154 = vpop.permute.xlu0 %153
  %157 = vset.pattern.permute.xlu0 0
  %158 = vperm.xlu0 %157, %v127
  %v159 = vpop.permute.xlu0 %158
  %162 = vset.pattern.permute.xlu0 0
  %163 = vperm.xlu0 %162, %v128
  %v164 = vpop.permute.xlu0 %163
  %167 = vset.pattern.permute.xlu0 0
  %168 = vperm.xlu0 %167, %v129
  %v169 = vpop.permute.xlu0 %168
  %172 = vset.pattern.permute.xlu0 0
  %173 = vperm.xlu0 %172, %v130
  %v174 = vpop.permute.xlu0 %173
  %177 = vset.pattern.permute.xlu0 0
  %178 = vperm.xlu0 %177, %v131
  %v179 = vpop.permute.xlu0 %178
  %182 = vset.pattern.permute.xlu0 0
  %183 = vperm.xlu0 %182, %v132
  %v184 = vpop.permute.xlu0 %183
  %187 = vset.pattern.permute.xlu0 0
  %188 = vperm.xlu0 %187, %v133
  %v189 = vpop.permute.xlu0 %188
  %192 = vset.pattern.permute.xlu0 0
  %193 = vperm.xlu0 %192, %v134
  %v194 = vpop.permute.xlu0 %193
  %197 = vset.pattern.permute.xlu0 0
  %198 = vperm.xlu0 %197, %v135
  %v199 = vpop.permute.xlu0 %198
  %202 = vset.pattern.permute.xlu0 0
  %203 = vperm.xlu0 %202, %v136
  %v204 = vpop.permute.xlu0 %203
  %207 = vset.pattern.permute.xlu0 0
  %208 = vperm.xlu0 %207, %v137
  %v209 = vpop.permute.xlu0 %208
  %212 = vset.pattern.permute.xlu0 0
  %213 = vperm.xlu0 %212, %v138
  %v214 = vpop.permute.xlu0 %213
  %217 = vset.pattern.permute.xlu0 0
  %218 = vperm.xlu0 %217, %v139
  %v219 = vpop.permute.xlu0 %218
  %v222 = vperm.slane %v140, 0
  %v224 = vadd.f32 %v144, %v222
  %v225 = vadd.f32 %v149, %v222
  %v226 = vadd.f32 %v154, %v222
  %v227 = vadd.f32 %v159, %v222
  %v228 = vadd.f32 %v164, %v222
  %v229 = vadd.f32 %v169, %v222
  %v230 = vadd.f32 %v174, %v222
  %v231 = vadd.f32 %v179, %v222
  %v232 = vadd.f32 %v184, %v222
  %v233 = vadd.f32 %v189, %v222
  %v234 = vadd.f32 %v194, %v222
  %v235 = vadd.f32 %v199, %v222
  %v236 = vadd.f32 %v204, %v222
  %v237 = vadd.f32 %v209, %v222
  %v238 = vadd.f32 %v214, %v222
  %v239 = vadd.f32 %v219, %v222
  %v240 = vmul.f32 %v77, 2.0
  %v241 = vmul.f32 %v80, 2.0
  %v242 = vmul.f32 %v83, 2.0
  %v243 = vmul.f32 %v86, 2.0
  %v244 = vmul.f32 %v89, 2.0
  %v245 = vmul.f32 %v92, 2.0
  %v246 = vmul.f32 %v95, 2.0
  %v247 = vmul.f32 %v98, 2.0
  %v248 = vmul.f32 %v101, 2.0
  %v249 = vmul.f32 %v104, 2.0
  %v250 = vmul.f32 %v107, 2.0
  %v251 = vmul.f32 %v110, 2.0
  %v252 = vmul.f32 %v113, 2.0
  %v253 = vmul.f32 %v116, 2.0
  %v254 = vmul.f32 %v119, 2.0
  %v255 = vmul.f32 %v122, 2.0
  %v256 = vsub.f32 %v224, %v240
  %v257 = vsub.f32 %v225, %v241
  %v258 = vsub.f32 %v226, %v242
  %v259 = vsub.f32 %v227, %v243
  %v260 = vsub.f32 %v228, %v244
  %v261 = vsub.f32 %v229, %v245
  %v262 = vsub.f32 %v230, %v246
  %v263 = vsub.f32 %v231, %v247
  %v264 = vsub.f32 %v232, %v248
  %v265 = vsub.f32 %v233, %v249
  %v266 = vsub.f32 %v234, %v250
  %v267 = vsub.f32 %v235, %v251
  %v268 = vsub.f32 %v236, %v252
  %v269 = vsub.f32 %v237, %v253
  %v270 = vsub.f32 %v238, %v254
  %v271 = vsub.f32 %v239, %v255
  %v272 = vmax.f32 %v256, 0.0
  %v273 = vmax.f32 %v257, 0.0
  %v274 = vmax.f32 %v258, 0.0
  %v275 = vmax.f32 %v259, 0.0
  %v276 = vmax.f32 %v260, 0.0
  %v277 = vmax.f32 %v261, 0.0
  %v278 = vmax.f32 %v262, 0.0
  %v279 = vmax.f32 %v263, 0.0
  %v280 = vmax.f32 %v264, 0.0
  %v281 = vmax.f32 %v265, 0.0
  %v282 = vmax.f32 %v266, 0.0
  %v283 = vmax.f32 %v267, 0.0
  %v284 = vmax.f32 %v268, 0.0
  %v285 = vmax.f32 %v269, 0.0
  %v286 = vmax.f32 %v270, 0.0
  %v287 = vmax.f32 %v271, 0.0
  %v288 = vrsqrt.pop %v272
  %v289 = vmul.f32 %v288, %v272
  %v290 = vmul.f32 %v289, %v288
  %v291 = vmul.f32 0.5, %v290
  %v292 = vsub.f32 1.5, %v291
  %v293 = vmul.f32 %v288, %v292
  %v294 = vmul.f32 %v272, %v293
  %vm295 = vcmp.eq.f32.partialorder %v272, inf
  %v296 = vsel %vm295, %v272, %v294
  %vm297 = vcmp.eq.f32.partialorder %v272, 0.0
  %v298 = vand.u32 %v272, 2147483648
  %v299 = vsel %vm297, %v298, %v296
  %v300 = vrsqrt.pop %v273
  %v301 = vmul.f32 %v300, %v273
  %v302 = vmul.f32 %v301, %v300
  %v303 = vmul.f32 0.5, %v302
  %v304 = vsub.f32 1.5, %v303
  %v305 = vmul.f32 %v300, %v304
  %v306 = vmul.f32 %v273, %v305
  %vm307 = vcmp.eq.f32.partialorder %v273, inf
  %v308 = vsel %vm307, %v273, %v306
  %vm309 = vcmp.eq.f32.partialorder %v273, 0.0
  %v310 = vand.u32 %v273, 2147483648
  %v311 = vsel %vm309, %v310, %v308
  %v312 = vrsqrt.pop %v274
  %v313 = vmul.f32 %v312, %v274
  %v314 = vmul.f32 %v313, %v312
  %v315 = vmul.f32 0.5, %v314
  %v316 = vsub.f32 1.5, %v315
  %v317 = vmul.f32 %v312, %v316
  %v318 = vmul.f32 %v274, %v317
  %vm319 = vcmp.eq.f32.partialorder %v274, inf
  %v320 = vsel %vm319, %v274, %v318
  %vm321 = vcmp.eq.f32.partialorder %v274, 0.0
  %v322 = vand.u32 %v274, 2147483648
  %v323 = vsel %vm321, %v322, %v320
  %v324 = vrsqrt.pop %v275
  %v325 = vmul.f32 %v324, %v275
  %v326 = vmul.f32 %v325, %v324
  %v327 = vmul.f32 0.5, %v326
  %v328 = vsub.f32 1.5, %v327
  %v329 = vmul.f32 %v324, %v328
  %v330 = vmul.f32 %v275, %v329
  %vm331 = vcmp.eq.f32.partialorder %v275, inf
  %v332 = vsel %vm331, %v275, %v330
  %vm333 = vcmp.eq.f32.partialorder %v275, 0.0
  %v334 = vand.u32 %v275, 2147483648
  %v335 = vsel %vm333, %v334, %v332
  %v336 = vrsqrt.pop %v276
  %v337 = vmul.f32 %v336, %v276
  %v338 = vmul.f32 %v337, %v336
  %v339 = vmul.f32 0.5, %v338
  %v340 = vsub.f32 1.5, %v339
  %v341 = vmul.f32 %v336, %v340
  %v342 = vmul.f32 %v276, %v341
  %vm343 = vcmp.eq.f32.partialorder %v276, inf
  %v344 = vsel %vm343, %v276, %v342
  %vm345 = vcmp.eq.f32.partialorder %v276, 0.0
  %v346 = vand.u32 %v276, 2147483648
  %v347 = vsel %vm345, %v346, %v344
  %v348 = vrsqrt.pop %v277
  %v349 = vmul.f32 %v348, %v277
  %v350 = vmul.f32 %v349, %v348
  %v351 = vmul.f32 0.5, %v350
  %v352 = vsub.f32 1.5, %v351
  %v353 = vmul.f32 %v348, %v352
  %v354 = vmul.f32 %v277, %v353
  %vm355 = vcmp.eq.f32.partialorder %v277, inf
  %v356 = vsel %vm355, %v277, %v354
  %vm357 = vcmp.eq.f32.partialorder %v277, 0.0
  %v358 = vand.u32 %v277, 2147483648
  %v359 = vsel %vm357, %v358, %v356
  %v360 = vrsqrt.pop %v278
  %v361 = vmul.f32 %v360, %v278
  %v362 = vmul.f32 %v361, %v360
  %v363 = vmul.f32 0.5, %v362
  %v364 = vsub.f32 1.5, %v363
  %v365 = vmul.f32 %v360, %v364
  %v366 = vmul.f32 %v278, %v365
  %vm367 = vcmp.eq.f32.partialorder %v278, inf
  %v368 = vsel %vm367, %v278, %v366
  %vm369 = vcmp.eq.f32.partialorder %v278, 0.0
  %v370 = vand.u32 %v278, 2147483648
  %v371 = vsel %vm369, %v370, %v368
  %v372 = vrsqrt.pop %v279
  %v373 = vmul.f32 %v372, %v279
  %v374 = vmul.f32 %v373, %v372
  %v375 = vmul.f32 0.5, %v374
  %v376 = vsub.f32 1.5, %v375
  %v377 = vmul.f32 %v372, %v376
  %v378 = vmul.f32 %v279, %v377
  %vm379 = vcmp.eq.f32.partialorder %v279, inf
  %v380 = vsel %vm379, %v279, %v378
  %vm381 = vcmp.eq.f32.partialorder %v279, 0.0
  %v382 = vand.u32 %v279, 2147483648
  %v383 = vsel %vm381, %v382, %v380
  %v384 = vrsqrt.pop %v280
  %v385 = vmul.f32 %v384, %v280
  %v386 = vmul.f32 %v385, %v384
  %v387 = vmul.f32 0.5, %v386
  %v388 = vsub.f32 1.5, %v387
  %v389 = vmul.f32 %v384, %v388
  %v390 = vmul.f32 %v280, %v389
  %vm391 = vcmp.eq.f32.partialorder %v280, inf
  %v392 = vsel %vm391, %v280, %v390
  %vm393 = vcmp.eq.f32.partialorder %v280, 0.0
  %v394 = vand.u32 %v280, 2147483648
  %v395 = vsel %vm393, %v394, %v392
  %v396 = vrsqrt.pop %v281
  %v397 = vmul.f32 %v396, %v281
  %v398 = vmul.f32 %v397, %v396
  %v399 = vmul.f32 0.5, %v398
  %v400 = vsub.f32 1.5, %v399
  %v401 = vmul.f32 %v396, %v400
  %v402 = vmul.f32 %v281, %v401
  %vm403 = vcmp.eq.f32.partialorder %v281, inf
  %v404 = vsel %vm403, %v281, %v402
  %vm405 = vcmp.eq.f32.partialorder %v281, 0.0
  %v406 = vand.u32 %v281, 2147483648
  %v407 = vsel %vm405, %v406, %v404
  %v408 = vrsqrt.pop %v282
  %v409 = vmul.f32 %v408, %v282
  %v410 = vmul.f32 %v409, %v408
  %v411 = vmul.f32 0.5, %v410
  %v412 = vsub.f32 1.5, %v411
  %v413 = vmul.f32 %v408, %v412
  %v414 = vmul.f32 %v282, %v413
  %vm415 = vcmp.eq.f32.partialorder %v282, inf
  %v416 = vsel %vm415, %v282, %v414
  %vm417 = vcmp.eq.f32.partialorder %v282, 0.0
  %v418 = vand.u32 %v282, 2147483648
  %v419 = vsel %vm417, %v418, %v416
  %v420 = vrsqrt.pop %v283
  %v421 = vmul.f32 %v420, %v283
  %v422 = vmul.f32 %v421, %v420
  %v423 = vmul.f32 0.5, %v422
  %v424 = vsub.f32 1.5, %v423
  %v425 = vmul.f32 %v420, %v424
  %v426 = vmul.f32 %v283, %v425
  %vm427 = vcmp.eq.f32.partialorder %v283, inf
  %v428 = vsel %vm427, %v283, %v426
  %vm429 = vcmp.eq.f32.partialorder %v283, 0.0
  %v430 = vand.u32 %v283, 2147483648
  %v431 = vsel %vm429, %v430, %v428
  %v432 = vrsqrt.pop %v284
  %v433 = vmul.f32 %v432, %v284
  %v434 = vmul.f32 %v433, %v432
  %v435 = vmul.f32 0.5, %v434
  %v436 = vsub.f32 1.5, %v435
  %v437 = vmul.f32 %v432, %v436
  %v438 = vmul.f32 %v284, %v437
  %vm439 = vcmp.eq.f32.partialorder %v284, inf
  %v440 = vsel %vm439, %v284, %v438
  %vm441 = vcmp.eq.f32.partialorder %v284, 0.0
  %v442 = vand.u32 %v284, 2147483648
  %v443 = vsel %vm441, %v442, %v440
  %v444 = vrsqrt.pop %v285
  %v445 = vmul.f32 %v444, %v285
  %v446 = vmul.f32 %v445, %v444
  %v447 = vmul.f32 0.5, %v446
  %v448 = vsub.f32 1.5, %v447
  %v449 = vmul.f32 %v444, %v448
  %v450 = vmul.f32 %v285, %v449
  %vm451 = vcmp.eq.f32.partialorder %v285, inf
  %v452 = vsel %vm451, %v285, %v450
  %vm453 = vcmp.eq.f32.partialorder %v285, 0.0
  %v454 = vand.u32 %v285, 2147483648
  %v455 = vsel %vm453, %v454, %v452
  %v456 = vrsqrt.pop %v286
  %v457 = vmul.f32 %v456, %v286
  %v458 = vmul.f32 %v457, %v456
  %v459 = vmul.f32 0.5, %v458
  %v460 = vsub.f32 1.5, %v459
  %v461 = vmul.f32 %v456, %v460
  %v462 = vmul.f32 %v286, %v461
  %vm463 = vcmp.eq.f32.partialorder %v286, inf
  %v464 = vsel %vm463, %v286, %v462
  %vm465 = vcmp.eq.f32.partialorder %v286, 0.0
  %v466 = vand.u32 %v286, 2147483648
  %v467 = vsel %vm465, %v466, %v464
  %v468 = vrsqrt.pop %v287
  %v469 = vmul.f32 %v468, %v287
  %v470 = vmul.f32 %v469, %v468
  %v471 = vmul.f32 0.5, %v470
  %v472 = vsub.f32 1.5, %v471
  %v473 = vmul.f32 %v468, %v472
  %v474 = vmul.f32 %v287, %v473
  %vm475 = vcmp.eq.f32.partialorder %v287, inf
  %v476 = vsel %vm475, %v287, %v474
  %vm477 = vcmp.eq.f32.partialorder %v287, 0.0
  %v478 = vand.u32 %v287, 2147483648
  %v479 = vsel %vm477, %v478, %v476
  %v480 = vld [vmem:[%s5] sm:$0xff]
  %v481 = vld [vmem:[%s5 + $0x8] sm:$0xff]
  %v482 = vld [vmem:[%s5 + $0x10] sm:$0xff]
  %v483 = vld [vmem:[%s5 + $0x18] sm:$0xff]
  %v484 = vld [vmem:[%s5 + $0x20] sm:$0xff]
  %v485 = vld [vmem:[%s5 + $0x28] sm:$0xff]
  %v486 = vld [vmem:[%s5 + $0x30] sm:$0xff]
  %v487 = vld [vmem:[%s5 + $0x38] sm:$0xff]
  %v488 = vld [vmem:[%s5 + $0x40] sm:$0xff]
  %v489 = vld [vmem:[%s5 + $0x48] sm:$0xff]
  %v490 = vld [vmem:[%s5 + $0x50] sm:$0xff]
  %v491 = vld [vmem:[%s5 + $0x58] sm:$0xff]
  %v492 = vld [vmem:[%s5 + $0x60] sm:$0xff]
  %v493 = vld [vmem:[%s5 + $0x68] sm:$0xff]
  %v494 = vld [vmem:[%s5 + $0x70] sm:$0xff]
  %v495 = vld [vmem:[%s5 + $0x78] sm:$0xff]
  %v496 = vld [vmem:[%s6] sm:$0x1]
  %497 = vset.pattern.permute.xlu0 0
  %498 = vperm.xlu0 %497, %v480
  %v499 = vpop.permute.xlu0 %498
  %500 = vset.pattern.permute.xlu0 0
  %501 = vperm.xlu0 %500, %v481
  %v502 = vpop.permute.xlu0 %501
  %503 = vset.pattern.permute.xlu0 0
  %504 = vperm.xlu0 %503, %v482
  %v505 = vpop.permute.xlu0 %504
  %506 = vset.pattern.permute.xlu0 0
  %507 = vperm.xlu0 %506, %v483
  %v508 = vpop.permute.xlu0 %507
  %509 = vset.pattern.permute.xlu0 0
  %510 = vperm.xlu0 %509, %v484
  %v511 = vpop.permute.xlu0 %510
  %512 = vset.pattern.permute.xlu0 0
  %513 = vperm.xlu0 %512, %v485
  %v514 = vpop.permute.xlu0 %513
  %515 = vset.pattern.permute.xlu0 0
  %516 = vperm.xlu0 %515, %v486
  %v517 = vpop.permute.xlu0 %516
  %518 = vset.pattern.permute.xlu0 0
  %519 = vperm.xlu0 %518, %v487
  %v520 = vpop.permute.xlu0 %519
  %521 = vset.pattern.permute.xlu0 0
  %522 = vperm.xlu0 %521, %v488
  %v523 = vpop.permute.xlu0 %522
  %524 = vset.pattern.permute.xlu0 0
  %525 = vperm.xlu0 %524, %v489
  %v526 = vpop.permute.xlu0 %525
  %527 = vset.pattern.permute.xlu0 0
  %528 = vperm.xlu0 %527, %v490
  %v529 = vpop.permute.xlu0 %528
  %530 = vset.pattern.permute.xlu0 0
  %531 = vperm.xlu0 %530, %v491
  %v532 = vpop.permute.xlu0 %531
  %533 = vset.pattern.permute.xlu0 0
  %534 = vperm.xlu0 %533, %v492
  %v535 = vpop.permute.xlu0 %534
  %536 = vset.pattern.permute.xlu0 0
  %537 = vperm.xlu0 %536, %v493
  %v538 = vpop.permute.xlu0 %537
  %539 = vset.pattern.permute.xlu0 0
  %540 = vperm.xlu0 %539, %v494
  %v541 = vpop.permute.xlu0 %540
  %542 = vset.pattern.permute.xlu0 0
  %543 = vperm.xlu0 %542, %v495
  %v544 = vpop.permute.xlu0 %543
  %v545 = vperm.slane %v496, 0
  %vm546 = vcmp.eq.s32.totalorder %v499, %v545
  %vm547 = vcmp.eq.s32.totalorder %v502, %v545
  %vm548 = vcmp.eq.s32.totalorder %v505, %v545
  %vm549 = vcmp.eq.s32.totalorder %v508, %v545
  %vm550 = vcmp.eq.s32.totalorder %v511, %v545
  %vm551 = vcmp.eq.s32.totalorder %v514, %v545
  %vm552 = vcmp.eq.s32.totalorder %v517, %v545
  %vm553 = vcmp.eq.s32.totalorder %v520, %v545
  %vm554 = vcmp.eq.s32.totalorder %v523, %v545
  %vm555 = vcmp.eq.s32.totalorder %v526, %v545
  %vm556 = vcmp.eq.s32.totalorder %v529, %v545
  %vm557 = vcmp.eq.s32.totalorder %v532, %v545
  %vm558 = vcmp.eq.s32.totalorder %v535, %v545
  %vm559 = vcmp.eq.s32.totalorder %v538, %v545
  %vm560 = vcmp.eq.s32.totalorder %v541, %v545
  %vm561 = vcmp.eq.s32.totalorder %v544, %v545
  %s562 = smul.u32 0, 128
  %v563 = vlaneseq
  %v564 = vshrl.u32 %v563, 7
  %v565 = vadd.s32 %v564, 8
  %v566 = vadd.s32 %v564, 16
  %v567 = vadd.s32 %v564, 24
  %v568 = vadd.s32 %v564, 32
  %v569 = vadd.s32 %v564, 40
  %v570 = vadd.s32 %v564, 48
  %v571 = vadd.s32 %v564, 56
  %v572 = vadd.s32 %v564, 64
  %v573 = vadd.s32 %v564, 72
  %v574 = vadd.s32 %v564, 80
  %v575 = vadd.s32 %v564, 88
  %v576 = vadd.s32 %v564, 96
  %v577 = vadd.s32 %v564, 104
  %v578 = vadd.s32 %v564, 112
  %v579 = vadd.s32 %v564, 120
  %v580 = vstv %s562
  %v581 = vadd.s32 %v580, %v564
  %v582 = vadd.s32 %v580, %v565
  %v583 = vadd.s32 %v580, %v566
  %v584 = vadd.s32 %v580, %v567
  %v585 = vadd.s32 %v580, %v568
  %v586 = vadd.s32 %v580, %v569
  %v587 = vadd.s32 %v580, %v570
  %v588 = vadd.s32 %v580, %v571
  %v589 = vadd.s32 %v580, %v572
  %v590 = vadd.s32 %v580, %v573
  %v591 = vadd.s32 %v580, %v574
  %v592 = vadd.s32 %v580, %v575
  %v593 = vadd.s32 %v580, %v576
  %v594 = vadd.s32 %v580, %v577
  %v595 = vadd.s32 %v580, %v578
  %v596 = vadd.s32 %v580, %v579
  %s597 = smul.u32 0, 128
  %v598 = vlaneseq
  %v599 = vand.u32 %v598, 127
  %v600 = vstv %s597
  %v601 = vadd.s32 %v600, %v599
  %vm602 = vcmp.lt.s32.totalorder %v581, 8
  %vm603 = vcmp.lt.s32.totalorder %v582, 8
  %vm604 = vcmp.lt.s32.totalorder %v583, 8
  %vm605 = vcmp.lt.s32.totalorder %v584, 8
  %vm606 = vcmp.lt.s32.totalorder %v585, 8
  %vm607 = vcmp.lt.s32.totalorder %v586, 8
  %vm608 = vcmp.lt.s32.totalorder %v587, 8
  %vm609 = vcmp.lt.s32.totalorder %v588, 8
  %vm610 = vcmp.lt.s32.totalorder %v589, 8
  %vm611 = vcmp.lt.s32.totalorder %v590, 8
  %vm612 = vcmp.lt.s32.totalorder %v591, 8
  %vm613 = vcmp.lt.s32.totalorder %v592, 8
  %vm614 = vcmp.lt.s32.totalorder %v593, 8
  %vm615 = vcmp.lt.s32.totalorder %v594, 8
  %vm616 = vcmp.lt.s32.totalorder %v595, 8
  %vm617 = vcmp.lt.s32.totalorder %v596, 8
  %vm618 = vcmp.lt.s32.totalorder %v601, 8
  %vm619 = vmand %vm602, %vm618
  %vm620 = vmand %vm603, %vm618
  %vm621 = vmand %vm604, %vm618
  %vm622 = vmand %vm605, %vm618
  %vm623 = vmand %vm606, %vm618
  %vm624 = vmand %vm607, %vm618
  %vm625 = vmand %vm608, %vm618
  %vm626 = vmand %vm609, %vm618
  %vm627 = vmand %vm610, %vm618
  %vm628 = vmand %vm611, %vm618
  %vm629 = vmand %vm612, %vm618
  %vm630 = vmand %vm613, %vm618
  %vm631 = vmand %vm614, %vm618
  %vm632 = vmand %vm615, %vm618
  %vm633 = vmand %vm616, %vm618
  %vm634 = vmand %vm617, %vm618
  %s635 = sld [smem:[#allocation2]]
  %vm636 = vmxor %vm546, 1
  %vm637 = vmxor %vm547, 1
  %vm638 = vmxor %vm548, 1
  %vm639 = vmxor %vm549, 1
  %vm640 = vmxor %vm550, 1
  %vm641 = vmxor %vm551, 1
  %vm642 = vmxor %vm552, 1
  %vm643 = vmxor %vm553, 1
  %vm644 = vmxor %vm554, 1
  %vm645 = vmxor %vm555, 1
  %vm646 = vmxor %vm556, 1
  %vm647 = vmxor %vm557, 1
  %vm648 = vmxor %vm558, 1
  %vm649 = vmxor %vm559, 1
  %vm650 = vmxor %vm560, 1
  %vm651 = vmxor %vm561, 1
  %vm652 = vmand %vm619, %vm636
  %vm653 = vmand %vm620, %vm637
  %vm654 = vmand %vm621, %vm638
  %vm655 = vmand %vm622, %vm639
  %vm656 = vmand %vm623, %vm640
  %vm657 = vmand %vm624, %vm641
  %vm658 = vmand %vm625, %vm642
  %vm659 = vmand %vm626, %vm643
  %vm660 = vmand %vm627, %vm644
  %vm661 = vmand %vm628, %vm645
  %vm662 = vmand %vm629, %vm646
  %vm663 = vmand %vm630, %vm647
  %vm664 = vmand %vm631, %vm648
  %vm665 = vmand %vm632, %vm649
  %vm666 = vmand %vm633, %vm650
  %vm667 = vmand %vm634, %vm651
  %vm668 = vcmp.lt.f32.partialorder %v299, 0.64
  %vm669 = vcmp.lt.f32.partialorder %v311, 0.64
  %vm670 = vcmp.lt.f32.partialorder %v323, 0.64
  %vm671 = vcmp.lt.f32.partialorder %v335, 0.64
  %vm672 = vcmp.lt.f32.partialorder %v347, 0.64
  %vm673 = vcmp.lt.f32.partialorder %v359, 0.64
  %vm674 = vcmp.lt.f32.partialorder %v371, 0.64
  %vm675 = vcmp.lt.f32.partialorder %v383, 0.64
  %vm676 = vcmp.lt.f32.partialorder %v395, 0.64
  %vm677 = vcmp.lt.f32.partialorder %v407, 0.64
  %vm678 = vcmp.lt.f32.partialorder %v419, 0.64
  %vm679 = vcmp.lt.f32.partialorder %v431, 0.64
  %vm680 = vcmp.lt.f32.partialorder %v443, 0.64
  %vm681 = vcmp.lt.f32.partialorder %v455, 0.64
  %vm682 = vcmp.lt.f32.partialorder %v467, 0.64
  %vm683 = vcmp.lt.f32.partialorder %v479, 0.64
  %vm684 = vmand %vm652, %vm668
  %vm685 = vmand %vm653, %vm669
  %vm686 = vmand %vm654, %vm670
  %vm687 = vmand %vm655, %vm671
  %vm688 = vmand %vm656, %vm672
  %vm689 = vmand %vm657, %vm673
  %vm690 = vmand %vm658, %vm674
  %vm691 = vmand %vm659, %vm675
  %vm692 = vmand %vm660, %vm676
  %vm693 = vmand %vm661, %vm677
  %vm694 = vmand %vm662, %vm678
  %vm695 = vmand %vm663, %vm679
  %vm696 = vmand %vm664, %vm680
  %vm697 = vmand %vm665, %vm681
  %vm698 = vmand %vm666, %vm682
  %vm699 = vmand %vm667, %vm683
  %v700 = vstv %s635
  %vm701 = vcmp.lt.f32.partialorder %v299, %v700
  %vm702 = vcmp.lt.f32.partialorder %v311, %v700
  %vm703 = vcmp.lt.f32.partialorder %v323, %v700
  %vm704 = vcmp.lt.f32.partialorder %v335, %v700
  %vm705 = vcmp.lt.f32.partialorder %v347, %v700
  %vm706 = vcmp.lt.f32.partialorder %v359, %v700
  %vm707 = vcmp.lt.f32.partialorder %v371, %v700
  %vm708 = vcmp.lt.f32.partialorder %v383, %v700
  %vm709 = vcmp.lt.f32.partialorder %v395, %v700
  %vm710 = vcmp.lt.f32.partialorder %v407, %v700
  %vm711 = vcmp.lt.f32.partialorder %v419, %v700
  %vm712 = vcmp.lt.f32.partialorder %v431, %v700
  %vm713 = vcmp.lt.f32.partialorder %v443, %v700
  %vm714 = vcmp.lt.f32.partialorder %v455, %v700
  %vm715 = vcmp.lt.f32.partialorder %v467, %v700
  %vm716 = vcmp.lt.f32.partialorder %v479, %v700
  %vm717 = vmand %vm684, %vm701
  %vm718 = vmand %vm685, %vm702
  %vm719 = vmand %vm686, %vm703
  %vm720 = vmand %vm687, %vm704
  %vm721 = vmand %vm688, %vm705
  %vm722 = vmand %vm689, %vm706
  %vm723 = vmand %vm690, %vm707
  %vm724 = vmand %vm691, %vm708
  %vm725 = vmand %vm692, %vm709
  %vm726 = vmand %vm693, %vm710
  %vm727 = vmand %vm694, %vm711
  %vm728 = vmand %vm695, %vm712
  %vm729 = vmand %vm696, %vm713
  %vm730 = vmand %vm697, %vm714
  %vm731 = vmand %vm698, %vm715
  %vm732 = vmand %vm699, %vm716
  %v733 = vsub.f32 0.64, %v299
  %v734 = vsub.f32 0.64, %v311
  %v735 = vsub.f32 0.64, %v323
  %v736 = vsub.f32 0.64, %v335
  %v737 = vsub.f32 0.64, %v347
  %v738 = vsub.f32 0.64, %v359
  %v739 = vsub.f32 0.64, %v371
  %v740 = vsub.f32 0.64, %v383
  %v741 = vsub.f32 0.64, %v395
  %v742 = vsub.f32 0.64, %v407
  %v743 = vsub.f32 0.64, %v419
  %v744 = vsub.f32 0.64, %v431
  %v745 = vsub.f32 0.64, %v443
  %v746 = vsub.f32 0.64, %v455
  %v747 = vsub.f32 0.64, %v467
  %v748 = vsub.f32 0.64, %v479
  %v749 = vsel %vm717, %v733, 0.0
  %v750 = vsel %vm718, %v734, 0.0
  %v751 = vsel %vm719, %v735, 0.0
  %v752 = vsel %vm720, %v736, 0.0
  %v753 = vsel %vm721, %v737, 0.0
  %v754 = vsel %vm722, %v738, 0.0
  %v755 = vsel %vm723, %v739, 0.0
  %v756 = vsel %vm724, %v740, 0.0
  %v757 = vsel %vm725, %v741, 0.0
  %v758 = vsel %vm726, %v742, 0.0
  %v759 = vsel %vm727, %v743, 0.0
  %v760 = vsel %vm728, %v744, 0.0
  %v761 = vsel %vm729, %v745, 0.0
  %v762 = vsel %vm730, %v746, 0.0
  %v763 = vsel %vm731, %v747, 0.0
  %v764 = vsel %vm732, %v748, 0.0
  %v765 = vadd.f32 %v749, %v750
  %v766 = vadd.f32 %v765, %v751
  %v767 = vadd.f32 %v766, %v752
  %v768 = vadd.f32 %v767, %v753
  %v769 = vadd.f32 %v768, %v754
  %v770 = vadd.f32 %v769, %v755
  %v771 = vadd.f32 %v770, %v756
  %v772 = vadd.f32 %v771, %v757
  %v773 = vadd.f32 %v772, %v758
  %v774 = vadd.f32 %v773, %v759
  %v775 = vadd.f32 %v774, %v760
  %v776 = vadd.f32 %v775, %v761
  %v777 = vadd.f32 %v776, %v762
  %v778 = vadd.f32 %v777, %v763
  %v779 = vadd.f32 %v778, %v764
  %780 = vadd.xlane.f32.xlu0 %v779
  %v781 = vpop.xlane.xlu0 %780
  %v782 = vrot.slane %v781, 4
  %v783 = vadd.f32 %v781, %v782
  %v784 = vrot.slane %v783, 2
  %v785 = vadd.f32 %v783, %v784
  %v786 = vrot.slane %v785, 1
  %v787 = vadd.f32 %v785, %v786
  %s788 = vtos %v787
  %vm789 = vcmp.eq.s32.totalorder %v599, 0
  %v790 = vstv %s788
  %v791 = vsel %vm789, %v790, 0.0
  %792 = vst [vmem:[%s7] sm:$0xff] %v791
  // Predicated region
  $region30: #{branch_1_fun.1} parent=0 // pred_check
    _
  $region31: #{branch_1_fun.1} parent=0 // pred_check_branch
    %794 = sbr.rel (0) target = $region33
  $region32: #{branch_1_fun.1} parent=0 // pred_region
    _
  $region33: #{branch_1_fun.1} parent=0 // pred_fallthru
    _
  // Predicated region
  $region34: #{branch_1_fun.1} parent=0 // pred_check
    _
  $region35: #{branch_1_fun.1} parent=0 // pred_check_branch
    %796 = sbr.rel (0) target = $region37
  $region36: #{branch_1_fun.1} parent=0 // pred_region
    _
  $region37: #{branch_1_fun.1} parent=0 // pred_fallthru
    _

// kernel: mahalanobis_metric_loss.1
$region0: #{mahalanobis_metric_loss.1}
  #allocation0 [shape = 'u32[]', space=smem, size = 0x4, offset = 0x4, fixed_abs, tag = 'smem constant byte address 0x4 - core index']
  #allocation1 [shape = 'u32[72,128]{1,0:T(1,128)}', space=vmem, size = 0x9000, scoped, tag = 'internal scratch']
  %s0 = inlined_call_operand.vmem [shape: f32[128,128], index: 0, kind: input, shape index: {}, may-alias: {0,1}]
  %s1 = inlined_call_operand.vmem [shape: f32[128,128], index: 1, kind: input, shape index: {}, may-alias: {0,1}]
  %s2 = inlined_call_operand.vmem [shape: f32[128,1], index: 2, kind: input, shape index: {}]
  %s3 = inlined_call_operand.vmem [shape: f32[1,128], index: 3, kind: input, shape index: {}]
  %s4 = inlined_call_operand.vmem [shape: s32[128,1], index: 4, kind: input, shape index: {}]
  %s5 = inlined_call_operand.vmem [shape: s32[1,128], index: 5, kind: input, shape index: {}]
  %s6 = inlined_call_operand.vmem [shape: f32[8,128], index: 6, kind: output, shape index: {}]
  %s7 = sld [smem:[#allocation0]]
  $region34: #{mahalanobis_metric_loss.1} parent=0
    _
  %s9 = ssub.s32 1, %s7
  %s10 = scalar_select 0, %s9, %s7
  // Predicated region
  $region2: #{mahalanobis_metric_loss.1} parent=0 // pred_check
    _
  $region3: #{mahalanobis_metric_loss.1} parent=0 // pred_check_branch
    %12 = sbr.rel (0) target = $region5
  $region4: #{mahalanobis_metric_loss.1} parent=0 // pred_region
    _
  $region5: #{mahalanobis_metric_loss.1} parent=0 // pred_fallthru
    _
  // Predicated region
  $region6: #{mahalanobis_metric_loss.1} parent=0 // pred_check
    _
  $region7: #{mahalanobis_metric_loss.1} parent=0 // pred_check_branch
    %14 = sbr.rel (0) target = $region9
  $region8: #{mahalanobis_metric_loss.1} parent=0 // pred_region
    _
  $region9: #{mahalanobis_metric_loss.1} parent=0 // pred_fallthru
    _
  // Predicated region
  $region10: #{mahalanobis_metric_loss.1} parent=0 // pred_check
    _
  $region11: #{mahalanobis_metric_loss.1} parent=0 // pred_check_branch
    %16 = sbr.rel (0) target = $region13
  $region12: #{mahalanobis_metric_loss.1} parent=0 // pred_region
    _
  $region13: #{mahalanobis_metric_loss.1} parent=0 // pred_fallthru
    _
  // Predicated region
  $region14: #{mahalanobis_metric_loss.1} parent=0 // pred_check
    _
  $region15: #{mahalanobis_metric_loss.1} parent=0 // pred_check_branch
    %18 = sbr.rel (0) target = $region17
  $region16: #{mahalanobis_metric_loss.1} parent=0 // pred_region
    _
  $region17: #{mahalanobis_metric_loss.1} parent=0 // pred_fallthru
    _
  // Predicated region
  $region18: #{mahalanobis_metric_loss.1} parent=0 // pred_check
    _
  $region19: #{mahalanobis_metric_loss.1} parent=0 // pred_check_branch
    %20 = sbr.rel (0) target = $region21
  $region20: #{mahalanobis_metric_loss.1} parent=0 // pred_region
    _
  $region21: #{mahalanobis_metric_loss.1} parent=0 // pred_fallthru
    _
  // Predicated region
  $region22: #{mahalanobis_metric_loss.1} parent=0 // pred_check
    _
  $region23: #{mahalanobis_metric_loss.1} parent=0 // pred_check_branch
    %22 = sbr.rel (0) target = $region25
  $region24: #{mahalanobis_metric_loss.1} parent=0 // pred_region
    _
  $region25: #{mahalanobis_metric_loss.1} parent=0 // pred_fallthru
    _
  %v23 = vld [vmem:[%s0] sm:$0xff]
  %v24 = vld [vmem:[%s0 + $0x8] sm:$0xff]
  %v25 = vld [vmem:[%s0 + $0x10] sm:$0xff]
  %v26 = vld [vmem:[%s0 + $0x18] sm:$0xff]
  %v27 = vld [vmem:[%s0 + $0x20] sm:$0xff]
  %v28 = vld [vmem:[%s0 + $0x28] sm:$0xff]
  %v29 = vld [vmem:[%s0 + $0x30] sm:$0xff]
  %v30 = vld [vmem:[%s0 + $0x38] sm:$0xff]
  %v31 = vld [vmem:[%s0 + $0x40] sm:$0xff]
  %v32 = vld [vmem:[%s0 + $0x48] sm:$0xff]
  %v33 = vld [vmem:[%s0 + $0x50] sm:$0xff]
  %v34 = vld [vmem:[%s0 + $0x58] sm:$0xff]
  %v35 = vld [vmem:[%s0 + $0x60] sm:$0xff]
  %v36 = vld [vmem:[%s0 + $0x68] sm:$0xff]
  %v37 = vld [vmem:[%s0 + $0x70] sm:$0xff]
  %v38 = vld [vmem:[%s0 + $0x78] sm:$0xff]
  %v39 = vld [vmem:[%s1] sm:$0xff]
  %v40 = vld [vmem:[%s1 + $0x8] sm:$0xff]
  %v41 = vld [vmem:[%s1 + $0x10] sm:$0xff]
  %v42 = vld [vmem:[%s1 + $0x18] sm:$0xff]
  %v43 = vld [vmem:[%s1 + $0x20] sm:$0xff]
  %v44 = vld [vmem:[%s1 + $0x28] sm:$0xff]
  %v45 = vld [vmem:[%s1 + $0x30] sm:$0xff]
  %v46 = vld [vmem:[%s1 + $0x38] sm:$0xff]
  %v47 = vld [vmem:[%s1 + $0x40] sm:$0xff]
  %v48 = vld [vmem:[%s1 + $0x48] sm:$0xff]
  %v49 = vld [vmem:[%s1 + $0x50] sm:$0xff]
  %v50 = vld [vmem:[%s1 + $0x58] sm:$0xff]
  %v51 = vld [vmem:[%s1 + $0x60] sm:$0xff]
  %v52 = vld [vmem:[%s1 + $0x68] sm:$0xff]
  %v53 = vld [vmem:[%s1 + $0x70] sm:$0xff]
  %v54 = vld [vmem:[%s1 + $0x78] sm:$0xff]
  %55 = vmatpush.xpose.msra.mxu0 %v54
  %56 = vmatpush.xpose.msra.mxu0 %v53
  %57 = vmatpush.xpose.msra.mxu0 %v52
  %58 = vmatpush.xpose.msra.mxu0 %v51
  %59 = vmatpush.xpose.msra.mxu0 %v50
  %60 = vmatpush.xpose.msra.mxu0 %v49
  %61 = vmatpush.xpose.msra.mxu0 %v48
  %62 = vmatpush.xpose.msra.mxu0 %v47
  %63 = vmatpush.xpose.msra.mxu0 %v46
  %64 = vmatpush.xpose.msra.mxu0 %v45
  %65 = vmatpush.xpose.msra.mxu0 %v44
  %66 = vmatpush.xpose.msra.mxu0 %v43
  %67 = vmatpush.xpose.msra.mxu0 %v42
  %68 = vmatpush.xpose.msra.mxu0 %v41
  %69 = vmatpush.xpose.msra.mxu0 %v40
  %70 = vmatpush.xpose.msra.mxu0 %v39
  %71 = vmatmul.f32.gmra.mxu0 %v23
  %v72 = vpop.f32.mrf.mxu0
  %v73 = vadd.f32 0.0, %v72
  %74 = vmatmul.f32.gmra.mxu0 %v24
  %v75 = vpop.f32.mrf.mxu0
  %v76 = vadd.f32 0.0, %v75
  %77 = vmatmul.f32.gmra.mxu0 %v25
  %v78 = vpop.f32.mrf.mxu0
  %v79 = vadd.f32 0.0, %v78
  %80 = vmatmul.f32.gmra.mxu0 %v26
  %v81 = vpop.f32.mrf.mxu0
  %v82 = vadd.f32 0.0, %v81
  %83 = vmatmul.f32.gmra.mxu0 %v27
  %v84 = vpop.f32.mrf.mxu0
  %v85 = vadd.f32 0.0, %v84
  %86 = vmatmul.f32.gmra.mxu0 %v28
  %v87 = vpop.f32.mrf.mxu0
  %v88 = vadd.f32 0.0, %v87
  %89 = vmatmul.f32.gmra.mxu0 %v29
  %v90 = vpop.f32.mrf.mxu0
  %v91 = vadd.f32 0.0, %v90
  %92 = vmatmul.f32.gmra.mxu0 %v30
  %v93 = vpop.f32.mrf.mxu0
  %v94 = vadd.f32 0.0, %v93
  %95 = vmatmul.f32.gmra.mxu0 %v31
  %v96 = vpop.f32.mrf.mxu0
  %v97 = vadd.f32 0.0, %v96
  %98 = vmatmul.f32.gmra.mxu0 %v32
  %v99 = vpop.f32.mrf.mxu0
  %v100 = vadd.f32 0.0, %v99
  %101 = vmatmul.f32.gmra.mxu0 %v33
  %v102 = vpop.f32.mrf.mxu0
  %v103 = vadd.f32 0.0, %v102
  %104 = vmatmul.f32.gmra.mxu0 %v34
  %v105 = vpop.f32.mrf.mxu0
  %v106 = vadd.f32 0.0, %v105
  %107 = vmatmul.f32.gmra.mxu0 %v35
  %v108 = vpop.f32.mrf.mxu0
  %v109 = vadd.f32 0.0, %v108
  %110 = vmatmul.f32.gmra.mxu0 %v36
  %v111 = vpop.f32.mrf.mxu0
  %v112 = vadd.f32 0.0, %v111
  %113 = vmatmul.f32.gmra.mxu0 %v37
  %v114 = vpop.f32.mrf.mxu0
  %v115 = vadd.f32 0.0, %v114
  %116 = vmatmul.f32.gmra.mxu0 %v38
  %v117 = vpop.f32.mrf.mxu0
  %v118 = vadd.f32 0.0, %v117
  %119 = vdwg.mxu0
  %v120 = vld [vmem:[%s2] sm:$0xff]
  %v121 = vld [vmem:[%s2 + $0x8] sm:$0xff]
  %v122 = vld [vmem:[%s2 + $0x10] sm:$0xff]
  %v123 = vld [vmem:[%s2 + $0x18] sm:$0xff]
  %v124 = vld [vmem:[%s2 + $0x20] sm:$0xff]
  %v125 = vld [vmem:[%s2 + $0x28] sm:$0xff]
  %v126 = vld [vmem:[%s2 + $0x30] sm:$0xff]
  %v127 = vld [vmem:[%s2 + $0x38] sm:$0xff]
  %v128 = vld [vmem:[%s2 + $0x40] sm:$0xff]
  %v129 = vld [vmem:[%s2 + $0x48] sm:$0xff]
  %v130 = vld [vmem:[%s2 + $0x50] sm:$0xff]
  %v131 = vld [vmem:[%s2 + $0x58] sm:$0xff]
  %v132 = vld [vmem:[%s2 + $0x60] sm:$0xff]
  %v133 = vld [vmem:[%s2 + $0x68] sm:$0xff]
  %v134 = vld [vmem:[%s2 + $0x70] sm:$0xff]
  %v135 = vld [vmem:[%s2 + $0x78] sm:$0xff]
  %v136 = vld [vmem:[%s3] sm:$0x1]
  %138 = vset.pattern.permute.xlu0 0
  %139 = vperm.xlu0 %138, %v120
  %v140 = vpop.permute.xlu0 %139
  %143 = vset.pattern.permute.xlu0 0
  %144 = vperm.xlu0 %143, %v121
  %v145 = vpop.permute.xlu0 %144
  %148 = vset.pattern.permute.xlu0 0
  %149 = vperm.xlu0 %148, %v122
  %v150 = vpop.permute.xlu0 %149
  %153 = vset.pattern.permute.xlu0 0
  %154 = vperm.xlu0 %153, %v123
  %v155 = vpop.permute.xlu0 %154
  %158 = vset.pattern.permute.xlu0 0
  %159 = vperm.xlu0 %158, %v124
  %v160 = vpop.permute.xlu0 %159
  %163 = vset.pattern.permute.xlu0 0
  %164 = vperm.xlu0 %163, %v125
  %v165 = vpop.permute.xlu0 %164
  %168 = vset.pattern.permute.xlu0 0
  %169 = vperm.xlu0 %168, %v126
  %v170 = vpop.permute.xlu0 %169
  %173 = vset.pattern.permute.xlu0 0
  %174 = vperm.xlu0 %173, %v127
  %v175 = vpop.permute.xlu0 %174
  %178 = vset.pattern.permute.xlu0 0
  %179 = vperm.xlu0 %178, %v128
  %v180 = vpop.permute.xlu0 %179
  %183 = vset.pattern.permute.xlu0 0
  %184 = vperm.xlu0 %183, %v129
  %v185 = vpop.permute.xlu0 %184
  %188 = vset.pattern.permute.xlu0 0
  %189 = vperm.xlu0 %188, %v130
  %v190 = vpop.permute.xlu0 %189
  %193 = vset.pattern.permute.xlu0 0
  %194 = vperm.xlu0 %193, %v131
  %v195 = vpop.permute.xlu0 %194
  %198 = vset.pattern.permute.xlu0 0
  %199 = vperm.xlu0 %198, %v132
  %v200 = vpop.permute.xlu0 %199
  %203 = vset.pattern.permute.xlu0 0
  %204 = vperm.xlu0 %203, %v133
  %v205 = vpop.permute.xlu0 %204
  %208 = vset.pattern.permute.xlu0 0
  %209 = vperm.xlu0 %208, %v134
  %v210 = vpop.permute.xlu0 %209
  %213 = vset.pattern.permute.xlu0 0
  %214 = vperm.xlu0 %213, %v135
  %v215 = vpop.permute.xlu0 %214
  %v218 = vperm.slane %v136, 0
  %v220 = vadd.f32 %v140, %v218
  %v221 = vadd.f32 %v145, %v218
  %v222 = vadd.f32 %v150, %v218
  %v223 = vadd.f32 %v155, %v218
  %v224 = vadd.f32 %v160, %v218
  %v225 = vadd.f32 %v165, %v218
  %v226 = vadd.f32 %v170, %v218
  %v227 = vadd.f32 %v175, %v218
  %v228 = vadd.f32 %v180, %v218
  %v229 = vadd.f32 %v185, %v218
  %v230 = vadd.f32 %v190, %v218
  %v231 = vadd.f32 %v195, %v218
  %v232 = vadd.f32 %v200, %v218
  %v233 = vadd.f32 %v205, %v218
  %v234 = vadd.f32 %v210, %v218
  %v235 = vadd.f32 %v215, %v218
  %v236 = vmul.f32 %v73, 2.0
  %v237 = vmul.f32 %v76, 2.0
  %v238 = vmul.f32 %v79, 2.0
  %v239 = vmul.f32 %v82, 2.0
  %v240 = vmul.f32 %v85, 2.0
  %v241 = vmul.f32 %v88, 2.0
  %v242 = vmul.f32 %v91, 2.0
  %v243 = vmul.f32 %v94, 2.0
  %v244 = vmul.f32 %v97, 2.0
  %v245 = vmul.f32 %v100, 2.0
  %v246 = vmul.f32 %v103, 2.0
  %v247 = vmul.f32 %v106, 2.0
  %v248 = vmul.f32 %v109, 2.0
  %v249 = vmul.f32 %v112, 2.0
  %v250 = vmul.f32 %v115, 2.0
  %v251 = vmul.f32 %v118, 2.0
  %v252 = vsub.f32 %v220, %v236
  %v253 = vsub.f32 %v221, %v237
  %v254 = vsub.f32 %v222, %v238
  %v255 = vsub.f32 %v223, %v239
  %v256 = vsub.f32 %v224, %v240
  %v257 = vsub.f32 %v225, %v241
  %v258 = vsub.f32 %v226, %v242
  %v259 = vsub.f32 %v227, %v243
  %v260 = vsub.f32 %v228, %v244
  %v261 = vsub.f32 %v229, %v245
  %v262 = vsub.f32 %v230, %v246
  %v263 = vsub.f32 %v231, %v247
  %v264 = vsub.f32 %v232, %v248
  %v265 = vsub.f32 %v233, %v249
  %v266 = vsub.f32 %v234, %v250
  %v267 = vsub.f32 %v235, %v251
  %v268 = vmax.f32 %v252, 0.0
  %v269 = vmax.f32 %v253, 0.0
  %v270 = vmax.f32 %v254, 0.0
  %v271 = vmax.f32 %v255, 0.0
  %v272 = vmax.f32 %v256, 0.0
  %v273 = vmax.f32 %v257, 0.0
  %v274 = vmax.f32 %v258, 0.0
  %v275 = vmax.f32 %v259, 0.0
  %v276 = vmax.f32 %v260, 0.0
  %v277 = vmax.f32 %v261, 0.0
  %v278 = vmax.f32 %v262, 0.0
  %v279 = vmax.f32 %v263, 0.0
  %v280 = vmax.f32 %v264, 0.0
  %v281 = vmax.f32 %v265, 0.0
  %v282 = vmax.f32 %v266, 0.0
  %v283 = vmax.f32 %v267, 0.0
  %v284 = vrsqrt.pop %v268
  %v285 = vmul.f32 %v284, %v268
  %v286 = vmul.f32 %v285, %v284
  %v287 = vmul.f32 0.5, %v286
  %v288 = vsub.f32 1.5, %v287
  %v289 = vmul.f32 %v284, %v288
  %v290 = vmul.f32 %v268, %v289
  %vm291 = vcmp.eq.f32.partialorder %v268, inf
  %v292 = vsel %vm291, %v268, %v290
  %vm293 = vcmp.eq.f32.partialorder %v268, 0.0
  %v294 = vand.u32 %v268, 2147483648
  %v295 = vsel %vm293, %v294, %v292
  %v296 = vrsqrt.pop %v269
  %v297 = vmul.f32 %v296, %v269
  %v298 = vmul.f32 %v297, %v296
  %v299 = vmul.f32 0.5, %v298
  %v300 = vsub.f32 1.5, %v299
  %v301 = vmul.f32 %v296, %v300
  %v302 = vmul.f32 %v269, %v301
  %vm303 = vcmp.eq.f32.partialorder %v269, inf
  %v304 = vsel %vm303, %v269, %v302
  %vm305 = vcmp.eq.f32.partialorder %v269, 0.0
  %v306 = vand.u32 %v269, 2147483648
  %v307 = vsel %vm305, %v306, %v304
  %v308 = vrsqrt.pop %v270
  %v309 = vmul.f32 %v308, %v270
  %v310 = vmul.f32 %v309, %v308
  %v311 = vmul.f32 0.5, %v310
  %v312 = vsub.f32 1.5, %v311
  %v313 = vmul.f32 %v308, %v312
  %v314 = vmul.f32 %v270, %v313
  %vm315 = vcmp.eq.f32.partialorder %v270, inf
  %v316 = vsel %vm315, %v270, %v314
  %vm317 = vcmp.eq.f32.partialorder %v270, 0.0
  %v318 = vand.u32 %v270, 2147483648
  %v319 = vsel %vm317, %v318, %v316
  %v320 = vrsqrt.pop %v271
  %v321 = vmul.f32 %v320, %v271
  %v322 = vmul.f32 %v321, %v320
  %v323 = vmul.f32 0.5, %v322
  %v324 = vsub.f32 1.5, %v323
  %v325 = vmul.f32 %v320, %v324
  %v326 = vmul.f32 %v271, %v325
  %vm327 = vcmp.eq.f32.partialorder %v271, inf
  %v328 = vsel %vm327, %v271, %v326
  %vm329 = vcmp.eq.f32.partialorder %v271, 0.0
  %v330 = vand.u32 %v271, 2147483648
  %v331 = vsel %vm329, %v330, %v328
  %v332 = vrsqrt.pop %v272
  %v333 = vmul.f32 %v332, %v272
  %v334 = vmul.f32 %v333, %v332
  %v335 = vmul.f32 0.5, %v334
  %v336 = vsub.f32 1.5, %v335
  %v337 = vmul.f32 %v332, %v336
  %v338 = vmul.f32 %v272, %v337
  %vm339 = vcmp.eq.f32.partialorder %v272, inf
  %v340 = vsel %vm339, %v272, %v338
  %vm341 = vcmp.eq.f32.partialorder %v272, 0.0
  %v342 = vand.u32 %v272, 2147483648
  %v343 = vsel %vm341, %v342, %v340
  %v344 = vrsqrt.pop %v273
  %v345 = vmul.f32 %v344, %v273
  %v346 = vmul.f32 %v345, %v344
  %v347 = vmul.f32 0.5, %v346
  %v348 = vsub.f32 1.5, %v347
  %v349 = vmul.f32 %v344, %v348
  %v350 = vmul.f32 %v273, %v349
  %vm351 = vcmp.eq.f32.partialorder %v273, inf
  %v352 = vsel %vm351, %v273, %v350
  %vm353 = vcmp.eq.f32.partialorder %v273, 0.0
  %v354 = vand.u32 %v273, 2147483648
  %v355 = vsel %vm353, %v354, %v352
  %v356 = vrsqrt.pop %v274
  %v357 = vmul.f32 %v356, %v274
  %v358 = vmul.f32 %v357, %v356
  %v359 = vmul.f32 0.5, %v358
  %v360 = vsub.f32 1.5, %v359
  %v361 = vmul.f32 %v356, %v360
  %v362 = vmul.f32 %v274, %v361
  %vm363 = vcmp.eq.f32.partialorder %v274, inf
  %v364 = vsel %vm363, %v274, %v362
  %vm365 = vcmp.eq.f32.partialorder %v274, 0.0
  %v366 = vand.u32 %v274, 2147483648
  %v367 = vsel %vm365, %v366, %v364
  %v368 = vrsqrt.pop %v275
  %v369 = vmul.f32 %v368, %v275
  %v370 = vmul.f32 %v369, %v368
  %v371 = vmul.f32 0.5, %v370
  %v372 = vsub.f32 1.5, %v371
  %v373 = vmul.f32 %v368, %v372
  %v374 = vmul.f32 %v275, %v373
  %vm375 = vcmp.eq.f32.partialorder %v275, inf
  %v376 = vsel %vm375, %v275, %v374
  %vm377 = vcmp.eq.f32.partialorder %v275, 0.0
  %v378 = vand.u32 %v275, 2147483648
  %v379 = vsel %vm377, %v378, %v376
  %v380 = vrsqrt.pop %v276
  %v381 = vmul.f32 %v380, %v276
  %v382 = vmul.f32 %v381, %v380
  %v383 = vmul.f32 0.5, %v382
  %v384 = vsub.f32 1.5, %v383
  %v385 = vmul.f32 %v380, %v384
  %v386 = vmul.f32 %v276, %v385
  %vm387 = vcmp.eq.f32.partialorder %v276, inf
  %v388 = vsel %vm387, %v276, %v386
  %vm389 = vcmp.eq.f32.partialorder %v276, 0.0
  %v390 = vand.u32 %v276, 2147483648
  %v391 = vsel %vm389, %v390, %v388
  %v392 = vrsqrt.pop %v277
  %v393 = vmul.f32 %v392, %v277
  %v394 = vmul.f32 %v393, %v392
  %v395 = vmul.f32 0.5, %v394
  %v396 = vsub.f32 1.5, %v395
  %v397 = vmul.f32 %v392, %v396
  %v398 = vmul.f32 %v277, %v397
  %vm399 = vcmp.eq.f32.partialorder %v277, inf
  %v400 = vsel %vm399, %v277, %v398
  %vm401 = vcmp.eq.f32.partialorder %v277, 0.0
  %v402 = vand.u32 %v277, 2147483648
  %v403 = vsel %vm401, %v402, %v400
  %v404 = vrsqrt.pop %v278
  %v405 = vmul.f32 %v404, %v278
  %v406 = vmul.f32 %v405, %v404
  %v407 = vmul.f32 0.5, %v406
  %v408 = vsub.f32 1.5, %v407
  %v409 = vmul.f32 %v404, %v408
  %v410 = vmul.f32 %v278, %v409
  %vm411 = vcmp.eq.f32.partialorder %v278, inf
  %v412 = vsel %vm411, %v278, %v410
  %vm413 = vcmp.eq.f32.partialorder %v278, 0.0
  %v414 = vand.u32 %v278, 2147483648
  %v415 = vsel %vm413, %v414, %v412
  %v416 = vrsqrt.pop %v279
  %v417 = vmul.f32 %v416, %v279
  %v418 = vmul.f32 %v417, %v416
  %v419 = vmul.f32 0.5, %v418
  %v420 = vsub.f32 1.5, %v419
  %v421 = vmul.f32 %v416, %v420
  %v422 = vmul.f32 %v279, %v421
  %vm423 = vcmp.eq.f32.partialorder %v279, inf
  %v424 = vsel %vm423, %v279, %v422
  %vm425 = vcmp.eq.f32.partialorder %v279, 0.0
  %v426 = vand.u32 %v279, 2147483648
  %v427 = vsel %vm425, %v426, %v424
  %v428 = vrsqrt.pop %v280
  %v429 = vmul.f32 %v428, %v280
  %v430 = vmul.f32 %v429, %v428
  %v431 = vmul.f32 0.5, %v430
  %v432 = vsub.f32 1.5, %v431
  %v433 = vmul.f32 %v428, %v432
  %v434 = vmul.f32 %v280, %v433
  %vm435 = vcmp.eq.f32.partialorder %v280, inf
  %v436 = vsel %vm435, %v280, %v434
  %vm437 = vcmp.eq.f32.partialorder %v280, 0.0
  %v438 = vand.u32 %v280, 2147483648
  %v439 = vsel %vm437, %v438, %v436
  %v440 = vrsqrt.pop %v281
  %v441 = vmul.f32 %v440, %v281
  %v442 = vmul.f32 %v441, %v440
  %v443 = vmul.f32 0.5, %v442
  %v444 = vsub.f32 1.5, %v443
  %v445 = vmul.f32 %v440, %v444
  %v446 = vmul.f32 %v281, %v445
  %vm447 = vcmp.eq.f32.partialorder %v281, inf
  %v448 = vsel %vm447, %v281, %v446
  %vm449 = vcmp.eq.f32.partialorder %v281, 0.0
  %v450 = vand.u32 %v281, 2147483648
  %v451 = vsel %vm449, %v450, %v448
  %v452 = vrsqrt.pop %v282
  %v453 = vmul.f32 %v452, %v282
  %v454 = vmul.f32 %v453, %v452
  %v455 = vmul.f32 0.5, %v454
  %v456 = vsub.f32 1.5, %v455
  %v457 = vmul.f32 %v452, %v456
  %v458 = vmul.f32 %v282, %v457
  %vm459 = vcmp.eq.f32.partialorder %v282, inf
  %v460 = vsel %vm459, %v282, %v458
  %vm461 = vcmp.eq.f32.partialorder %v282, 0.0
  %v462 = vand.u32 %v282, 2147483648
  %v463 = vsel %vm461, %v462, %v460
  %v464 = vrsqrt.pop %v283
  %v465 = vmul.f32 %v464, %v283
  %v466 = vmul.f32 %v465, %v464
  %v467 = vmul.f32 0.5, %v466
  %v468 = vsub.f32 1.5, %v467
  %v469 = vmul.f32 %v464, %v468
  %v470 = vmul.f32 %v283, %v469
  %vm471 = vcmp.eq.f32.partialorder %v283, inf
  %v472 = vsel %vm471, %v283, %v470
  %vm473 = vcmp.eq.f32.partialorder %v283, 0.0
  %v474 = vand.u32 %v283, 2147483648
  %v475 = vsel %vm473, %v474, %v472
  %v476 = vld [vmem:[%s4] sm:$0xff]
  %v477 = vld [vmem:[%s4 + $0x8] sm:$0xff]
  %v478 = vld [vmem:[%s4 + $0x10] sm:$0xff]
  %v479 = vld [vmem:[%s4 + $0x18] sm:$0xff]
  %v480 = vld [vmem:[%s4 + $0x20] sm:$0xff]
  %v481 = vld [vmem:[%s4 + $0x28] sm:$0xff]
  %v482 = vld [vmem:[%s4 + $0x30] sm:$0xff]
  %v483 = vld [vmem:[%s4 + $0x38] sm:$0xff]
  %v484 = vld [vmem:[%s4 + $0x40] sm:$0xff]
  %v485 = vld [vmem:[%s4 + $0x48] sm:$0xff]
  %v486 = vld [vmem:[%s4 + $0x50] sm:$0xff]
  %v487 = vld [vmem:[%s4 + $0x58] sm:$0xff]
  %v488 = vld [vmem:[%s4 + $0x60] sm:$0xff]
  %v489 = vld [vmem:[%s4 + $0x68] sm:$0xff]
  %v490 = vld [vmem:[%s4 + $0x70] sm:$0xff]
  %v491 = vld [vmem:[%s4 + $0x78] sm:$0xff]
  %v492 = vld [vmem:[%s5] sm:$0x1]
  %493 = vset.pattern.permute.xlu0 0
  %494 = vperm.xlu0 %493, %v476
  %v495 = vpop.permute.xlu0 %494
  %496 = vset.pattern.permute.xlu0 0
  %497 = vperm.xlu0 %496, %v477
  %v498 = vpop.permute.xlu0 %497
  %499 = vset.pattern.permute.xlu0 0
  %500 = vperm.xlu0 %499, %v478
  %v501 = vpop.permute.xlu0 %500
  %502 = vset.pattern.permute.xlu0 0
  %503 = vperm.xlu0 %502, %v479
  %v504 = vpop.permute.xlu0 %503
  %505 = vset.pattern.permute.xlu0 0
  %506 = vperm.xlu0 %505, %v480
  %v507 = vpop.permute.xlu0 %506
  %508 = vset.pattern.permute.xlu0 0
  %509 = vperm.xlu0 %508, %v481
  %v510 = vpop.permute.xlu0 %509
  %511 = vset.pattern.permute.xlu0 0
  %512 = vperm.xlu0 %511, %v482
  %v513 = vpop.permute.xlu0 %512
  %514 = vset.pattern.permute.xlu0 0
  %515 = vperm.xlu0 %514, %v483
  %v516 = vpop.permute.xlu0 %515
  %517 = vset.pattern.permute.xlu0 0
  %518 = vperm.xlu0 %517, %v484
  %v519 = vpop.permute.xlu0 %518
  %520 = vset.pattern.permute.xlu0 0
  %521 = vperm.xlu0 %520, %v485
  %v522 = vpop.permute.xlu0 %521
  %523 = vset.pattern.permute.xlu0 0
  %524 = vperm.xlu0 %523, %v486
  %v525 = vpop.permute.xlu0 %524
  %526 = vset.pattern.permute.xlu0 0
  %527 = vperm.xlu0 %526, %v487
  %v528 = vpop.permute.xlu0 %527
  %529 = vset.pattern.permute.xlu0 0
  %530 = vperm.xlu0 %529, %v488
  %v531 = vpop.permute.xlu0 %530
  %532 = vset.pattern.permute.xlu0 0
  %533 = vperm.xlu0 %532, %v489
  %v534 = vpop.permute.xlu0 %533
  %535 = vset.pattern.permute.xlu0 0
  %536 = vperm.xlu0 %535, %v490
  %v537 = vpop.permute.xlu0 %536
  %538 = vset.pattern.permute.xlu0 0
  %539 = vperm.xlu0 %538, %v491
  %v540 = vpop.permute.xlu0 %539
  %v541 = vperm.slane %v492, 0
  %vm542 = vcmp.eq.s32.totalorder %v495, %v541
  %vm543 = vcmp.eq.s32.totalorder %v498, %v541
  %vm544 = vcmp.eq.s32.totalorder %v501, %v541
  %vm545 = vcmp.eq.s32.totalorder %v504, %v541
  %vm546 = vcmp.eq.s32.totalorder %v507, %v541
  %vm547 = vcmp.eq.s32.totalorder %v510, %v541
  %vm548 = vcmp.eq.s32.totalorder %v513, %v541
  %vm549 = vcmp.eq.s32.totalorder %v516, %v541
  %vm550 = vcmp.eq.s32.totalorder %v519, %v541
  %vm551 = vcmp.eq.s32.totalorder %v522, %v541
  %vm552 = vcmp.eq.s32.totalorder %v525, %v541
  %vm553 = vcmp.eq.s32.totalorder %v528, %v541
  %vm554 = vcmp.eq.s32.totalorder %v531, %v541
  %vm555 = vcmp.eq.s32.totalorder %v534, %v541
  %vm556 = vcmp.eq.s32.totalorder %v537, %v541
  %vm557 = vcmp.eq.s32.totalorder %v540, %v541
  %s558 = smul.u32 0, 128
  %v559 = vlaneseq
  %v560 = vshrl.u32 %v559, 7
  %v561 = vadd.s32 %v560, 8
  %v562 = vadd.s32 %v560, 16
  %v563 = vadd.s32 %v560, 24
  %v564 = vadd.s32 %v560, 32
  %v565 = vadd.s32 %v560, 40
  %v566 = vadd.s32 %v560, 48
  %v567 = vadd.s32 %v560, 56
  %v568 = vadd.s32 %v560, 64
  %v569 = vadd.s32 %v560, 72
  %v570 = vadd.s32 %v560, 80
  %v571 = vadd.s32 %v560, 88
  %v572 = vadd.s32 %v560, 96
  %v573 = vadd.s32 %v560, 104
  %v574 = vadd.s32 %v560, 112
  %v575 = vadd.s32 %v560, 120
  %v576 = vstv %s558
  %v577 = vadd.s32 %v576, %v560
  %v578 = vadd.s32 %v576, %v561
  %v579 = vadd.s32 %v576, %v562
  %v580 = vadd.s32 %v576, %v563
  %v581 = vadd.s32 %v576, %v564
  %v582 = vadd.s32 %v576, %v565
  %v583 = vadd.s32 %v576, %v566
  %v584 = vadd.s32 %v576, %v567
  %v585 = vadd.s32 %v576, %v568
  %v586 = vadd.s32 %v576, %v569
  %v587 = vadd.s32 %v576, %v570
  %v588 = vadd.s32 %v576, %v571
  %v589 = vadd.s32 %v576, %v572
  %v590 = vadd.s32 %v576, %v573
  %v591 = vadd.s32 %v576, %v574
  %v592 = vadd.s32 %v576, %v575
  %s593 = smul.u32 0, 128
  %v594 = vlaneseq
  %v595 = vand.u32 %v594, 127
  %v596 = vstv %s593
  %v597 = vadd.s32 %v596, %v595
  %vm598 = vcmp.lt.s32.totalorder %v577, 8
  %vm599 = vcmp.lt.s32.totalorder %v578, 8
  %vm600 = vcmp.lt.s32.totalorder %v579, 8
  %vm601 = vcmp.lt.s32.totalorder %v580, 8
  %vm602 = vcmp.lt.s32.totalorder %v581, 8
  %vm603 = vcmp.lt.s32.totalorder %v582, 8
  %vm604 = vcmp.lt.s32.totalorder %v583, 8
  %vm605 = vcmp.lt.s32.totalorder %v584, 8
  %vm606 = vcmp.lt.s32.totalorder %v585, 8
  %vm607 = vcmp.lt.s32.totalorder %v586, 8
  %vm608 = vcmp.lt.s32.totalorder %v587, 8
  %vm609 = vcmp.lt.s32.totalorder %v588, 8
  %vm610 = vcmp.lt.s32.totalorder %v589, 8
  %vm611 = vcmp.lt.s32.totalorder %v590, 8
  %vm612 = vcmp.lt.s32.totalorder %v591, 8
  %vm613 = vcmp.lt.s32.totalorder %v592, 8
  %vm614 = vcmp.lt.s32.totalorder %v597, 8
  %vm615 = vmand %vm598, %vm614
  %vm616 = vmand %vm599, %vm614
  %vm617 = vmand %vm600, %vm614
  %vm618 = vmand %vm601, %vm614
  %vm619 = vmand %vm602, %vm614
  %vm620 = vmand %vm603, %vm614
  %vm621 = vmand %vm604, %vm614
  %vm622 = vmand %vm605, %vm614
  %vm623 = vmand %vm606, %vm614
  %vm624 = vmand %vm607, %vm614
  %vm625 = vmand %vm608, %vm614
  %vm626 = vmand %vm609, %vm614
  %vm627 = vmand %vm610, %vm614
  %vm628 = vmand %vm611, %vm614
  %vm629 = vmand %vm612, %vm614
  %vm630 = vmand %vm613, %vm614
  %vm631 = vmxor %vm542, 1
  %vm632 = vmxor %vm543, 1
  %vm633 = vmxor %vm544, 1
  %vm634 = vmxor %vm545, 1
  %vm635 = vmxor %vm546, 1
  %vm636 = vmxor %vm547, 1
  %vm637 = vmxor %vm548, 1
  %vm638 = vmxor %vm549, 1
  %vm639 = vmxor %vm550, 1
  %vm640 = vmxor %vm551, 1
  %vm641 = vmxor %vm552, 1
  %vm642 = vmxor %vm553, 1
  %vm643 = vmxor %vm554, 1
  %vm644 = vmxor %vm555, 1
  %vm645 = vmxor %vm556, 1
  %vm646 = vmxor %vm557, 1
  %vm647 = vmand %vm615, %vm631
  %vm648 = vmand %vm616, %vm632
  %vm649 = vmand %vm617, %vm633
  %vm650 = vmand %vm618, %vm634
  %vm651 = vmand %vm619, %vm635
  %vm652 = vmand %vm620, %vm636
  %vm653 = vmand %vm621, %vm637
  %vm654 = vmand %vm622, %vm638
  %vm655 = vmand %vm623, %vm639
  %vm656 = vmand %vm624, %vm640
  %vm657 = vmand %vm625, %vm641
  %vm658 = vmand %vm626, %vm642
  %vm659 = vmand %vm627, %vm643
  %vm660 = vmand %vm628, %vm644
  %vm661 = vmand %vm629, %vm645
  %vm662 = vmand %vm630, %vm646
  %vm663 = vcmp.lt.f32.partialorder %v295, 0.64
  %vm664 = vcmp.lt.f32.partialorder %v307, 0.64
  %vm665 = vcmp.lt.f32.partialorder %v319, 0.64
  %vm666 = vcmp.lt.f32.partialorder %v331, 0.64
  %vm667 = vcmp.lt.f32.partialorder %v343, 0.64
  %vm668 = vcmp.lt.f32.partialorder %v355, 0.64
  %vm669 = vcmp.lt.f32.partialorder %v367, 0.64
  %vm670 = vcmp.lt.f32.partialorder %v379, 0.64
  %vm671 = vcmp.lt.f32.partialorder %v391, 0.64
  %vm672 = vcmp.lt.f32.partialorder %v403, 0.64
  %vm673 = vcmp.lt.f32.partialorder %v415, 0.64
  %vm674 = vcmp.lt.f32.partialorder %v427, 0.64
  %vm675 = vcmp.lt.f32.partialorder %v439, 0.64
  %vm676 = vcmp.lt.f32.partialorder %v451, 0.64
  %vm677 = vcmp.lt.f32.partialorder %v463, 0.64
  %vm678 = vcmp.lt.f32.partialorder %v475, 0.64
  %vm679 = vmand %vm647, %vm663
  %vm680 = vmand %vm648, %vm664
  %vm681 = vmand %vm649, %vm665
  %vm682 = vmand %vm650, %vm666
  %vm683 = vmand %vm651, %vm667
  %vm684 = vmand %vm652, %vm668
  %vm685 = vmand %vm653, %vm669
  %vm686 = vmand %vm654, %vm670
  %vm687 = vmand %vm655, %vm671
  %vm688 = vmand %vm656, %vm672
  %vm689 = vmand %vm657, %vm673
  %vm690 = vmand %vm658, %vm674
  %vm691 = vmand %vm659, %vm675
  %vm692 = vmand %vm660, %vm676
  %vm693 = vmand %vm661, %vm677
  %vm694 = vmand %vm662, %vm678
  %vm695 = vmand %vm615, %vm542
  %vm696 = vmand %vm616, %vm543
  %vm697 = vmand %vm617, %vm544
  %vm698 = vmand %vm618, %vm545
  %vm699 = vmand %vm619, %vm546
  %vm700 = vmand %vm620, %vm547
  %vm701 = vmand %vm621, %vm548
  %vm702 = vmand %vm622, %vm549
  %vm703 = vmand %vm623, %vm550
  %vm704 = vmand %vm624, %vm551
  %vm705 = vmand %vm625, %vm552
  %vm706 = vmand %vm626, %vm553
  %vm707 = vmand %vm627, %vm554
  %vm708 = vmand %vm628, %vm555
  %vm709 = vmand %vm629, %vm556
  %vm710 = vmand %vm630, %vm557
  %vm711 = vcmp.gt.f32.partialorder %v295, 0.56
  %vm712 = vcmp.gt.f32.partialorder %v307, 0.56
  %vm713 = vcmp.gt.f32.partialorder %v319, 0.56
  %vm714 = vcmp.gt.f32.partialorder %v331, 0.56
  %vm715 = vcmp.gt.f32.partialorder %v343, 0.56
  %vm716 = vcmp.gt.f32.partialorder %v355, 0.56
  %vm717 = vcmp.gt.f32.partialorder %v367, 0.56
  %vm718 = vcmp.gt.f32.partialorder %v379, 0.56
  %vm719 = vcmp.gt.f32.partialorder %v391, 0.56
  %vm720 = vcmp.gt.f32.partialorder %v403, 0.56
  %vm721 = vcmp.gt.f32.partialorder %v415, 0.56
  %vm722 = vcmp.gt.f32.partialorder %v427, 0.56
  %vm723 = vcmp.gt.f32.partialorder %v439, 0.56
  %vm724 = vcmp.gt.f32.partialorder %v451, 0.56
  %vm725 = vcmp.gt.f32.partialorder %v463, 0.56
  %vm726 = vcmp.gt.f32.partialorder %v475, 0.56
  %vm727 = vmand %vm695, %vm711
  %vm728 = vmand %vm696, %vm712
  %vm729 = vmand %vm697, %vm713
  %vm730 = vmand %vm698, %vm714
  %vm731 = vmand %vm699, %vm715
  %vm732 = vmand %vm700, %vm716
  %vm733 = vmand %vm701, %vm717
  %vm734 = vmand %vm702, %vm718
  %vm735 = vmand %vm703, %vm719
  %vm736 = vmand %vm704, %vm720
  %vm737 = vmand %vm705, %vm721
  %vm738 = vmand %vm706, %vm722
  %vm739 = vmand %vm707, %vm723
  %vm740 = vmand %vm708, %vm724
  %vm741 = vmand %vm709, %vm725
  %vm742 = vmand %vm710, %vm726
  %v743 = vsub.f32 %v295, 0.56
  %v744 = vsub.f32 %v307, 0.56
  %v745 = vsub.f32 %v319, 0.56
  %v746 = vsub.f32 %v331, 0.56
  %v747 = vsub.f32 %v343, 0.56
  %v748 = vsub.f32 %v355, 0.56
  %v749 = vsub.f32 %v367, 0.56
  %v750 = vsub.f32 %v379, 0.56
  %v751 = vsub.f32 %v391, 0.56
  %v752 = vsub.f32 %v403, 0.56
  %v753 = vsub.f32 %v415, 0.56
  %v754 = vsub.f32 %v427, 0.56
  %v755 = vsub.f32 %v439, 0.56
  %v756 = vsub.f32 %v451, 0.56
  %v757 = vsub.f32 %v463, 0.56
  %v758 = vsub.f32 %v475, 0.56
  %v759 = vsel %vm727, %v743, 0.0
  %v760 = vsel %vm728, %v744, 0.0
  %v761 = vsel %vm729, %v745, 0.0
  %v762 = vsel %vm730, %v746, 0.0
  %v763 = vsel %vm731, %v747, 0.0
  %v764 = vsel %vm732, %v748, 0.0
  %v765 = vsel %vm733, %v749, 0.0
  %v766 = vsel %vm734, %v750, 0.0
  %v767 = vsel %vm735, %v751, 0.0
  %v768 = vsel %vm736, %v752, 0.0
  %v769 = vsel %vm737, %v753, 0.0
  %v770 = vsel %vm738, %v754, 0.0
  %v771 = vsel %vm739, %v755, 0.0
  %v772 = vsel %vm740, %v756, 0.0
  %v773 = vsel %vm741, %v757, 0.0
  %v774 = vsel %vm742, %v758, 0.0
  %v775 = vadd.f32 %v759, %v760
  %v776 = vadd.f32 %v775, %v761
  %v777 = vadd.f32 %v776, %v762
  %v778 = vadd.f32 %v777, %v763
  %v779 = vadd.f32 %v778, %v764
  %v780 = vadd.f32 %v779, %v765
  %v781 = vadd.f32 %v780, %v766
  %v782 = vadd.f32 %v781, %v767
  %v783 = vadd.f32 %v782, %v768
  %v784 = vadd.f32 %v783, %v769
  %v785 = vadd.f32 %v784, %v770
  %v786 = vadd.f32 %v785, %v771
  %v787 = vadd.f32 %v786, %v772
  %v788 = vadd.f32 %v787, %v773
  %v789 = vadd.f32 %v788, %v774
  %790 = vadd.xlane.f32.xlu0 %v789
  %v791 = vpop.xlane.xlu0 %790
  %v792 = vrot.slane %v791, 4
  %v793 = vadd.f32 %v791, %v792
  %v794 = vrot.slane %v793, 2
  %v795 = vadd.f32 %v793, %v794
  %v796 = vrot.slane %v795, 1
  %v797 = vadd.f32 %v795, %v796
  %s798 = vtos %v797
  %v799 = vsub.f32 0.64, %v295
  %v800 = vsub.f32 0.64, %v307
  %v801 = vsub.f32 0.64, %v319
  %v802 = vsub.f32 0.64, %v331
  %v803 = vsub.f32 0.64, %v343
  %v804 = vsub.f32 0.64, %v355
  %v805 = vsub.f32 0.64, %v367
  %v806 = vsub.f32 0.64, %v379
  %v807 = vsub.f32 0.64, %v391
  %v808 = vsub.f32 0.64, %v403
  %v809 = vsub.f32 0.64, %v415
  %v810 = vsub.f32 0.64, %v427
  %v811 = vsub.f32 0.64, %v439
  %v812 = vsub.f32 0.64, %v451
  %v813 = vsub.f32 0.64, %v463
  %v814 = vsub.f32 0.64, %v475
  %v815 = vsel %vm679, %v799, 0.0
  %v816 = vsel %vm680, %v800, 0.0
  %v817 = vsel %vm681, %v801, 0.0
  %v818 = vsel %vm682, %v802, 0.0
  %v819 = vsel %vm683, %v803, 0.0
  %v820 = vsel %vm684, %v804, 0.0
  %v821 = vsel %vm685, %v805, 0.0
  %v822 = vsel %vm686, %v806, 0.0
  %v823 = vsel %vm687, %v807, 0.0
  %v824 = vsel %vm688, %v808, 0.0
  %v825 = vsel %vm689, %v809, 0.0
  %v826 = vsel %vm690, %v810, 0.0
  %v827 = vsel %vm691, %v811, 0.0
  %v828 = vsel %vm692, %v812, 0.0
  %v829 = vsel %vm693, %v813, 0.0
  %v830 = vsel %vm694, %v814, 0.0
  %v831 = vadd.f32 %v815, %v816
  %v832 = vadd.f32 %v831, %v817
  %v833 = vadd.f32 %v832, %v818
  %v834 = vadd.f32 %v833, %v819
  %v835 = vadd.f32 %v834, %v820
  %v836 = vadd.f32 %v835, %v821
  %v837 = vadd.f32 %v836, %v822
  %v838 = vadd.f32 %v837, %v823
  %v839 = vadd.f32 %v838, %v824
  %v840 = vadd.f32 %v839, %v825
  %v841 = vadd.f32 %v840, %v826
  %v842 = vadd.f32 %v841, %v827
  %v843 = vadd.f32 %v842, %v828
  %v844 = vadd.f32 %v843, %v829
  %v845 = vadd.f32 %v844, %v830
  %846 = vadd.xlane.f32.xlu0 %v845
  %v847 = vpop.xlane.xlu0 %846
  %v848 = vrot.slane %v847, 4
  %v849 = vadd.f32 %v847, %v848
  %v850 = vrot.slane %v849, 2
  %v851 = vadd.f32 %v849, %v850
  %v852 = vrot.slane %v851, 1
  %v853 = vadd.f32 %v851, %v852
  %s854 = vtos %v853
  %vm855 = vcmp.lt.f32.partialorder %v295, 0.6
  %vm856 = vcmp.lt.f32.partialorder %v307, 0.6
  %vm857 = vcmp.lt.f32.partialorder %v319, 0.6
  %vm858 = vcmp.lt.f32.partialorder %v331, 0.6
  %vm859 = vcmp.lt.f32.partialorder %v343, 0.6
  %vm860 = vcmp.lt.f32.partialorder %v355, 0.6
  %vm861 = vcmp.lt.f32.partialorder %v367, 0.6
  %vm862 = vcmp.lt.f32.partialorder %v379, 0.6
  %vm863 = vcmp.lt.f32.partialorder %v391, 0.6
  %vm864 = vcmp.lt.f32.partialorder %v403, 0.6
  %vm865 = vcmp.lt.f32.partialorder %v415, 0.6
  %vm866 = vcmp.lt.f32.partialorder %v427, 0.6
  %vm867 = vcmp.lt.f32.partialorder %v439, 0.6
  %vm868 = vcmp.lt.f32.partialorder %v451, 0.6
  %vm869 = vcmp.lt.f32.partialorder %v463, 0.6
  %vm870 = vcmp.lt.f32.partialorder %v475, 0.6
  %vm871 = vmxor %vm542, %vm855
  %vm872 = vmxor %vm543, %vm856
  %vm873 = vmxor %vm544, %vm857
  %vm874 = vmxor %vm545, %vm858
  %vm875 = vmxor %vm546, %vm859
  %vm876 = vmxor %vm547, %vm860
  %vm877 = vmxor %vm548, %vm861
  %vm878 = vmxor %vm549, %vm862
  %vm879 = vmxor %vm550, %vm863
  %vm880 = vmxor %vm551, %vm864
  %vm881 = vmxor %vm552, %vm865
  %vm882 = vmxor %vm553, %vm866
  %vm883 = vmxor %vm554, %vm867
  %vm884 = vmxor %vm555, %vm868
  %vm885 = vmxor %vm556, %vm869
  %vm886 = vmxor %vm557, %vm870
  %vm887 = vmxor %vm871, 1
  %vm888 = vmxor %vm872, 1
  %vm889 = vmxor %vm873, 1
  %vm890 = vmxor %vm874, 1
  %vm891 = vmxor %vm875, 1
  %vm892 = vmxor %vm876, 1
  %vm893 = vmxor %vm877, 1
  %vm894 = vmxor %vm878, 1
  %vm895 = vmxor %vm879, 1
  %vm896 = vmxor %vm880, 1
  %vm897 = vmxor %vm881, 1
  %vm898 = vmxor %vm882, 1
  %vm899 = vmxor %vm883, 1
  %vm900 = vmxor %vm884, 1
  %vm901 = vmxor %vm885, 1
  %vm902 = vmxor %vm886, 1
  %vm903 = vmand %vm615, %vm887
  %vm904 = vmand %vm616, %vm888
  %vm905 = vmand %vm617, %vm889
  %vm906 = vmand %vm618, %vm890
  %vm907 = vmand %vm619, %vm891
  %vm908 = vmand %vm620, %vm892
  %vm909 = vmand %vm621, %vm893
  %vm910 = vmand %vm622, %vm894
  %vm911 = vmand %vm623, %vm895
  %vm912 = vmand %vm624, %vm896
  %vm913 = vmand %vm625, %vm897
  %vm914 = vmand %vm626, %vm898
  %vm915 = vmand %vm627, %vm899
  %vm916 = vmand %vm628, %vm900
  %vm917 = vmand %vm629, %vm901
  %vm918 = vmand %vm630, %vm902
  %v919 = vsel %vm903, 1.0, 0.0
  %v920 = vsel %vm904, 1.0, 0.0
  %v921 = vsel %vm905, 1.0, 0.0
  %v922 = vsel %vm906, 1.0, 0.0
  %v923 = vsel %vm907, 1.0, 0.0
  %v924 = vsel %vm908, 1.0, 0.0
  %v925 = vsel %vm909, 1.0, 0.0
  %v926 = vsel %vm910, 1.0, 0.0
  %v927 = vsel %vm911, 1.0, 0.0
  %v928 = vsel %vm912, 1.0, 0.0
  %v929 = vsel %vm913, 1.0, 0.0
  %v930 = vsel %vm914, 1.0, 0.0
  %v931 = vsel %vm915, 1.0, 0.0
  %v932 = vsel %vm916, 1.0, 0.0
  %v933 = vsel %vm917, 1.0, 0.0
  %v934 = vsel %vm918, 1.0, 0.0
  %v935 = vadd.f32 %v919, %v920
  %v936 = vadd.f32 %v935, %v921
  %v937 = vadd.f32 %v936, %v922
  %v938 = vadd.f32 %v937, %v923
  %v939 = vadd.f32 %v938, %v924
  %v940 = vadd.f32 %v939, %v925
  %v941 = vadd.f32 %v940, %v926
  %v942 = vadd.f32 %v941, %v927
  %v943 = vadd.f32 %v942, %v928
  %v944 = vadd.f32 %v943, %v929
  %v945 = vadd.f32 %v944, %v930
  %v946 = vadd.f32 %v945, %v931
  %v947 = vadd.f32 %v946, %v932
  %v948 = vadd.f32 %v947, %v933
  %v949 = vadd.f32 %v948, %v934
  %950 = vadd.xlane.f32.xlu0 %v949
  %v951 = vpop.xlane.xlu0 %950
  %v952 = vrot.slane %v951, 4
  %v953 = vadd.f32 %v951, %v952
  %v954 = vrot.slane %v953, 2
  %v955 = vadd.f32 %v953, %v954
  %v956 = vrot.slane %v955, 1
  %v957 = vadd.f32 %v955, %v956
  %s958 = vtos %v957
  %v959 = vsel %vm695, 1.0, 0.0
  %v960 = vsel %vm696, 1.0, 0.0
  %v961 = vsel %vm697, 1.0, 0.0
  %v962 = vsel %vm698, 1.0, 0.0
  %v963 = vsel %vm699, 1.0, 0.0
  %v964 = vsel %vm700, 1.0, 0.0
  %v965 = vsel %vm701, 1.0, 0.0
  %v966 = vsel %vm702, 1.0, 0.0
  %v967 = vsel %vm703, 1.0, 0.0
  %v968 = vsel %vm704, 1.0, 0.0
  %v969 = vsel %vm705, 1.0, 0.0
  %v970 = vsel %vm706, 1.0, 0.0
  %v971 = vsel %vm707, 1.0, 0.0
  %v972 = vsel %vm708, 1.0, 0.0
  %v973 = vsel %vm709, 1.0, 0.0
  %v974 = vsel %vm710, 1.0, 0.0
  %v975 = vadd.f32 %v959, %v960
  %v976 = vadd.f32 %v975, %v961
  %v977 = vadd.f32 %v976, %v962
  %v978 = vadd.f32 %v977, %v963
  %v979 = vadd.f32 %v978, %v964
  %v980 = vadd.f32 %v979, %v965
  %v981 = vadd.f32 %v980, %v966
  %v982 = vadd.f32 %v981, %v967
  %v983 = vadd.f32 %v982, %v968
  %v984 = vadd.f32 %v983, %v969
  %v985 = vadd.f32 %v984, %v970
  %v986 = vadd.f32 %v985, %v971
  %v987 = vadd.f32 %v986, %v972
  %v988 = vadd.f32 %v987, %v973
  %v989 = vadd.f32 %v988, %v974
  %990 = vadd.xlane.f32.xlu0 %v989
  %v991 = vpop.xlane.xlu0 %990
  %v992 = vrot.slane %v991, 4
  %v993 = vadd.f32 %v991, %v992
  %v994 = vrot.slane %v993, 2
  %v995 = vadd.f32 %v993, %v994
  %v996 = vrot.slane %v995, 1
  %v997 = vadd.f32 %v995, %v996
  %s998 = vtos %v997
  %v999 = vsel %vm679, 1, 0
  %v1000 = vsel %vm680, 1, 0
  %v1001 = vsel %vm681, 1, 0
  %v1002 = vsel %vm682, 1, 0
  %v1003 = vsel %vm683, 1, 0
  %v1004 = vsel %vm684, 1, 0
  %v1005 = vsel %vm685, 1, 0
  %v1006 = vsel %vm686, 1, 0
  %v1007 = vsel %vm687, 1, 0
  %v1008 = vsel %vm688, 1, 0
  %v1009 = vsel %vm689, 1, 0
  %v1010 = vsel %vm690, 1, 0
  %v1011 = vsel %vm691, 1, 0
  %v1012 = vsel %vm692, 1, 0
  %v1013 = vsel %vm693, 1, 0
  %v1014 = vsel %vm694, 1, 0
  %v1015 = vcvt.s32.f32 %v999
  %v1016 = vcvt.s32.f32 %v1000
  %v1017 = vcvt.s32.f32 %v1001
  %v1018 = vcvt.s32.f32 %v1002
  %v1019 = vcvt.s32.f32 %v1003
  %v1020 = vcvt.s32.f32 %v1004
  %v1021 = vcvt.s32.f32 %v1005
  %v1022 = vcvt.s32.f32 %v1006
  %v1023 = vcvt.s32.f32 %v1007
  %v1024 = vcvt.s32.f32 %v1008
  %v1025 = vcvt.s32.f32 %v1009
  %v1026 = vcvt.s32.f32 %v1010
  %v1027 = vcvt.s32.f32 %v1011
  %v1028 = vcvt.s32.f32 %v1012
  %v1029 = vcvt.s32.f32 %v1013
  %v1030 = vcvt.s32.f32 %v1014
  %v1031 = vadd.f32 %v1015, %v1016
  %v1032 = vadd.f32 %v1031, %v1017
  %v1033 = vadd.f32 %v1032, %v1018
  %v1034 = vadd.f32 %v1033, %v1019
  %v1035 = vadd.f32 %v1034, %v1020
  %v1036 = vadd.f32 %v1035, %v1021
  %v1037 = vadd.f32 %v1036, %v1022
  %v1038 = vadd.f32 %v1037, %v1023
  %v1039 = vadd.f32 %v1038, %v1024
  %v1040 = vadd.f32 %v1039, %v1025
  %v1041 = vadd.f32 %v1040, %v1026
  %v1042 = vadd.f32 %v1041, %v1027
  %v1043 = vadd.f32 %v1042, %v1028
  %v1044 = vadd.f32 %v1043, %v1029
  %v1045 = vadd.f32 %v1044, %v1030
  %1046 = vadd.xlane.f32.xlu0 %v1045
  %v1047 = vpop.xlane.xlu0 %1046
  %v1048 = vrot.slane %v1047, 4
  %v1049 = vadd.f32 %v1047, %v1048
  %v1050 = vrot.slane %v1049, 2
  %v1051 = vadd.f32 %v1049, %v1050
  %v1052 = vrot.slane %v1051, 1
  %v1053 = vadd.f32 %v1051, %v1052
  %s1054 = vtos %v1053
  %vm1055 = vcmp.eq.s32.totalorder %v595, 0
  %v1056 = vstv %s798
  %v1057 = vsel %vm1055, %v1056, 0.0
  %vm1058 = vcmp.eq.s32.totalorder %v595, 1
  %v1059 = vstv %s854
  %v1060 = vsel %vm1058, %v1059, %v1057
  %vm1061 = vcmp.eq.s32.totalorder %v595, 2
  %v1062 = vstv %s958
  %v1063 = vsel %vm1061, %v1062, %v1060
  %vm1064 = vcmp.eq.s32.totalorder %v595, 3
  %v1065 = vstv %s998
  %v1066 = vsel %vm1064, %v1065, %v1063
  %vm1067 = vcmp.eq.s32.totalorder %v595, 4
  %v1068 = vstv %s1054
  %v1069 = vsel %vm1067, %v1068, %v1066
  %1070 = vst [vmem:[%s6] sm:$0xff] %v1069
  // Predicated region
  $region26: #{mahalanobis_metric_loss.1} parent=0 // pred_check
    _
  $region27: #{mahalanobis_metric_loss.1} parent=0 // pred_check_branch
    %1072 = sbr.rel (0) target = $region29
  $region28: #{mahalanobis_metric_loss.1} parent=0 // pred_region
    _
  $region29: #{mahalanobis_metric_loss.1} parent=0 // pred_fallthru
    _
  // Predicated region
  $region30: #{mahalanobis_metric_loss.1} parent=0 // pred_check
    _
  $region31: #{mahalanobis_metric_loss.1} parent=0 // pred_check_branch
    %1074 = sbr.rel (0) target = $region33
  $region32: #{mahalanobis_metric_loss.1} parent=0 // pred_region
    _
  $region33: #{mahalanobis_metric_loss.1} parent=0 // pred_fallthru
    _

// kernel: body.12
$region0: #{body.12}
  #allocation0 [shape = 'u32[]', space=smem, size = 0x4, offset = 0x4, fixed_abs, tag = 'smem constant byte address 0x4 - core index']
  #allocation1 [shape = 'u32[72,128]{1,0:T(1,128)}', space=vmem, size = 0x9000, scoped, tag = 'internal scratch']
  %s0 = inlined_call_operand.vmem [shape: s32[1,16], index: 0, kind: input, shape index: {}]
  %s1 = inlined_call_operand.vmem [shape: f32[128,128], index: 1, kind: input, shape index: {}, may-alias: {1,2}]
  %s2 = inlined_call_operand.vmem [shape: f32[128,128], index: 2, kind: input, shape index: {}, may-alias: {1,2}]
  %s3 = inlined_call_operand.vmem [shape: f32[128,1], index: 3, kind: input, shape index: {}]
  %s4 = inlined_call_operand.vmem [shape: f32[1,128], index: 4, kind: input, shape index: {}]
  %s5 = inlined_call_operand.vmem [shape: s32[128,1], index: 5, kind: input, shape index: {}]
  %s6 = inlined_call_operand.vmem [shape: s32[1,128], index: 6, kind: input, shape index: {}]
  %s7 = inlined_call_operand.vmem [shape: f32[8,128], index: 7, kind: output, shape index: {}]
  %s8 = sld [smem:[#allocation0]]
  $region42: #{body.12} parent=0
    _
  %s10 = ssub.s32 1, %s8
  %s11 = scalar_select 0, %s10, %s8
  $region1: #{body.12} parent=0
    #allocation2 [shape = 'u8[512]{0}', space=smem, size = 0x200, scoped, tag = 'input window, operand 0, single buffered']
    #allocation3 [shape = 's32[1]{0}', space=sflag, size = 0x4, scoped, tag = 'scoped memory for body.12']
    %12 = vsyncpa [#allocation3], 0
    // Predicated region
    $region2: #{body.12} parent=1 // pred_check
      _
    $region3: #{body.12} parent=1 // pred_check_branch
      %14 = sbr.rel (0) target = $region5
    $region4: #{body.12} parent=1 // pred_region
      %16 = vsyncadd [#allocation3], 0
      %s18 = sshll.u32 %s0, 4
      %s19 = int_to_ptr.vmem [resolvable:$true] %s18
      %21 = dma.vmem_to_smem %s19, 16, [#allocation2], [#allocation3]
    $region5: #{body.12} parent=1 // pred_fallthru
      _
    // Predicated region
    $region6: #{body.12} parent=1 // pred_check
      _
    $region7: #{body.12} parent=1 // pred_check_branch
      %23 = sbr.rel (0) target = $region9
    $region8: #{body.12} parent=1 // pred_region
      _
    $region9: #{body.12} parent=1 // pred_fallthru
      _
    // Predicated region
    $region10: #{body.12} parent=1 // pred_check
      _
    $region11: #{body.12} parent=1 // pred_check_branch
      %25 = sbr.rel (0) target = $region13
    $region12: #{body.12} parent=1 // pred_region
      _
    $region13: #{body.12} parent=1 // pred_fallthru
      _
    // Predicated region
    $region14: #{body.12} parent=1 // pred_check
      _
    $region15: #{body.12} parent=1 // pred_check_branch
      %27 = sbr.rel (0) target = $region17
    $region16: #{body.12} parent=1 // pred_region
      _
    $region17: #{body.12} parent=1 // pred_fallthru
      _
    // Predicated region
    $region18: #{body.12} parent=1 // pred_check
      _
    $region19: #{body.12} parent=1 // pred_check_branch
      %29 = sbr.rel (0) target = $region21
    $region20: #{body.12} parent=1 // pred_region
      _
    $region21: #{body.12} parent=1 // pred_fallthru
      _
    // Predicated region
    $region22: #{body.12} parent=1 // pred_check
      _
    $region23: #{body.12} parent=1 // pred_check_branch
      %31 = sbr.rel (0) target = $region25
    $region24: #{body.12} parent=1 // pred_region
      _
    $region25: #{body.12} parent=1 // pred_fallthru
      _
    // Predicated region
    $region26: #{body.12} parent=1 // pred_check
      _
    $region27: #{body.12} parent=1 // pred_check_branch
      %33 = sbr.rel (0) target = $region29
    $region28: #{body.12} parent=1 // pred_region
      _
    $region29: #{body.12} parent=1 // pred_fallthru
      _
    // Predicated region
    $region30: #{body.12} parent=1 // pred_check
      _
    $region31: #{body.12} parent=1 // pred_check_branch
      %35 = sbr.rel (0) target = $region33
    $region32: #{body.12} parent=1 // pred_region
      %37 = dma.done [#allocation3], 16
    $region33: #{body.12} parent=1 // pred_fallthru
      _
    %38 = sfence
    %v39 = vld [vmem:[%s1] sm:$0xff]
    %v40 = vld [vmem:[%s1 + $0x8] sm:$0xff]
    %v41 = vld [vmem:[%s1 + $0x10] sm:$0xff]
    %v42 = vld [vmem:[%s1 + $0x18] sm:$0xff]
    %v43 = vld [vmem:[%s1 + $0x20] sm:$0xff]
    %v44 = vld [vmem:[%s1 + $0x28] sm:$0xff]
    %v45 = vld [vmem:[%s1 + $0x30] sm:$0xff]
    %v46 = vld [vmem:[%s1 + $0x38] sm:$0xff]
    %v47 = vld [vmem:[%s1 + $0x40] sm:$0xff]
    %v48 = vld [vmem:[%s1 + $0x48] sm:$0xff]
    %v49 = vld [vmem:[%s1 + $0x50] sm:$0xff]
    %v50 = vld [vmem:[%s1 + $0x58] sm:$0xff]
    %v51 = vld [vmem:[%s1 + $0x60] sm:$0xff]
    %v52 = vld [vmem:[%s1 + $0x68] sm:$0xff]
    %v53 = vld [vmem:[%s1 + $0x70] sm:$0xff]
    %v54 = vld [vmem:[%s1 + $0x78] sm:$0xff]
    %v55 = vld [vmem:[%s2] sm:$0xff]
    %v56 = vld [vmem:[%s2 + $0x8] sm:$0xff]
    %v57 = vld [vmem:[%s2 + $0x10] sm:$0xff]
    %v58 = vld [vmem:[%s2 + $0x18] sm:$0xff]
    %v59 = vld [vmem:[%s2 + $0x20] sm:$0xff]
    %v60 = vld [vmem:[%s2 + $0x28] sm:$0xff]
    %v61 = vld [vmem:[%s2 + $0x30] sm:$0xff]
    %v62 = vld [vmem:[%s2 + $0x38] sm:$0xff]
    %v63 = vld [vmem:[%s2 + $0x40] sm:$0xff]
    %v64 = vld [vmem:[%s2 + $0x48] sm:$0xff]
    %v65 = vld [vmem:[%s2 + $0x50] sm:$0xff]
    %v66 = vld [vmem:[%s2 + $0x58] sm:$0xff]
    %v67 = vld [vmem:[%s2 + $0x60] sm:$0xff]
    %v68 = vld [vmem:[%s2 + $0x68] sm:$0xff]
    %v69 = vld [vmem:[%s2 + $0x70] sm:$0xff]
    %v70 = vld [vmem:[%s2 + $0x78] sm:$0xff]
    %71 = vmatpush.xpose.msra.mxu0 %v70
    %72 = vmatpush.xpose.msra.mxu0 %v69
    %73 = vmatpush.xpose.msra.mxu0 %v68
    %74 = vmatpush.xpose.msra.mxu0 %v67
    %75 = vmatpush.xpose.msra.mxu0 %v66
    %76 = vmatpush.xpose.msra.mxu0 %v65
    %77 = vmatpush.xpose.msra.mxu0 %v64
    %78 = vmatpush.xpose.msra.mxu0 %v63
    %79 = vmatpush.xpose.msra.mxu0 %v62
    %80 = vmatpush.xpose.msra.mxu0 %v61
    %81 = vmatpush.xpose.msra.mxu0 %v60
    %82 = vmatpush.xpose.msra.mxu0 %v59
    %83 = vmatpush.xpose.msra.mxu0 %v58
    %84 = vmatpush.xpose.msra.mxu0 %v57
    %85 = vmatpush.xpose.msra.mxu0 %v56
    %86 = vmatpush.xpose.msra.mxu0 %v55
    %87 = vmatmul.f32.gmra.mxu0 %v39
    %v88 = vpop.f32.mrf.mxu0
    %v89 = vadd.f32 0.0, %v88
    %90 = vmatmul.f32.gmra.mxu0 %v40
    %v91 = vpop.f32.mrf.mxu0
    %v92 = vadd.f32 0.0, %v91
    %93 = vmatmul.f32.gmra.mxu0 %v41
    %v94 = vpop.f32.mrf.mxu0
    %v95 = vadd.f32 0.0, %v94
    %96 = vmatmul.f32.gmra.mxu0 %v42
    %v97 = vpop.f32.mrf.mxu0
    %v98 = vadd.f32 0.0, %v97
    %99 = vmatmul.f32.gmra.mxu0 %v43
    %v100 = vpop.f32.mrf.mxu0
    %v101 = vadd.f32 0.0, %v100
    %102 = vmatmul.f32.gmra.mxu0 %v44
    %v103 = vpop.f32.mrf.mxu0
    %v104 = vadd.f32 0.0, %v103
    %105 = vmatmul.f32.gmra.mxu0 %v45
    %v106 = vpop.f32.mrf.mxu0
    %v107 = vadd.f32 0.0, %v106
    %108 = vmatmul.f32.gmra.mxu0 %v46
    %v109 = vpop.f32.mrf.mxu0
    %v110 = vadd.f32 0.0, %v109
    %111 = vmatmul.f32.gmra.mxu0 %v47
    %v112 = vpop.f32.mrf.mxu0
    %v113 = vadd.f32 0.0, %v112
    %114 = vmatmul.f32.gmra.mxu0 %v48
    %v115 = vpop.f32.mrf.mxu0
    %v116 = vadd.f32 0.0, %v115
    %117 = vmatmul.f32.gmra.mxu0 %v49
    %v118 = vpop.f32.mrf.mxu0
    %v119 = vadd.f32 0.0, %v118
    %120 = vmatmul.f32.gmra.mxu0 %v50
    %v121 = vpop.f32.mrf.mxu0
    %v122 = vadd.f32 0.0, %v121
    %123 = vmatmul.f32.gmra.mxu0 %v51
    %v124 = vpop.f32.mrf.mxu0
    %v125 = vadd.f32 0.0, %v124
    %126 = vmatmul.f32.gmra.mxu0 %v52
    %v127 = vpop.f32.mrf.mxu0
    %v128 = vadd.f32 0.0, %v127
    %129 = vmatmul.f32.gmra.mxu0 %v53
    %v130 = vpop.f32.mrf.mxu0
    %v131 = vadd.f32 0.0, %v130
    %132 = vmatmul.f32.gmra.mxu0 %v54
    %v133 = vpop.f32.mrf.mxu0
    %v134 = vadd.f32 0.0, %v133
    %135 = vdwg.mxu0
    %v136 = vld [vmem:[%s3] sm:$0xff]
    %v137 = vld [vmem:[%s3 + $0x8] sm:$0xff]
    %v138 = vld [vmem:[%s3 + $0x10] sm:$0xff]
    %v139 = vld [vmem:[%s3 + $0x18] sm:$0xff]
    %v140 = vld [vmem:[%s3 + $0x20] sm:$0xff]
    %v141 = vld [vmem:[%s3 + $0x28] sm:$0xff]
    %v142 = vld [vmem:[%s3 + $0x30] sm:$0xff]
    %v143 = vld [vmem:[%s3 + $0x38] sm:$0xff]
    %v144 = vld [vmem:[%s3 + $0x40] sm:$0xff]
    %v145 = vld [vmem:[%s3 + $0x48] sm:$0xff]
    %v146 = vld [vmem:[%s3 + $0x50] sm:$0xff]
    %v147 = vld [vmem:[%s3 + $0x58] sm:$0xff]
    %v148 = vld [vmem:[%s3 + $0x60] sm:$0xff]
    %v149 = vld [vmem:[%s3 + $0x68] sm:$0xff]
    %v150 = vld [vmem:[%s3 + $0x70] sm:$0xff]
    %v151 = vld [vmem:[%s3 + $0x78] sm:$0xff]
    %v152 = vld [vmem:[%s4] sm:$0x1]
    %154 = vset.pattern.permute.xlu0 0
    %155 = vperm.xlu0 %154, %v136
    %v156 = vpop.permute.xlu0 %155
    %159 = vset.pattern.permute.xlu0 0
    %160 = vperm.xlu0 %159, %v137
    %v161 = vpop.permute.xlu0 %160
    %164 = vset.pattern.permute.xlu0 0
    %165 = vperm.xlu0 %164, %v138
    %v166 = vpop.permute.xlu0 %165
    %169 = vset.pattern.permute.xlu0 0
    %170 = vperm.xlu0 %169, %v139
    %v171 = vpop.permute.xlu0 %170
    %174 = vset.pattern.permute.xlu0 0
    %175 = vperm.xlu0 %174, %v140
    %v176 = vpop.permute.xlu0 %175
    %179 = vset.pattern.permute.xlu0 0
    %180 = vperm.xlu0 %179, %v141
    %v181 = vpop.permute.xlu0 %180
    %184 = vset.pattern.permute.xlu0 0
    %185 = vperm.xlu0 %184, %v142
    %v186 = vpop.permute.xlu0 %185
    %189 = vset.pattern.permute.xlu0 0
    %190 = vperm.xlu0 %189, %v143
    %v191 = vpop.permute.xlu0 %190
    %194 = vset.pattern.permute.xlu0 0
    %195 = vperm.xlu0 %194, %v144
    %v196 = vpop.permute.xlu0 %195
    %199 = vset.pattern.permute.xlu0 0
    %200 = vperm.xlu0 %199, %v145
    %v201 = vpop.permute.xlu0 %200
    %204 = vset.pattern.permute.xlu0 0
    %205 = vperm.xlu0 %204, %v146
    %v206 = vpop.permute.xlu0 %205
    %209 = vset.pattern.permute.xlu0 0
    %210 = vperm.xlu0 %209, %v147
    %v211 = vpop.permute.xlu0 %210
    %214 = vset.pattern.permute.xlu0 0
    %215 = vperm.xlu0 %214, %v148
    %v216 = vpop.permute.xlu0 %215
    %219 = vset.pattern.permute.xlu0 0
    %220 = vperm.xlu0 %219, %v149
    %v221 = vpop.permute.xlu0 %220
    %224 = vset.pattern.permute.xlu0 0
    %225 = vperm.xlu0 %224, %v150
    %v226 = vpop.permute.xlu0 %225
    %229 = vset.pattern.permute.xlu0 0
    %230 = vperm.xlu0 %229, %v151
    %v231 = vpop.permute.xlu0 %230
    %v234 = vperm.slane %v152, 0
    %v236 = vadd.f32 %v156, %v234
    %v237 = vadd.f32 %v161, %v234
    %v238 = vadd.f32 %v166, %v234
    %v239 = vadd.f32 %v171, %v234
    %v240 = vadd.f32 %v176, %v234
    %v241 = vadd.f32 %v181, %v234
    %v242 = vadd.f32 %v186, %v234
    %v243 = vadd.f32 %v191, %v234
    %v244 = vadd.f32 %v196, %v234
    %v245 = vadd.f32 %v201, %v234
    %v246 = vadd.f32 %v206, %v234
    %v247 = vadd.f32 %v211, %v234
    %v248 = vadd.f32 %v216, %v234
    %v249 = vadd.f32 %v221, %v234
    %v250 = vadd.f32 %v226, %v234
    %v251 = vadd.f32 %v231, %v234
    %v252 = vmul.f32 %v89, 2.0
    %v253 = vmul.f32 %v92, 2.0
    %v254 = vmul.f32 %v95, 2.0
    %v255 = vmul.f32 %v98, 2.0
    %v256 = vmul.f32 %v101, 2.0
    %v257 = vmul.f32 %v104, 2.0
    %v258 = vmul.f32 %v107, 2.0
    %v259 = vmul.f32 %v110, 2.0
    %v260 = vmul.f32 %v113, 2.0
    %v261 = vmul.f32 %v116, 2.0
    %v262 = vmul.f32 %v119, 2.0
    %v263 = vmul.f32 %v122, 2.0
    %v264 = vmul.f32 %v125, 2.0
    %v265 = vmul.f32 %v128, 2.0
    %v266 = vmul.f32 %v131, 2.0
    %v267 = vmul.f32 %v134, 2.0
    %v268 = vsub.f32 %v236, %v252
    %v269 = vsub.f32 %v237, %v253
    %v270 = vsub.f32 %v238, %v254
    %v271 = vsub.f32 %v239, %v255
    %v272 = vsub.f32 %v240, %v256
    %v273 = vsub.f32 %v241, %v257
    %v274 = vsub.f32 %v242, %v258
    %v275 = vsub.f32 %v243, %v259
    %v276 = vsub.f32 %v244, %v260
    %v277 = vsub.f32 %v245, %v261
    %v278 = vsub.f32 %v246, %v262
    %v279 = vsub.f32 %v247, %v263
    %v280 = vsub.f32 %v248, %v264
    %v281 = vsub.f32 %v249, %v265
    %v282 = vsub.f32 %v250, %v266
    %v283 = vsub.f32 %v251, %v267
    %v284 = vmax.f32 %v268, 0.0
    %v285 = vmax.f32 %v269, 0.0
    %v286 = vmax.f32 %v270, 0.0
    %v287 = vmax.f32 %v271, 0.0
    %v288 = vmax.f32 %v272, 0.0
    %v289 = vmax.f32 %v273, 0.0
    %v290 = vmax.f32 %v274, 0.0
    %v291 = vmax.f32 %v275, 0.0
    %v292 = vmax.f32 %v276, 0.0
    %v293 = vmax.f32 %v277, 0.0
    %v294 = vmax.f32 %v278, 0.0
    %v295 = vmax.f32 %v279, 0.0
    %v296 = vmax.f32 %v280, 0.0
    %v297 = vmax.f32 %v281, 0.0
    %v298 = vmax.f32 %v282, 0.0
    %v299 = vmax.f32 %v283, 0.0
    %v300 = vrsqrt.pop %v284
    %v301 = vmul.f32 %v300, %v284
    %v302 = vmul.f32 %v301, %v300
    %v303 = vmul.f32 0.5, %v302
    %v304 = vsub.f32 1.5, %v303
    %v305 = vmul.f32 %v300, %v304
    %v306 = vmul.f32 %v284, %v305
    %vm307 = vcmp.eq.f32.partialorder %v284, inf
    %v308 = vsel %vm307, %v284, %v306
    %vm309 = vcmp.eq.f32.partialorder %v284, 0.0
    %v310 = vand.u32 %v284, 2147483648
    %v311 = vsel %vm309, %v310, %v308
    %v312 = vrsqrt.pop %v285
    %v313 = vmul.f32 %v312, %v285
    %v314 = vmul.f32 %v313, %v312
    %v315 = vmul.f32 0.5, %v314
    %v316 = vsub.f32 1.5, %v315
    %v317 = vmul.f32 %v312, %v316
    %v318 = vmul.f32 %v285, %v317
    %vm319 = vcmp.eq.f32.partialorder %v285, inf
    %v320 = vsel %vm319, %v285, %v318
    %vm321 = vcmp.eq.f32.partialorder %v285, 0.0
    %v322 = vand.u32 %v285, 2147483648
    %v323 = vsel %vm321, %v322, %v320
    %v324 = vrsqrt.pop %v286
    %v325 = vmul.f32 %v324, %v286
    %v326 = vmul.f32 %v325, %v324
    %v327 = vmul.f32 0.5, %v326
    %v328 = vsub.f32 1.5, %v327
    %v329 = vmul.f32 %v324, %v328
    %v330 = vmul.f32 %v286, %v329
    %vm331 = vcmp.eq.f32.partialorder %v286, inf
    %v332 = vsel %vm331, %v286, %v330
    %vm333 = vcmp.eq.f32.partialorder %v286, 0.0
    %v334 = vand.u32 %v286, 2147483648
    %v335 = vsel %vm333, %v334, %v332
    %v336 = vrsqrt.pop %v287
    %v337 = vmul.f32 %v336, %v287
    %v338 = vmul.f32 %v337, %v336
    %v339 = vmul.f32 0.5, %v338
    %v340 = vsub.f32 1.5, %v339
    %v341 = vmul.f32 %v336, %v340
    %v342 = vmul.f32 %v287, %v341
    %vm343 = vcmp.eq.f32.partialorder %v287, inf
    %v344 = vsel %vm343, %v287, %v342
    %vm345 = vcmp.eq.f32.partialorder %v287, 0.0
    %v346 = vand.u32 %v287, 2147483648
    %v347 = vsel %vm345, %v346, %v344
    %v348 = vrsqrt.pop %v288
    %v349 = vmul.f32 %v348, %v288
    %v350 = vmul.f32 %v349, %v348
    %v351 = vmul.f32 0.5, %v350
    %v352 = vsub.f32 1.5, %v351
    %v353 = vmul.f32 %v348, %v352
    %v354 = vmul.f32 %v288, %v353
    %vm355 = vcmp.eq.f32.partialorder %v288, inf
    %v356 = vsel %vm355, %v288, %v354
    %vm357 = vcmp.eq.f32.partialorder %v288, 0.0
    %v358 = vand.u32 %v288, 2147483648
    %v359 = vsel %vm357, %v358, %v356
    %v360 = vrsqrt.pop %v289
    %v361 = vmul.f32 %v360, %v289
    %v362 = vmul.f32 %v361, %v360
    %v363 = vmul.f32 0.5, %v362
    %v364 = vsub.f32 1.5, %v363
    %v365 = vmul.f32 %v360, %v364
    %v366 = vmul.f32 %v289, %v365
    %vm367 = vcmp.eq.f32.partialorder %v289, inf
    %v368 = vsel %vm367, %v289, %v366
    %vm369 = vcmp.eq.f32.partialorder %v289, 0.0
    %v370 = vand.u32 %v289, 2147483648
    %v371 = vsel %vm369, %v370, %v368
    %v372 = vrsqrt.pop %v290
    %v373 = vmul.f32 %v372, %v290
    %v374 = vmul.f32 %v373, %v372
    %v375 = vmul.f32 0.5, %v374
    %v376 = vsub.f32 1.5, %v375
    %v377 = vmul.f32 %v372, %v376
    %v378 = vmul.f32 %v290, %v377
    %vm379 = vcmp.eq.f32.partialorder %v290, inf
    %v380 = vsel %vm379, %v290, %v378
    %vm381 = vcmp.eq.f32.partialorder %v290, 0.0
    %v382 = vand.u32 %v290, 2147483648
    %v383 = vsel %vm381, %v382, %v380
    %v384 = vrsqrt.pop %v291
    %v385 = vmul.f32 %v384, %v291
    %v386 = vmul.f32 %v385, %v384
    %v387 = vmul.f32 0.5, %v386
    %v388 = vsub.f32 1.5, %v387
    %v389 = vmul.f32 %v384, %v388
    %v390 = vmul.f32 %v291, %v389
    %vm391 = vcmp.eq.f32.partialorder %v291, inf
    %v392 = vsel %vm391, %v291, %v390
    %vm393 = vcmp.eq.f32.partialorder %v291, 0.0
    %v394 = vand.u32 %v291, 2147483648
    %v395 = vsel %vm393, %v394, %v392
    %v396 = vrsqrt.pop %v292
    %v397 = vmul.f32 %v396, %v292
    %v398 = vmul.f32 %v397, %v396
    %v399 = vmul.f32 0.5, %v398
    %v400 = vsub.f32 1.5, %v399
    %v401 = vmul.f32 %v396, %v400
    %v402 = vmul.f32 %v292, %v401
    %vm403 = vcmp.eq.f32.partialorder %v292, inf
    %v404 = vsel %vm403, %v292, %v402
    %vm405 = vcmp.eq.f32.partialorder %v292, 0.0
    %v406 = vand.u32 %v292, 2147483648
    %v407 = vsel %vm405, %v406, %v404
    %v408 = vrsqrt.pop %v293
    %v409 = vmul.f32 %v408, %v293
    %v410 = vmul.f32 %v409, %v408
    %v411 = vmul.f32 0.5, %v410
    %v412 = vsub.f32 1.5, %v411
    %v413 = vmul.f32 %v408, %v412
    %v414 = vmul.f32 %v293, %v413
    %vm415 = vcmp.eq.f32.partialorder %v293, inf
    %v416 = vsel %vm415, %v293, %v414
    %vm417 = vcmp.eq.f32.partialorder %v293, 0.0
    %v418 = vand.u32 %v293, 2147483648
    %v419 = vsel %vm417, %v418, %v416
    %v420 = vrsqrt.pop %v294
    %v421 = vmul.f32 %v420, %v294
    %v422 = vmul.f32 %v421, %v420
    %v423 = vmul.f32 0.5, %v422
    %v424 = vsub.f32 1.5, %v423
    %v425 = vmul.f32 %v420, %v424
    %v426 = vmul.f32 %v294, %v425
    %vm427 = vcmp.eq.f32.partialorder %v294, inf
    %v428 = vsel %vm427, %v294, %v426
    %vm429 = vcmp.eq.f32.partialorder %v294, 0.0
    %v430 = vand.u32 %v294, 2147483648
    %v431 = vsel %vm429, %v430, %v428
    %v432 = vrsqrt.pop %v295
    %v433 = vmul.f32 %v432, %v295
    %v434 = vmul.f32 %v433, %v432
    %v435 = vmul.f32 0.5, %v434
    %v436 = vsub.f32 1.5, %v435
    %v437 = vmul.f32 %v432, %v436
    %v438 = vmul.f32 %v295, %v437
    %vm439 = vcmp.eq.f32.partialorder %v295, inf
    %v440 = vsel %vm439, %v295, %v438
    %vm441 = vcmp.eq.f32.partialorder %v295, 0.0
    %v442 = vand.u32 %v295, 2147483648
    %v443 = vsel %vm441, %v442, %v440
    %v444 = vrsqrt.pop %v296
    %v445 = vmul.f32 %v444, %v296
    %v446 = vmul.f32 %v445, %v444
    %v447 = vmul.f32 0.5, %v446
    %v448 = vsub.f32 1.5, %v447
    %v449 = vmul.f32 %v444, %v448
    %v450 = vmul.f32 %v296, %v449
    %vm451 = vcmp.eq.f32.partialorder %v296, inf
    %v452 = vsel %vm451, %v296, %v450
    %vm453 = vcmp.eq.f32.partialorder %v296, 0.0
    %v454 = vand.u32 %v296, 2147483648
    %v455 = vsel %vm453, %v454, %v452
    %v456 = vrsqrt.pop %v297
    %v457 = vmul.f32 %v456, %v297
    %v458 = vmul.f32 %v457, %v456
    %v459 = vmul.f32 0.5, %v458
    %v460 = vsub.f32 1.5, %v459
    %v461 = vmul.f32 %v456, %v460
    %v462 = vmul.f32 %v297, %v461
    %vm463 = vcmp.eq.f32.partialorder %v297, inf
    %v464 = vsel %vm463, %v297, %v462
    %vm465 = vcmp.eq.f32.partialorder %v297, 0.0
    %v466 = vand.u32 %v297, 2147483648
    %v467 = vsel %vm465, %v466, %v464
    %v468 = vrsqrt.pop %v298
    %v469 = vmul.f32 %v468, %v298
    %v470 = vmul.f32 %v469, %v468
    %v471 = vmul.f32 0.5, %v470
    %v472 = vsub.f32 1.5, %v471
    %v473 = vmul.f32 %v468, %v472
    %v474 = vmul.f32 %v298, %v473
    %vm475 = vcmp.eq.f32.partialorder %v298, inf
    %v476 = vsel %vm475, %v298, %v474
    %vm477 = vcmp.eq.f32.partialorder %v298, 0.0
    %v478 = vand.u32 %v298, 2147483648
    %v479 = vsel %vm477, %v478, %v476
    %v480 = vrsqrt.pop %v299
    %v481 = vmul.f32 %v480, %v299
    %v482 = vmul.f32 %v481, %v480
    %v483 = vmul.f32 0.5, %v482
    %v484 = vsub.f32 1.5, %v483
    %v485 = vmul.f32 %v480, %v484
    %v486 = vmul.f32 %v299, %v485
    %vm487 = vcmp.eq.f32.partialorder %v299, inf
    %v488 = vsel %vm487, %v299, %v486
    %vm489 = vcmp.eq.f32.partialorder %v299, 0.0
    %v490 = vand.u32 %v299, 2147483648
    %v491 = vsel %vm489, %v490, %v488
    %v492 = vld [vmem:[%s5] sm:$0xff]
    %v493 = vld [vmem:[%s5 + $0x8] sm:$0xff]
    %v494 = vld [vmem:[%s5 + $0x10] sm:$0xff]
    %v495 = vld [vmem:[%s5 + $0x18] sm:$0xff]
    %v496 = vld [vmem:[%s5 + $0x20] sm:$0xff]
    %v497 = vld [vmem:[%s5 + $0x28] sm:$0xff]
    %v498 = vld [vmem:[%s5 + $0x30] sm:$0xff]
    %v499 = vld [vmem:[%s5 + $0x38] sm:$0xff]
    %v500 = vld [vmem:[%s5 + $0x40] sm:$0xff]
    %v501 = vld [vmem:[%s5 + $0x48] sm:$0xff]
    %v502 = vld [vmem:[%s5 + $0x50] sm:$0xff]
    %v503 = vld [vmem:[%s5 + $0x58] sm:$0xff]
    %v504 = vld [vmem:[%s5 + $0x60] sm:$0xff]
    %v505 = vld [vmem:[%s5 + $0x68] sm:$0xff]
    %v506 = vld [vmem:[%s5 + $0x70] sm:$0xff]
    %v507 = vld [vmem:[%s5 + $0x78] sm:$0xff]
    %v508 = vld [vmem:[%s6] sm:$0x1]
    %509 = vset.pattern.permute.xlu0 0
    %510 = vperm.xlu0 %509, %v492
    %v511 = vpop.permute.xlu0 %510
    %512 = vset.pattern.permute.xlu0 0
    %513 = vperm.xlu0 %512, %v493
    %v514 = vpop.permute.xlu0 %513
    %515 = vset.pattern.permute.xlu0 0
    %516 = vperm.xlu0 %515, %v494
    %v517 = vpop.permute.xlu0 %516
    %518 = vset.pattern.permute.xlu0 0
    %519 = vperm.xlu0 %518, %v495
    %v520 = vpop.permute.xlu0 %519
    %521 = vset.pattern.permute.xlu0 0
    %522 = vperm.xlu0 %521, %v496
    %v523 = vpop.permute.xlu0 %522
    %524 = vset.pattern.permute.xlu0 0
    %525 = vperm.xlu0 %524, %v497
    %v526 = vpop.permute.xlu0 %525
    %527 = vset.pattern.permute.xlu0 0
    %528 = vperm.xlu0 %527, %v498
    %v529 = vpop.permute.xlu0 %528
    %530 = vset.pattern.permute.xlu0 0
    %531 = vperm.xlu0 %530, %v499
    %v532 = vpop.permute.xlu0 %531
    %533 = vset.pattern.permute.xlu0 0
    %534 = vperm.xlu0 %533, %v500
    %v535 = vpop.permute.xlu0 %534
    %536 = vset.pattern.permute.xlu0 0
    %537 = vperm.xlu0 %536, %v501
    %v538 = vpop.permute.xlu0 %537
    %539 = vset.pattern.permute.xlu0 0
    %540 = vperm.xlu0 %539, %v502
    %v541 = vpop.permute.xlu0 %540
    %542 = vset.pattern.permute.xlu0 0
    %543 = vperm.xlu0 %542, %v503
    %v544 = vpop.permute.xlu0 %543
    %545 = vset.pattern.permute.xlu0 0
    %546 = vperm.xlu0 %545, %v504
    %v547 = vpop.permute.xlu0 %546
    %548 = vset.pattern.permute.xlu0 0
    %549 = vperm.xlu0 %548, %v505
    %v550 = vpop.permute.xlu0 %549
    %551 = vset.pattern.permute.xlu0 0
    %552 = vperm.xlu0 %551, %v506
    %v553 = vpop.permute.xlu0 %552
    %554 = vset.pattern.permute.xlu0 0
    %555 = vperm.xlu0 %554, %v507
    %v556 = vpop.permute.xlu0 %555
    %v557 = vperm.slane %v508, 0
    %vm558 = vcmp.eq.s32.totalorder %v511, %v557
    %vm559 = vcmp.eq.s32.totalorder %v514, %v557
    %vm560 = vcmp.eq.s32.totalorder %v517, %v557
    %vm561 = vcmp.eq.s32.totalorder %v520, %v557
    %vm562 = vcmp.eq.s32.totalorder %v523, %v557
    %vm563 = vcmp.eq.s32.totalorder %v526, %v557
    %vm564 = vcmp.eq.s32.totalorder %v529, %v557
    %vm565 = vcmp.eq.s32.totalorder %v532, %v557
    %vm566 = vcmp.eq.s32.totalorder %v535, %v557
    %vm567 = vcmp.eq.s32.totalorder %v538, %v557
    %vm568 = vcmp.eq.s32.totalorder %v541, %v557
    %vm569 = vcmp.eq.s32.totalorder %v544, %v557
    %vm570 = vcmp.eq.s32.totalorder %v547, %v557
    %vm571 = vcmp.eq.s32.totalorder %v550, %v557
    %vm572 = vcmp.eq.s32.totalorder %v553, %v557
    %vm573 = vcmp.eq.s32.totalorder %v556, %v557
    %s574 = smul.u32 0, 128
    %v575 = vlaneseq
    %v576 = vshrl.u32 %v575, 7
    %v577 = vadd.s32 %v576, 8
    %v578 = vadd.s32 %v576, 16
    %v579 = vadd.s32 %v576, 24
    %v580 = vadd.s32 %v576, 32
    %v581 = vadd.s32 %v576, 40
    %v582 = vadd.s32 %v576, 48
    %v583 = vadd.s32 %v576, 56
    %v584 = vadd.s32 %v576, 64
    %v585 = vadd.s32 %v576, 72
    %v586 = vadd.s32 %v576, 80
    %v587 = vadd.s32 %v576, 88
    %v588 = vadd.s32 %v576, 96
    %v589 = vadd.s32 %v576, 104
    %v590 = vadd.s32 %v576, 112
    %v591 = vadd.s32 %v576, 120
    %v592 = vstv %s574
    %v593 = vadd.s32 %v592, %v576
    %v594 = vadd.s32 %v592, %v577
    %v595 = vadd.s32 %v592, %v578
    %v596 = vadd.s32 %v592, %v579
    %v597 = vadd.s32 %v592, %v580
    %v598 = vadd.s32 %v592, %v581
    %v599 = vadd.s32 %v592, %v582
    %v600 = vadd.s32 %v592, %v583
    %v601 = vadd.s32 %v592, %v584
    %v602 = vadd.s32 %v592, %v585
    %v603 = vadd.s32 %v592, %v586
    %v604 = vadd.s32 %v592, %v587
    %v605 = vadd.s32 %v592, %v588
    %v606 = vadd.s32 %v592, %v589
    %v607 = vadd.s32 %v592, %v590
    %v608 = vadd.s32 %v592, %v591
    %s609 = smul.u32 0, 128
    %v610 = vlaneseq
    %v611 = vand.u32 %v610, 127
    %v612 = vstv %s609
    %v613 = vadd.s32 %v612, %v611
    %vm614 = vcmp.lt.s32.totalorder %v593, 8
    %vm615 = vcmp.lt.s32.totalorder %v594, 8
    %vm616 = vcmp.lt.s32.totalorder %v595, 8
    %vm617 = vcmp.lt.s32.totalorder %v596, 8
    %vm618 = vcmp.lt.s32.totalorder %v597, 8
    %vm619 = vcmp.lt.s32.totalorder %v598, 8
    %vm620 = vcmp.lt.s32.totalorder %v599, 8
    %vm621 = vcmp.lt.s32.totalorder %v600, 8
    %vm622 = vcmp.lt.s32.totalorder %v601, 8
    %vm623 = vcmp.lt.s32.totalorder %v602, 8
    %vm624 = vcmp.lt.s32.totalorder %v603, 8
    %vm625 = vcmp.lt.s32.totalorder %v604, 8
    %vm626 = vcmp.lt.s32.totalorder %v605, 8
    %vm627 = vcmp.lt.s32.totalorder %v606, 8
    %vm628 = vcmp.lt.s32.totalorder %v607, 8
    %vm629 = vcmp.lt.s32.totalorder %v608, 8
    %vm630 = vcmp.lt.s32.totalorder %v613, 8
    %vm631 = vmand %vm614, %vm630
    %vm632 = vmand %vm615, %vm630
    %vm633 = vmand %vm616, %vm630
    %vm634 = vmand %vm617, %vm630
    %vm635 = vmand %vm618, %vm630
    %vm636 = vmand %vm619, %vm630
    %vm637 = vmand %vm620, %vm630
    %vm638 = vmand %vm621, %vm630
    %vm639 = vmand %vm622, %vm630
    %vm640 = vmand %vm623, %vm630
    %vm641 = vmand %vm624, %vm630
    %vm642 = vmand %vm625, %vm630
    %vm643 = vmand %vm626, %vm630
    %vm644 = vmand %vm627, %vm630
    %vm645 = vmand %vm628, %vm630
    %vm646 = vmand %vm629, %vm630
    %vm647 = vmxor %vm558, 1
    %vm648 = vmxor %vm559, 1
    %vm649 = vmxor %vm560, 1
    %vm650 = vmxor %vm561, 1
    %vm651 = vmxor %vm562, 1
    %vm652 = vmxor %vm563, 1
    %vm653 = vmxor %vm564, 1
    %vm654 = vmxor %vm565, 1
    %vm655 = vmxor %vm566, 1
    %vm656 = vmxor %vm567, 1
    %vm657 = vmxor %vm568, 1
    %vm658 = vmxor %vm569, 1
    %vm659 = vmxor %vm570, 1
    %vm660 = vmxor %vm571, 1
    %vm661 = vmxor %vm572, 1
    %vm662 = vmxor %vm573, 1
    %vm663 = vmand %vm631, %vm647
    %vm664 = vmand %vm632, %vm648
    %vm665 = vmand %vm633, %vm649
    %vm666 = vmand %vm634, %vm650
    %vm667 = vmand %vm635, %vm651
    %vm668 = vmand %vm636, %vm652
    %vm669 = vmand %vm637, %vm653
    %vm670 = vmand %vm638, %vm654
    %vm671 = vmand %vm639, %vm655
    %vm672 = vmand %vm640, %vm656
    %vm673 = vmand %vm641, %vm657
    %vm674 = vmand %vm642, %vm658
    %vm675 = vmand %vm643, %vm659
    %vm676 = vmand %vm644, %vm660
    %vm677 = vmand %vm645, %vm661
    %vm678 = vmand %vm646, %vm662
    %v695 = vsel %vm663, %v311, 2139095040
    %v696 = vsel %vm664, %v323, 2139095040
    %v697 = vsel %vm665, %v335, 2139095040
    %v698 = vsel %vm666, %v347, 2139095040
    %v699 = vsel %vm667, %v359, 2139095040
    %v700 = vsel %vm668, %v371, 2139095040
    %v701 = vsel %vm669, %v383, 2139095040
    %v702 = vsel %vm670, %v395, 2139095040
    %v703 = vsel %vm671, %v407, 2139095040
    %v704 = vsel %vm672, %v419, 2139095040
    %v705 = vsel %vm673, %v431, 2139095040
    %v706 = vsel %vm674, %v443, 2139095040
    %v707 = vsel %vm675, %v455, 2139095040
    %v708 = vsel %vm676, %v467, 2139095040
    %v709 = vsel %vm677, %v479, 2139095040
    %v710 = vsel %vm678, %v491, 2139095040
    %s711 = sld [smem:[#allocation2]]
    %v712 = vstv %s711
    %vm713 = vcmp.ge.s32.totalorder %v695, %v712
    %vm714 = vcmp.ge.s32.totalorder %v696, %v712
    %vm715 = vcmp.ge.s32.totalorder %v697, %v712
    %vm716 = vcmp.ge.s32.totalorder %v698, %v712
    %vm717 = vcmp.ge.s32.totalorder %v699, %v712
    %vm718 = vcmp.ge.s32.totalorder %v700, %v712
    %vm719 = vcmp.ge.s32.totalorder %v701, %v712
    %vm720 = vcmp.ge.s32.totalorder %v702, %v712
    %vm721 = vcmp.ge.s32.totalorder %v703, %v712
    %vm722 = vcmp.ge.s32.totalorder %v704, %v712
    %vm723 = vcmp.ge.s32.totalorder %v705, %v712
    %vm724 = vcmp.ge.s32.totalorder %v706, %v712
    %vm725 = vcmp.ge.s32.totalorder %v707, %v712
    %vm726 = vcmp.ge.s32.totalorder %v708, %v712
    %vm727 = vcmp.ge.s32.totalorder %v709, %v712
    %vm728 = vcmp.ge.s32.totalorder %v710, %v712
    %s729 = sld [smem:[#allocation2 + $0x1]]
    %v730 = vstv %s729
    %vm731 = vcmp.le.s32.totalorder %v695, %v730
    %vm732 = vcmp.le.s32.totalorder %v696, %v730
    %vm733 = vcmp.le.s32.totalorder %v697, %v730
    %vm734 = vcmp.le.s32.totalorder %v698, %v730
    %vm735 = vcmp.le.s32.totalorder %v699, %v730
    %vm736 = vcmp.le.s32.totalorder %v700, %v730
    %vm737 = vcmp.le.s32.totalorder %v701, %v730
    %vm738 = vcmp.le.s32.totalorder %v702, %v730
    %vm739 = vcmp.le.s32.totalorder %v703, %v730
    %vm740 = vcmp.le.s32.totalorder %v704, %v730
    %vm741 = vcmp.le.s32.totalorder %v705, %v730
    %vm742 = vcmp.le.s32.totalorder %v706, %v730
    %vm743 = vcmp.le.s32.totalorder %v707, %v730
    %vm744 = vcmp.le.s32.totalorder %v708, %v730
    %vm745 = vcmp.le.s32.totalorder %v709, %v730
    %vm746 = vcmp.le.s32.totalorder %v710, %v730
    %vm747 = vmand %vm713, %vm731
    %vm748 = vmand %vm714, %vm732
    %vm749 = vmand %vm715, %vm733
    %vm750 = vmand %vm716, %vm734
    %vm751 = vmand %vm717, %vm735
    %vm752 = vmand %vm718, %vm736
    %vm753 = vmand %vm719, %vm737
    %vm754 = vmand %vm720, %vm738
    %vm755 = vmand %vm721, %vm739
    %vm756 = vmand %vm722, %vm740
    %vm757 = vmand %vm723, %vm741
    %vm758 = vmand %vm724, %vm742
    %vm759 = vmand %vm725, %vm743
    %vm760 = vmand %vm726, %vm744
    %vm761 = vmand %vm727, %vm745
    %vm762 = vmand %vm728, %vm746
    %v763 = vsel %vm747, 1, 0
    %v764 = vsel %vm748, 1, 0
    %v765 = vsel %vm749, 1, 0
    %v766 = vsel %vm750, 1, 0
    %v767 = vsel %vm751, 1, 0
    %v768 = vsel %vm752, 1, 0
    %v769 = vsel %vm753, 1, 0
    %v770 = vsel %vm754, 1, 0
    %v771 = vsel %vm755, 1, 0
    %v772 = vsel %vm756, 1, 0
    %v773 = vsel %vm757, 1, 0
    %v774 = vsel %vm758, 1, 0
    %v775 = vsel %vm759, 1, 0
    %v776 = vsel %vm760, 1, 0
    %v777 = vsel %vm761, 1, 0
    %v778 = vsel %vm762, 1, 0
    %v779 = vcvt.s32.f32 %v763
    %v780 = vcvt.s32.f32 %v764
    %v781 = vcvt.s32.f32 %v765
    %v782 = vcvt.s32.f32 %v766
    %v783 = vcvt.s32.f32 %v767
    %v784 = vcvt.s32.f32 %v768
    %v785 = vcvt.s32.f32 %v769
    %v786 = vcvt.s32.f32 %v770
    %v787 = vcvt.s32.f32 %v771
    %v788 = vcvt.s32.f32 %v772
    %v789 = vcvt.s32.f32 %v773
    %v790 = vcvt.s32.f32 %v774
    %v791 = vcvt.s32.f32 %v775
    %v792 = vcvt.s32.f32 %v776
    %v793 = vcvt.s32.f32 %v777
    %v794 = vcvt.s32.f32 %v778
    %v795 = vadd.f32 %v779, %v780
    %v796 = vadd.f32 %v795, %v781
    %v797 = vadd.f32 %v796, %v782
    %v798 = vadd.f32 %v797, %v783
    %v799 = vadd.f32 %v798, %v784
    %v800 = vadd.f32 %v799, %v785
    %v801 = vadd.f32 %v800, %v786
    %v802 = vadd.f32 %v801, %v787
    %v803 = vadd.f32 %v802, %v788
    %v804 = vadd.f32 %v803, %v789
    %v805 = vadd.f32 %v804, %v790
    %v806 = vadd.f32 %v805, %v791
    %v807 = vadd.f32 %v806, %v792
    %v808 = vadd.f32 %v807, %v793
    %v809 = vadd.f32 %v808, %v794
    %810 = vadd.xlane.f32.xlu0 %v809
    %v811 = vpop.xlane.xlu0 %810
    %v812 = vrot.slane %v811, 4
    %v813 = vadd.f32 %v811, %v812
    %v814 = vrot.slane %v813, 2
    %v815 = vadd.f32 %v813, %v814
    %v816 = vrot.slane %v815, 1
    %v817 = vadd.f32 %v815, %v816
    %s818 = vtos %v817
    %s819 = sld [smem:[#allocation2 + $0x2]]
    %v820 = vstv %s819
    %vm821 = vcmp.le.s32.totalorder %v695, %v820
    %vm822 = vcmp.le.s32.totalorder %v696, %v820
    %vm823 = vcmp.le.s32.totalorder %v697, %v820
    %vm824 = vcmp.le.s32.totalorder %v698, %v820
    %vm825 = vcmp.le.s32.totalorder %v699, %v820
    %vm826 = vcmp.le.s32.totalorder %v700, %v820
    %vm827 = vcmp.le.s32.totalorder %v701, %v820
    %vm828 = vcmp.le.s32.totalorder %v702, %v820
    %vm829 = vcmp.le.s32.totalorder %v703, %v820
    %vm830 = vcmp.le.s32.totalorder %v704, %v820
    %vm831 = vcmp.le.s32.totalorder %v705, %v820
    %vm832 = vcmp.le.s32.totalorder %v706, %v820
    %vm833 = vcmp.le.s32.totalorder %v707, %v820
    %vm834 = vcmp.le.s32.totalorder %v708, %v820
    %vm835 = vcmp.le.s32.totalorder %v709, %v820
    %vm836 = vcmp.le.s32.totalorder %v710, %v820
    %vm837 = vmand %vm713, %vm821
    %vm838 = vmand %vm714, %vm822
    %vm839 = vmand %vm715, %vm823
    %vm840 = vmand %vm716, %vm824
    %vm841 = vmand %vm717, %vm825
    %vm842 = vmand %vm718, %vm826
    %vm843 = vmand %vm719, %vm827
    %vm844 = vmand %vm720, %vm828
    %vm845 = vmand %vm721, %vm829
    %vm846 = vmand %vm722, %vm830
    %vm847 = vmand %vm723, %vm831
    %vm848 = vmand %vm724, %vm832
    %vm849 = vmand %vm725, %vm833
    %vm850 = vmand %vm726, %vm834
    %vm851 = vmand %vm727, %vm835
    %vm852 = vmand %vm728, %vm836
    %v853 = vsel %vm837, 1, 0
    %v854 = vsel %vm838, 1, 0
    %v855 = vsel %vm839, 1, 0
    %v856 = vsel %vm840, 1, 0
    %v857 = vsel %vm841, 1, 0
    %v858 = vsel %vm842, 1, 0
    %v859 = vsel %vm843, 1, 0
    %v860 = vsel %vm844, 1, 0
    %v861 = vsel %vm845, 1, 0
    %v862 = vsel %vm846, 1, 0
    %v863 = vsel %vm847, 1, 0
    %v864 = vsel %vm848, 1, 0
    %v865 = vsel %vm849, 1, 0
    %v866 = vsel %vm850, 1, 0
    %v867 = vsel %vm851, 1, 0
    %v868 = vsel %vm852, 1, 0
    %v869 = vcvt.s32.f32 %v853
    %v870 = vcvt.s32.f32 %v854
    %v871 = vcvt.s32.f32 %v855
    %v872 = vcvt.s32.f32 %v856
    %v873 = vcvt.s32.f32 %v857
    %v874 = vcvt.s32.f32 %v858
    %v875 = vcvt.s32.f32 %v859
    %v876 = vcvt.s32.f32 %v860
    %v877 = vcvt.s32.f32 %v861
    %v878 = vcvt.s32.f32 %v862
    %v879 = vcvt.s32.f32 %v863
    %v880 = vcvt.s32.f32 %v864
    %v881 = vcvt.s32.f32 %v865
    %v882 = vcvt.s32.f32 %v866
    %v883 = vcvt.s32.f32 %v867
    %v884 = vcvt.s32.f32 %v868
    %v885 = vadd.f32 %v869, %v870
    %v886 = vadd.f32 %v885, %v871
    %v887 = vadd.f32 %v886, %v872
    %v888 = vadd.f32 %v887, %v873
    %v889 = vadd.f32 %v888, %v874
    %v890 = vadd.f32 %v889, %v875
    %v891 = vadd.f32 %v890, %v876
    %v892 = vadd.f32 %v891, %v877
    %v893 = vadd.f32 %v892, %v878
    %v894 = vadd.f32 %v893, %v879
    %v895 = vadd.f32 %v894, %v880
    %v896 = vadd.f32 %v895, %v881
    %v897 = vadd.f32 %v896, %v882
    %v898 = vadd.f32 %v897, %v883
    %v899 = vadd.f32 %v898, %v884
    %900 = vadd.xlane.f32.xlu0 %v899
    %v901 = vpop.xlane.xlu0 %900
    %v902 = vrot.slane %v901, 4
    %v903 = vadd.f32 %v901, %v902
    %v904 = vrot.slane %v903, 2
    %v905 = vadd.f32 %v903, %v904
    %v906 = vrot.slane %v905, 1
    %v907 = vadd.f32 %v905, %v906
    %s908 = vtos %v907
    %s909 = sld [smem:[#allocation2 + $0x3]]
    %v910 = vstv %s909
    %vm911 = vcmp.le.s32.totalorder %v695, %v910
    %vm912 = vcmp.le.s32.totalorder %v696, %v910
    %vm913 = vcmp.le.s32.totalorder %v697, %v910
    %vm914 = vcmp.le.s32.totalorder %v698, %v910
    %vm915 = vcmp.le.s32.totalorder %v699, %v910
    %vm916 = vcmp.le.s32.totalorder %v700, %v910
    %vm917 = vcmp.le.s32.totalorder %v701, %v910
    %vm918 = vcmp.le.s32.totalorder %v702, %v910
    %vm919 = vcmp.le.s32.totalorder %v703, %v910
    %vm920 = vcmp.le.s32.totalorder %v704, %v910
    %vm921 = vcmp.le.s32.totalorder %v705, %v910
    %vm922 = vcmp.le.s32.totalorder %v706, %v910
    %vm923 = vcmp.le.s32.totalorder %v707, %v910
    %vm924 = vcmp.le.s32.totalorder %v708, %v910
    %vm925 = vcmp.le.s32.totalorder %v709, %v910
    %vm926 = vcmp.le.s32.totalorder %v710, %v910
    %vm927 = vmand %vm713, %vm911
    %vm928 = vmand %vm714, %vm912
    %vm929 = vmand %vm715, %vm913
    %vm930 = vmand %vm716, %vm914
    %vm931 = vmand %vm717, %vm915
    %vm932 = vmand %vm718, %vm916
    %vm933 = vmand %vm719, %vm917
    %vm934 = vmand %vm720, %vm918
    %vm935 = vmand %vm721, %vm919
    %vm936 = vmand %vm722, %vm920
    %vm937 = vmand %vm723, %vm921
    %vm938 = vmand %vm724, %vm922
    %vm939 = vmand %vm725, %vm923
    %vm940 = vmand %vm726, %vm924
    %vm941 = vmand %vm727, %vm925
    %vm942 = vmand %vm728, %vm926
    %v943 = vsel %vm927, 1, 0
    %v944 = vsel %vm928, 1, 0
    %v945 = vsel %vm929, 1, 0
    %v946 = vsel %vm930, 1, 0
    %v947 = vsel %vm931, 1, 0
    %v948 = vsel %vm932, 1, 0
    %v949 = vsel %vm933, 1, 0
    %v950 = vsel %vm934, 1, 0
    %v951 = vsel %vm935, 1, 0
    %v952 = vsel %vm936, 1, 0
    %v953 = vsel %vm937, 1, 0
    %v954 = vsel %vm938, 1, 0
    %v955 = vsel %vm939, 1, 0
    %v956 = vsel %vm940, 1, 0
    %v957 = vsel %vm941, 1, 0
    %v958 = vsel %vm942, 1, 0
    %v959 = vcvt.s32.f32 %v943
    %v960 = vcvt.s32.f32 %v944
    %v961 = vcvt.s32.f32 %v945
    %v962 = vcvt.s32.f32 %v946
    %v963 = vcvt.s32.f32 %v947
    %v964 = vcvt.s32.f32 %v948
    %v965 = vcvt.s32.f32 %v949
    %v966 = vcvt.s32.f32 %v950
    %v967 = vcvt.s32.f32 %v951
    %v968 = vcvt.s32.f32 %v952
    %v969 = vcvt.s32.f32 %v953
    %v970 = vcvt.s32.f32 %v954
    %v971 = vcvt.s32.f32 %v955
    %v972 = vcvt.s32.f32 %v956
    %v973 = vcvt.s32.f32 %v957
    %v974 = vcvt.s32.f32 %v958
    %v975 = vadd.f32 %v959, %v960
    %v976 = vadd.f32 %v975, %v961
    %v977 = vadd.f32 %v976, %v962
    %v978 = vadd.f32 %v977, %v963
    %v979 = vadd.f32 %v978, %v964
    %v980 = vadd.f32 %v979, %v965
    %v981 = vadd.f32 %v980, %v966
    %v982 = vadd.f32 %v981, %v967
    %v983 = vadd.f32 %v982, %v968
    %v984 = vadd.f32 %v983, %v969
    %v985 = vadd.f32 %v984, %v970
    %v986 = vadd.f32 %v985, %v971
    %v987 = vadd.f32 %v986, %v972
    %v988 = vadd.f32 %v987, %v973
    %v989 = vadd.f32 %v988, %v974
    %990 = vadd.xlane.f32.xlu0 %v989
    %v991 = vpop.xlane.xlu0 %990
    %v992 = vrot.slane %v991, 4
    %v993 = vadd.f32 %v991, %v992
    %v994 = vrot.slane %v993, 2
    %v995 = vadd.f32 %v993, %v994
    %v996 = vrot.slane %v995, 1
    %v997 = vadd.f32 %v995, %v996
    %s998 = vtos %v997
    %s999 = sld [smem:[#allocation2 + $0x4]]
    %v1000 = vstv %s999
    %vm1001 = vcmp.le.s32.totalorder %v695, %v1000
    %vm1002 = vcmp.le.s32.totalorder %v696, %v1000
    %vm1003 = vcmp.le.s32.totalorder %v697, %v1000
    %vm1004 = vcmp.le.s32.totalorder %v698, %v1000
    %vm1005 = vcmp.le.s32.totalorder %v699, %v1000
    %vm1006 = vcmp.le.s32.totalorder %v700, %v1000
    %vm1007 = vcmp.le.s32.totalorder %v701, %v1000
    %vm1008 = vcmp.le.s32.totalorder %v702, %v1000
    %vm1009 = vcmp.le.s32.totalorder %v703, %v1000
    %vm1010 = vcmp.le.s32.totalorder %v704, %v1000
    %vm1011 = vcmp.le.s32.totalorder %v705, %v1000
    %vm1012 = vcmp.le.s32.totalorder %v706, %v1000
    %vm1013 = vcmp.le.s32.totalorder %v707, %v1000
    %vm1014 = vcmp.le.s32.totalorder %v708, %v1000
    %vm1015 = vcmp.le.s32.totalorder %v709, %v1000
    %vm1016 = vcmp.le.s32.totalorder %v710, %v1000
    %vm1017 = vmand %vm713, %vm1001
    %vm1018 = vmand %vm714, %vm1002
    %vm1019 = vmand %vm715, %vm1003
    %vm1020 = vmand %vm716, %vm1004
    %vm1021 = vmand %vm717, %vm1005
    %vm1022 = vmand %vm718, %vm1006
    %vm1023 = vmand %vm719, %vm1007
    %vm1024 = vmand %vm720, %vm1008
    %vm1025 = vmand %vm721, %vm1009
    %vm1026 = vmand %vm722, %vm1010
    %vm1027 = vmand %vm723, %vm1011
    %vm1028 = vmand %vm724, %vm1012
    %vm1029 = vmand %vm725, %vm1013
    %vm1030 = vmand %vm726, %vm1014
    %vm1031 = vmand %vm727, %vm1015
    %vm1032 = vmand %vm728, %vm1016
    %v1033 = vsel %vm1017, 1, 0
    %v1034 = vsel %vm1018, 1, 0
    %v1035 = vsel %vm1019, 1, 0
    %v1036 = vsel %vm1020, 1, 0
    %v1037 = vsel %vm1021, 1, 0
    %v1038 = vsel %vm1022, 1, 0
    %v1039 = vsel %vm1023, 1, 0
    %v1040 = vsel %vm1024, 1, 0
    %v1041 = vsel %vm1025, 1, 0
    %v1042 = vsel %vm1026, 1, 0
    %v1043 = vsel %vm1027, 1, 0
    %v1044 = vsel %vm1028, 1, 0
    %v1045 = vsel %vm1029, 1, 0
    %v1046 = vsel %vm1030, 1, 0
    %v1047 = vsel %vm1031, 1, 0
    %v1048 = vsel %vm1032, 1, 0
    %v1049 = vcvt.s32.f32 %v1033
    %v1050 = vcvt.s32.f32 %v1034
    %v1051 = vcvt.s32.f32 %v1035
    %v1052 = vcvt.s32.f32 %v1036
    %v1053 = vcvt.s32.f32 %v1037
    %v1054 = vcvt.s32.f32 %v1038
    %v1055 = vcvt.s32.f32 %v1039
    %v1056 = vcvt.s32.f32 %v1040
    %v1057 = vcvt.s32.f32 %v1041
    %v1058 = vcvt.s32.f32 %v1042
    %v1059 = vcvt.s32.f32 %v1043
    %v1060 = vcvt.s32.f32 %v1044
    %v1061 = vcvt.s32.f32 %v1045
    %v1062 = vcvt.s32.f32 %v1046
    %v1063 = vcvt.s32.f32 %v1047
    %v1064 = vcvt.s32.f32 %v1048
    %v1065 = vadd.f32 %v1049, %v1050
    %v1066 = vadd.f32 %v1065, %v1051
    %v1067 = vadd.f32 %v1066, %v1052
    %v1068 = vadd.f32 %v1067, %v1053
    %v1069 = vadd.f32 %v1068, %v1054
    %v1070 = vadd.f32 %v1069, %v1055
    %v1071 = vadd.f32 %v1070, %v1056
    %v1072 = vadd.f32 %v1071, %v1057
    %v1073 = vadd.f32 %v1072, %v1058
    %v1074 = vadd.f32 %v1073, %v1059
    %v1075 = vadd.f32 %v1074, %v1060
    %v1076 = vadd.f32 %v1075, %v1061
    %v1077 = vadd.f32 %v1076, %v1062
    %v1078 = vadd.f32 %v1077, %v1063
    %v1079 = vadd.f32 %v1078, %v1064
    %1080 = vadd.xlane.f32.xlu0 %v1079
    %v1081 = vpop.xlane.xlu0 %1080
    %v1082 = vrot.slane %v1081, 4
    %v1083 = vadd.f32 %v1081, %v1082
    %v1084 = vrot.slane %v1083, 2
    %v1085 = vadd.f32 %v1083, %v1084
    %v1086 = vrot.slane %v1085, 1
    %v1087 = vadd.f32 %v1085, %v1086
    %s1088 = vtos %v1087
    %s1089 = sld [smem:[#allocation2 + $0x5]]
    %v1090 = vstv %s1089
    %vm1091 = vcmp.le.s32.totalorder %v695, %v1090
    %vm1092 = vcmp.le.s32.totalorder %v696, %v1090
    %vm1093 = vcmp.le.s32.totalorder %v697, %v1090
    %vm1094 = vcmp.le.s32.totalorder %v698, %v1090
    %vm1095 = vcmp.le.s32.totalorder %v699, %v1090
    %vm1096 = vcmp.le.s32.totalorder %v700, %v1090
    %vm1097 = vcmp.le.s32.totalorder %v701, %v1090
    %vm1098 = vcmp.le.s32.totalorder %v702, %v1090
    %vm1099 = vcmp.le.s32.totalorder %v703, %v1090
    %vm1100 = vcmp.le.s32.totalorder %v704, %v1090
    %vm1101 = vcmp.le.s32.totalorder %v705, %v1090
    %vm1102 = vcmp.le.s32.totalorder %v706, %v1090
    %vm1103 = vcmp.le.s32.totalorder %v707, %v1090
    %vm1104 = vcmp.le.s32.totalorder %v708, %v1090
    %vm1105 = vcmp.le.s32.totalorder %v709, %v1090
    %vm1106 = vcmp.le.s32.totalorder %v710, %v1090
    %vm1107 = vmand %vm713, %vm1091
    %vm1108 = vmand %vm714, %vm1092
    %vm1109 = vmand %vm715, %vm1093
    %vm1110 = vmand %vm716, %vm1094
    %vm1111 = vmand %vm717, %vm1095
    %vm1112 = vmand %vm718, %vm1096
    %vm1113 = vmand %vm719, %vm1097
    %vm1114 = vmand %vm720, %vm1098
    %vm1115 = vmand %vm721, %vm1099
    %vm1116 = vmand %vm722, %vm1100
    %vm1117 = vmand %vm723, %vm1101
    %vm1118 = vmand %vm724, %vm1102
    %vm1119 = vmand %vm725, %vm1103
    %vm1120 = vmand %vm726, %vm1104
    %vm1121 = vmand %vm727, %vm1105
    %vm1122 = vmand %vm728, %vm1106
    %v1123 = vsel %vm1107, 1, 0
    %v1124 = vsel %vm1108, 1, 0
    %v1125 = vsel %vm1109, 1, 0
    %v1126 = vsel %vm1110, 1, 0
    %v1127 = vsel %vm1111, 1, 0
    %v1128 = vsel %vm1112, 1, 0
    %v1129 = vsel %vm1113, 1, 0
    %v1130 = vsel %vm1114, 1, 0
    %v1131 = vsel %vm1115, 1, 0
    %v1132 = vsel %vm1116, 1, 0
    %v1133 = vsel %vm1117, 1, 0
    %v1134 = vsel %vm1118, 1, 0
    %v1135 = vsel %vm1119, 1, 0
    %v1136 = vsel %vm1120, 1, 0
    %v1137 = vsel %vm1121, 1, 0
    %v1138 = vsel %vm1122, 1, 0
    %v1139 = vcvt.s32.f32 %v1123
    %v1140 = vcvt.s32.f32 %v1124
    %v1141 = vcvt.s32.f32 %v1125
    %v1142 = vcvt.s32.f32 %v1126
    %v1143 = vcvt.s32.f32 %v1127
    %v1144 = vcvt.s32.f32 %v1128
    %v1145 = vcvt.s32.f32 %v1129
    %v1146 = vcvt.s32.f32 %v1130
    %v1147 = vcvt.s32.f32 %v1131
    %v1148 = vcvt.s32.f32 %v1132
    %v1149 = vcvt.s32.f32 %v1133
    %v1150 = vcvt.s32.f32 %v1134
    %v1151 = vcvt.s32.f32 %v1135
    %v1152 = vcvt.s32.f32 %v1136
    %v1153 = vcvt.s32.f32 %v1137
    %v1154 = vcvt.s32.f32 %v1138
    %v1155 = vadd.f32 %v1139, %v1140
    %v1156 = vadd.f32 %v1155, %v1141
    %v1157 = vadd.f32 %v1156, %v1142
    %v1158 = vadd.f32 %v1157, %v1143
    %v1159 = vadd.f32 %v1158, %v1144
    %v1160 = vadd.f32 %v1159, %v1145
    %v1161 = vadd.f32 %v1160, %v1146
    %v1162 = vadd.f32 %v1161, %v1147
    %v1163 = vadd.f32 %v1162, %v1148
    %v1164 = vadd.f32 %v1163, %v1149
    %v1165 = vadd.f32 %v1164, %v1150
    %v1166 = vadd.f32 %v1165, %v1151
    %v1167 = vadd.f32 %v1166, %v1152
    %v1168 = vadd.f32 %v1167, %v1153
    %v1169 = vadd.f32 %v1168, %v1154
    %1170 = vadd.xlane.f32.xlu0 %v1169
    %v1171 = vpop.xlane.xlu0 %1170
    %v1172 = vrot.slane %v1171, 4
    %v1173 = vadd.f32 %v1171, %v1172
    %v1174 = vrot.slane %v1173, 2
    %v1175 = vadd.f32 %v1173, %v1174
    %v1176 = vrot.slane %v1175, 1
    %v1177 = vadd.f32 %v1175, %v1176
    %s1178 = vtos %v1177
    %s1179 = sld [smem:[#allocation2 + $0x6]]
    %v1180 = vstv %s1179
    %vm1181 = vcmp.le.s32.totalorder %v695, %v1180
    %vm1182 = vcmp.le.s32.totalorder %v696, %v1180
    %vm1183 = vcmp.le.s32.totalorder %v697, %v1180
    %vm1184 = vcmp.le.s32.totalorder %v698, %v1180
    %vm1185 = vcmp.le.s32.totalorder %v699, %v1180
    %vm1186 = vcmp.le.s32.totalorder %v700, %v1180
    %vm1187 = vcmp.le.s32.totalorder %v701, %v1180
    %vm1188 = vcmp.le.s32.totalorder %v702, %v1180
    %vm1189 = vcmp.le.s32.totalorder %v703, %v1180
    %vm1190 = vcmp.le.s32.totalorder %v704, %v1180
    %vm1191 = vcmp.le.s32.totalorder %v705, %v1180
    %vm1192 = vcmp.le.s32.totalorder %v706, %v1180
    %vm1193 = vcmp.le.s32.totalorder %v707, %v1180
    %vm1194 = vcmp.le.s32.totalorder %v708, %v1180
    %vm1195 = vcmp.le.s32.totalorder %v709, %v1180
    %vm1196 = vcmp.le.s32.totalorder %v710, %v1180
    %vm1197 = vmand %vm713, %vm1181
    %vm1198 = vmand %vm714, %vm1182
    %vm1199 = vmand %vm715, %vm1183
    %vm1200 = vmand %vm716, %vm1184
    %vm1201 = vmand %vm717, %vm1185
    %vm1202 = vmand %vm718, %vm1186
    %vm1203 = vmand %vm719, %vm1187
    %vm1204 = vmand %vm720, %vm1188
    %vm1205 = vmand %vm721, %vm1189
    %vm1206 = vmand %vm722, %vm1190
    %vm1207 = vmand %vm723, %vm1191
    %vm1208 = vmand %vm724, %vm1192
    %vm1209 = vmand %vm725, %vm1193
    %vm1210 = vmand %vm726, %vm1194
    %vm1211 = vmand %vm727, %vm1195
    %vm1212 = vmand %vm728, %vm1196
    %v1213 = vsel %vm1197, 1, 0
    %v1214 = vsel %vm1198, 1, 0
    %v1215 = vsel %vm1199, 1, 0
    %v1216 = vsel %vm1200, 1, 0
    %v1217 = vsel %vm1201, 1, 0
    %v1218 = vsel %vm1202, 1, 0
    %v1219 = vsel %vm1203, 1, 0
    %v1220 = vsel %vm1204, 1, 0
    %v1221 = vsel %vm1205, 1, 0
    %v1222 = vsel %vm1206, 1, 0
    %v1223 = vsel %vm1207, 1, 0
    %v1224 = vsel %vm1208, 1, 0
    %v1225 = vsel %vm1209, 1, 0
    %v1226 = vsel %vm1210, 1, 0
    %v1227 = vsel %vm1211, 1, 0
    %v1228 = vsel %vm1212, 1, 0
    %v1229 = vcvt.s32.f32 %v1213
    %v1230 = vcvt.s32.f32 %v1214
    %v1231 = vcvt.s32.f32 %v1215
    %v1232 = vcvt.s32.f32 %v1216
    %v1233 = vcvt.s32.f32 %v1217
    %v1234 = vcvt.s32.f32 %v1218
    %v1235 = vcvt.s32.f32 %v1219
    %v1236 = vcvt.s32.f32 %v1220
    %v1237 = vcvt.s32.f32 %v1221
    %v1238 = vcvt.s32.f32 %v1222
    %v1239 = vcvt.s32.f32 %v1223
    %v1240 = vcvt.s32.f32 %v1224
    %v1241 = vcvt.s32.f32 %v1225
    %v1242 = vcvt.s32.f32 %v1226
    %v1243 = vcvt.s32.f32 %v1227
    %v1244 = vcvt.s32.f32 %v1228
    %v1245 = vadd.f32 %v1229, %v1230
    %v1246 = vadd.f32 %v1245, %v1231
    %v1247 = vadd.f32 %v1246, %v1232
    %v1248 = vadd.f32 %v1247, %v1233
    %v1249 = vadd.f32 %v1248, %v1234
    %v1250 = vadd.f32 %v1249, %v1235
    %v1251 = vadd.f32 %v1250, %v1236
    %v1252 = vadd.f32 %v1251, %v1237
    %v1253 = vadd.f32 %v1252, %v1238
    %v1254 = vadd.f32 %v1253, %v1239
    %v1255 = vadd.f32 %v1254, %v1240
    %v1256 = vadd.f32 %v1255, %v1241
    %v1257 = vadd.f32 %v1256, %v1242
    %v1258 = vadd.f32 %v1257, %v1243
    %v1259 = vadd.f32 %v1258, %v1244
    %1260 = vadd.xlane.f32.xlu0 %v1259
    %v1261 = vpop.xlane.xlu0 %1260
    %v1262 = vrot.slane %v1261, 4
    %v1263 = vadd.f32 %v1261, %v1262
    %v1264 = vrot.slane %v1263, 2
    %v1265 = vadd.f32 %v1263, %v1264
    %v1266 = vrot.slane %v1265, 1
    %v1267 = vadd.f32 %v1265, %v1266
    %s1268 = vtos %v1267
    %s1269 = sld [smem:[#allocation2 + $0x7]]
    %v1270 = vstv %s1269
    %vm1271 = vcmp.le.s32.totalorder %v695, %v1270
    %vm1272 = vcmp.le.s32.totalorder %v696, %v1270
    %vm1273 = vcmp.le.s32.totalorder %v697, %v1270
    %vm1274 = vcmp.le.s32.totalorder %v698, %v1270
    %vm1275 = vcmp.le.s32.totalorder %v699, %v1270
    %vm1276 = vcmp.le.s32.totalorder %v700, %v1270
    %vm1277 = vcmp.le.s32.totalorder %v701, %v1270
    %vm1278 = vcmp.le.s32.totalorder %v702, %v1270
    %vm1279 = vcmp.le.s32.totalorder %v703, %v1270
    %vm1280 = vcmp.le.s32.totalorder %v704, %v1270
    %vm1281 = vcmp.le.s32.totalorder %v705, %v1270
    %vm1282 = vcmp.le.s32.totalorder %v706, %v1270
    %vm1283 = vcmp.le.s32.totalorder %v707, %v1270
    %vm1284 = vcmp.le.s32.totalorder %v708, %v1270
    %vm1285 = vcmp.le.s32.totalorder %v709, %v1270
    %vm1286 = vcmp.le.s32.totalorder %v710, %v1270
    %vm1287 = vmand %vm713, %vm1271
    %vm1288 = vmand %vm714, %vm1272
    %vm1289 = vmand %vm715, %vm1273
    %vm1290 = vmand %vm716, %vm1274
    %vm1291 = vmand %vm717, %vm1275
    %vm1292 = vmand %vm718, %vm1276
    %vm1293 = vmand %vm719, %vm1277
    %vm1294 = vmand %vm720, %vm1278
    %vm1295 = vmand %vm721, %vm1279
    %vm1296 = vmand %vm722, %vm1280
    %vm1297 = vmand %vm723, %vm1281
    %vm1298 = vmand %vm724, %vm1282
    %vm1299 = vmand %vm725, %vm1283
    %vm1300 = vmand %vm726, %vm1284
    %vm1301 = vmand %vm727, %vm1285
    %vm1302 = vmand %vm728, %vm1286
    %v1303 = vsel %vm1287, 1, 0
    %v1304 = vsel %vm1288, 1, 0
    %v1305 = vsel %vm1289, 1, 0
    %v1306 = vsel %vm1290, 1, 0
    %v1307 = vsel %vm1291, 1, 0
    %v1308 = vsel %vm1292, 1, 0
    %v1309 = vsel %vm1293, 1, 0
    %v1310 = vsel %vm1294, 1, 0
    %v1311 = vsel %vm1295, 1, 0
    %v1312 = vsel %vm1296, 1, 0
    %v1313 = vsel %vm1297, 1, 0
    %v1314 = vsel %vm1298, 1, 0
    %v1315 = vsel %vm1299, 1, 0
    %v1316 = vsel %vm1300, 1, 0
    %v1317 = vsel %vm1301, 1, 0
    %v1318 = vsel %vm1302, 1, 0
    %v1319 = vcvt.s32.f32 %v1303
    %v1320 = vcvt.s32.f32 %v1304
    %v1321 = vcvt.s32.f32 %v1305
    %v1322 = vcvt.s32.f32 %v1306
    %v1323 = vcvt.s32.f32 %v1307
    %v1324 = vcvt.s32.f32 %v1308
    %v1325 = vcvt.s32.f32 %v1309
    %v1326 = vcvt.s32.f32 %v1310
    %v1327 = vcvt.s32.f32 %v1311
    %v1328 = vcvt.s32.f32 %v1312
    %v1329 = vcvt.s32.f32 %v1313
    %v1330 = vcvt.s32.f32 %v1314
    %v1331 = vcvt.s32.f32 %v1315
    %v1332 = vcvt.s32.f32 %v1316
    %v1333 = vcvt.s32.f32 %v1317
    %v1334 = vcvt.s32.f32 %v1318
    %v1335 = vadd.f32 %v1319, %v1320
    %v1336 = vadd.f32 %v1335, %v1321
    %v1337 = vadd.f32 %v1336, %v1322
    %v1338 = vadd.f32 %v1337, %v1323
    %v1339 = vadd.f32 %v1338, %v1324
    %v1340 = vadd.f32 %v1339, %v1325
    %v1341 = vadd.f32 %v1340, %v1326
    %v1342 = vadd.f32 %v1341, %v1327
    %v1343 = vadd.f32 %v1342, %v1328
    %v1344 = vadd.f32 %v1343, %v1329
    %v1345 = vadd.f32 %v1344, %v1330
    %v1346 = vadd.f32 %v1345, %v1331
    %v1347 = vadd.f32 %v1346, %v1332
    %v1348 = vadd.f32 %v1347, %v1333
    %v1349 = vadd.f32 %v1348, %v1334
    %1350 = vadd.xlane.f32.xlu0 %v1349
    %v1351 = vpop.xlane.xlu0 %1350
    %v1352 = vrot.slane %v1351, 4
    %v1353 = vadd.f32 %v1351, %v1352
    %v1354 = vrot.slane %v1353, 2
    %v1355 = vadd.f32 %v1353, %v1354
    %v1356 = vrot.slane %v1355, 1
    %v1357 = vadd.f32 %v1355, %v1356
    %s1358 = vtos %v1357
    %s1359 = sld [smem:[#allocation2 + $0x8]]
    %v1360 = vstv %s1359
    %vm1361 = vcmp.le.s32.totalorder %v695, %v1360
    %vm1362 = vcmp.le.s32.totalorder %v696, %v1360
    %vm1363 = vcmp.le.s32.totalorder %v697, %v1360
    %vm1364 = vcmp.le.s32.totalorder %v698, %v1360
    %vm1365 = vcmp.le.s32.totalorder %v699, %v1360
    %vm1366 = vcmp.le.s32.totalorder %v700, %v1360
    %vm1367 = vcmp.le.s32.totalorder %v701, %v1360
    %vm1368 = vcmp.le.s32.totalorder %v702, %v1360
    %vm1369 = vcmp.le.s32.totalorder %v703, %v1360
    %vm1370 = vcmp.le.s32.totalorder %v704, %v1360
    %vm1371 = vcmp.le.s32.totalorder %v705, %v1360
    %vm1372 = vcmp.le.s32.totalorder %v706, %v1360
    %vm1373 = vcmp.le.s32.totalorder %v707, %v1360
    %vm1374 = vcmp.le.s32.totalorder %v708, %v1360
    %vm1375 = vcmp.le.s32.totalorder %v709, %v1360
    %vm1376 = vcmp.le.s32.totalorder %v710, %v1360
    %vm1377 = vmand %vm713, %vm1361
    %vm1378 = vmand %vm714, %vm1362
    %vm1379 = vmand %vm715, %vm1363
    %vm1380 = vmand %vm716, %vm1364
    %vm1381 = vmand %vm717, %vm1365
    %vm1382 = vmand %vm718, %vm1366
    %vm1383 = vmand %vm719, %vm1367
    %vm1384 = vmand %vm720, %vm1368
    %vm1385 = vmand %vm721, %vm1369
    %vm1386 = vmand %vm722, %vm1370
    %vm1387 = vmand %vm723, %vm1371
    %vm1388 = vmand %vm724, %vm1372
    %vm1389 = vmand %vm725, %vm1373
    %vm1390 = vmand %vm726, %vm1374
    %vm1391 = vmand %vm727, %vm1375
    %vm1392 = vmand %vm728, %vm1376
    %v1393 = vsel %vm1377, 1, 0
    %v1394 = vsel %vm1378, 1, 0
    %v1395 = vsel %vm1379, 1, 0
    %v1396 = vsel %vm1380, 1, 0
    %v1397 = vsel %vm1381, 1, 0
    %v1398 = vsel %vm1382, 1, 0
    %v1399 = vsel %vm1383, 1, 0
    %v1400 = vsel %vm1384, 1, 0
    %v1401 = vsel %vm1385, 1, 0
    %v1402 = vsel %vm1386, 1, 0
    %v1403 = vsel %vm1387, 1, 0
    %v1404 = vsel %vm1388, 1, 0
    %v1405 = vsel %vm1389, 1, 0
    %v1406 = vsel %vm1390, 1, 0
    %v1407 = vsel %vm1391, 1, 0
    %v1408 = vsel %vm1392, 1, 0
    %v1409 = vcvt.s32.f32 %v1393
    %v1410 = vcvt.s32.f32 %v1394
    %v1411 = vcvt.s32.f32 %v1395
    %v1412 = vcvt.s32.f32 %v1396
    %v1413 = vcvt.s32.f32 %v1397
    %v1414 = vcvt.s32.f32 %v1398
    %v1415 = vcvt.s32.f32 %v1399
    %v1416 = vcvt.s32.f32 %v1400
    %v1417 = vcvt.s32.f32 %v1401
    %v1418 = vcvt.s32.f32 %v1402
    %v1419 = vcvt.s32.f32 %v1403
    %v1420 = vcvt.s32.f32 %v1404
    %v1421 = vcvt.s32.f32 %v1405
    %v1422 = vcvt.s32.f32 %v1406
    %v1423 = vcvt.s32.f32 %v1407
    %v1424 = vcvt.s32.f32 %v1408
    %v1425 = vadd.f32 %v1409, %v1410
    %v1426 = vadd.f32 %v1425, %v1411
    %v1427 = vadd.f32 %v1426, %v1412
    %v1428 = vadd.f32 %v1427, %v1413
    %v1429 = vadd.f32 %v1428, %v1414
    %v1430 = vadd.f32 %v1429, %v1415
    %v1431 = vadd.f32 %v1430, %v1416
    %v1432 = vadd.f32 %v1431, %v1417
    %v1433 = vadd.f32 %v1432, %v1418
    %v1434 = vadd.f32 %v1433, %v1419
    %v1435 = vadd.f32 %v1434, %v1420
    %v1436 = vadd.f32 %v1435, %v1421
    %v1437 = vadd.f32 %v1436, %v1422
    %v1438 = vadd.f32 %v1437, %v1423
    %v1439 = vadd.f32 %v1438, %v1424
    %1440 = vadd.xlane.f32.xlu0 %v1439
    %v1441 = vpop.xlane.xlu0 %1440
    %v1442 = vrot.slane %v1441, 4
    %v1443 = vadd.f32 %v1441, %v1442
    %v1444 = vrot.slane %v1443, 2
    %v1445 = vadd.f32 %v1443, %v1444
    %v1446 = vrot.slane %v1445, 1
    %v1447 = vadd.f32 %v1445, %v1446
    %s1448 = vtos %v1447
    %s1449 = sld [smem:[#allocation2 + $0x9]]
    %v1450 = vstv %s1449
    %vm1451 = vcmp.le.s32.totalorder %v695, %v1450
    %vm1452 = vcmp.le.s32.totalorder %v696, %v1450
    %vm1453 = vcmp.le.s32.totalorder %v697, %v1450
    %vm1454 = vcmp.le.s32.totalorder %v698, %v1450
    %vm1455 = vcmp.le.s32.totalorder %v699, %v1450
    %vm1456 = vcmp.le.s32.totalorder %v700, %v1450
    %vm1457 = vcmp.le.s32.totalorder %v701, %v1450
    %vm1458 = vcmp.le.s32.totalorder %v702, %v1450
    %vm1459 = vcmp.le.s32.totalorder %v703, %v1450
    %vm1460 = vcmp.le.s32.totalorder %v704, %v1450
    %vm1461 = vcmp.le.s32.totalorder %v705, %v1450
    %vm1462 = vcmp.le.s32.totalorder %v706, %v1450
    %vm1463 = vcmp.le.s32.totalorder %v707, %v1450
    %vm1464 = vcmp.le.s32.totalorder %v708, %v1450
    %vm1465 = vcmp.le.s32.totalorder %v709, %v1450
    %vm1466 = vcmp.le.s32.totalorder %v710, %v1450
    %vm1467 = vmand %vm713, %vm1451
    %vm1468 = vmand %vm714, %vm1452
    %vm1469 = vmand %vm715, %vm1453
    %vm1470 = vmand %vm716, %vm1454
    %vm1471 = vmand %vm717, %vm1455
    %vm1472 = vmand %vm718, %vm1456
    %vm1473 = vmand %vm719, %vm1457
    %vm1474 = vmand %vm720, %vm1458
    %vm1475 = vmand %vm721, %vm1459
    %vm1476 = vmand %vm722, %vm1460
    %vm1477 = vmand %vm723, %vm1461
    %vm1478 = vmand %vm724, %vm1462
    %vm1479 = vmand %vm725, %vm1463
    %vm1480 = vmand %vm726, %vm1464
    %vm1481 = vmand %vm727, %vm1465
    %vm1482 = vmand %vm728, %vm1466
    %v1483 = vsel %vm1467, 1, 0
    %v1484 = vsel %vm1468, 1, 0
    %v1485 = vsel %vm1469, 1, 0
    %v1486 = vsel %vm1470, 1, 0
    %v1487 = vsel %vm1471, 1, 0
    %v1488 = vsel %vm1472, 1, 0
    %v1489 = vsel %vm1473, 1, 0
    %v1490 = vsel %vm1474, 1, 0
    %v1491 = vsel %vm1475, 1, 0
    %v1492 = vsel %vm1476, 1, 0
    %v1493 = vsel %vm1477, 1, 0
    %v1494 = vsel %vm1478, 1, 0
    %v1495 = vsel %vm1479, 1, 0
    %v1496 = vsel %vm1480, 1, 0
    %v1497 = vsel %vm1481, 1, 0
    %v1498 = vsel %vm1482, 1, 0
    %v1499 = vcvt.s32.f32 %v1483
    %v1500 = vcvt.s32.f32 %v1484
    %v1501 = vcvt.s32.f32 %v1485
    %v1502 = vcvt.s32.f32 %v1486
    %v1503 = vcvt.s32.f32 %v1487
    %v1504 = vcvt.s32.f32 %v1488
    %v1505 = vcvt.s32.f32 %v1489
    %v1506 = vcvt.s32.f32 %v1490
    %v1507 = vcvt.s32.f32 %v1491
    %v1508 = vcvt.s32.f32 %v1492
    %v1509 = vcvt.s32.f32 %v1493
    %v1510 = vcvt.s32.f32 %v1494
    %v1511 = vcvt.s32.f32 %v1495
    %v1512 = vcvt.s32.f32 %v1496
    %v1513 = vcvt.s32.f32 %v1497
    %v1514 = vcvt.s32.f32 %v1498
    %v1515 = vadd.f32 %v1499, %v1500
    %v1516 = vadd.f32 %v1515, %v1501
    %v1517 = vadd.f32 %v1516, %v1502
    %v1518 = vadd.f32 %v1517, %v1503
    %v1519 = vadd.f32 %v1518, %v1504
    %v1520 = vadd.f32 %v1519, %v1505
    %v1521 = vadd.f32 %v1520, %v1506
    %v1522 = vadd.f32 %v1521, %v1507
    %v1523 = vadd.f32 %v1522, %v1508
    %v1524 = vadd.f32 %v1523, %v1509
    %v1525 = vadd.f32 %v1524, %v1510
    %v1526 = vadd.f32 %v1525, %v1511
    %v1527 = vadd.f32 %v1526, %v1512
    %v1528 = vadd.f32 %v1527, %v1513
    %v1529 = vadd.f32 %v1528, %v1514
    %1530 = vadd.xlane.f32.xlu0 %v1529
    %v1531 = vpop.xlane.xlu0 %1530
    %v1532 = vrot.slane %v1531, 4
    %v1533 = vadd.f32 %v1531, %v1532
    %v1534 = vrot.slane %v1533, 2
    %v1535 = vadd.f32 %v1533, %v1534
    %v1536 = vrot.slane %v1535, 1
    %v1537 = vadd.f32 %v1535, %v1536
    %s1538 = vtos %v1537
    %s1539 = sld [smem:[#allocation2 + $0xa]]
    %v1540 = vstv %s1539
    %vm1541 = vcmp.le.s32.totalorder %v695, %v1540
    %vm1542 = vcmp.le.s32.totalorder %v696, %v1540
    %vm1543 = vcmp.le.s32.totalorder %v697, %v1540
    %vm1544 = vcmp.le.s32.totalorder %v698, %v1540
    %vm1545 = vcmp.le.s32.totalorder %v699, %v1540
    %vm1546 = vcmp.le.s32.totalorder %v700, %v1540
    %vm1547 = vcmp.le.s32.totalorder %v701, %v1540
    %vm1548 = vcmp.le.s32.totalorder %v702, %v1540
    %vm1549 = vcmp.le.s32.totalorder %v703, %v1540
    %vm1550 = vcmp.le.s32.totalorder %v704, %v1540
    %vm1551 = vcmp.le.s32.totalorder %v705, %v1540
    %vm1552 = vcmp.le.s32.totalorder %v706, %v1540
    %vm1553 = vcmp.le.s32.totalorder %v707, %v1540
    %vm1554 = vcmp.le.s32.totalorder %v708, %v1540
    %vm1555 = vcmp.le.s32.totalorder %v709, %v1540
    %vm1556 = vcmp.le.s32.totalorder %v710, %v1540
    %vm1557 = vmand %vm713, %vm1541
    %vm1558 = vmand %vm714, %vm1542
    %vm1559 = vmand %vm715, %vm1543
    %vm1560 = vmand %vm716, %vm1544
    %vm1561 = vmand %vm717, %vm1545
    %vm1562 = vmand %vm718, %vm1546
    %vm1563 = vmand %vm719, %vm1547
    %vm1564 = vmand %vm720, %vm1548
    %vm1565 = vmand %vm721, %vm1549
    %vm1566 = vmand %vm722, %vm1550
    %vm1567 = vmand %vm723, %vm1551
    %vm1568 = vmand %vm724, %vm1552
    %vm1569 = vmand %vm725, %vm1553
    %vm1570 = vmand %vm726, %vm1554
    %vm1571 = vmand %vm727, %vm1555
    %vm1572 = vmand %vm728, %vm1556
    %v1573 = vsel %vm1557, 1, 0
    %v1574 = vsel %vm1558, 1, 0
    %v1575 = vsel %vm1559, 1, 0
    %v1576 = vsel %vm1560, 1, 0
    %v1577 = vsel %vm1561, 1, 0
    %v1578 = vsel %vm1562, 1, 0
    %v1579 = vsel %vm1563, 1, 0
    %v1580 = vsel %vm1564, 1, 0
    %v1581 = vsel %vm1565, 1, 0
    %v1582 = vsel %vm1566, 1, 0
    %v1583 = vsel %vm1567, 1, 0
    %v1584 = vsel %vm1568, 1, 0
    %v1585 = vsel %vm1569, 1, 0
    %v1586 = vsel %vm1570, 1, 0
    %v1587 = vsel %vm1571, 1, 0
    %v1588 = vsel %vm1572, 1, 0
    %v1589 = vcvt.s32.f32 %v1573
    %v1590 = vcvt.s32.f32 %v1574
    %v1591 = vcvt.s32.f32 %v1575
    %v1592 = vcvt.s32.f32 %v1576
    %v1593 = vcvt.s32.f32 %v1577
    %v1594 = vcvt.s32.f32 %v1578
    %v1595 = vcvt.s32.f32 %v1579
    %v1596 = vcvt.s32.f32 %v1580
    %v1597 = vcvt.s32.f32 %v1581
    %v1598 = vcvt.s32.f32 %v1582
    %v1599 = vcvt.s32.f32 %v1583
    %v1600 = vcvt.s32.f32 %v1584
    %v1601 = vcvt.s32.f32 %v1585
    %v1602 = vcvt.s32.f32 %v1586
    %v1603 = vcvt.s32.f32 %v1587
    %v1604 = vcvt.s32.f32 %v1588
    %v1605 = vadd.f32 %v1589, %v1590
    %v1606 = vadd.f32 %v1605, %v1591
    %v1607 = vadd.f32 %v1606, %v1592
    %v1608 = vadd.f32 %v1607, %v1593
    %v1609 = vadd.f32 %v1608, %v1594
    %v1610 = vadd.f32 %v1609, %v1595
    %v1611 = vadd.f32 %v1610, %v1596
    %v1612 = vadd.f32 %v1611, %v1597
    %v1613 = vadd.f32 %v1612, %v1598
    %v1614 = vadd.f32 %v1613, %v1599
    %v1615 = vadd.f32 %v1614, %v1600
    %v1616 = vadd.f32 %v1615, %v1601
    %v1617 = vadd.f32 %v1616, %v1602
    %v1618 = vadd.f32 %v1617, %v1603
    %v1619 = vadd.f32 %v1618, %v1604
    %1620 = vadd.xlane.f32.xlu0 %v1619
    %v1621 = vpop.xlane.xlu0 %1620
    %v1622 = vrot.slane %v1621, 4
    %v1623 = vadd.f32 %v1621, %v1622
    %v1624 = vrot.slane %v1623, 2
    %v1625 = vadd.f32 %v1623, %v1624
    %v1626 = vrot.slane %v1625, 1
    %v1627 = vadd.f32 %v1625, %v1626
    %s1628 = vtos %v1627
    %s1629 = sld [smem:[#allocation2 + $0xb]]
    %v1630 = vstv %s1629
    %vm1631 = vcmp.le.s32.totalorder %v695, %v1630
    %vm1632 = vcmp.le.s32.totalorder %v696, %v1630
    %vm1633 = vcmp.le.s32.totalorder %v697, %v1630
    %vm1634 = vcmp.le.s32.totalorder %v698, %v1630
    %vm1635 = vcmp.le.s32.totalorder %v699, %v1630
    %vm1636 = vcmp.le.s32.totalorder %v700, %v1630
    %vm1637 = vcmp.le.s32.totalorder %v701, %v1630
    %vm1638 = vcmp.le.s32.totalorder %v702, %v1630
    %vm1639 = vcmp.le.s32.totalorder %v703, %v1630
    %vm1640 = vcmp.le.s32.totalorder %v704, %v1630
    %vm1641 = vcmp.le.s32.totalorder %v705, %v1630
    %vm1642 = vcmp.le.s32.totalorder %v706, %v1630
    %vm1643 = vcmp.le.s32.totalorder %v707, %v1630
    %vm1644 = vcmp.le.s32.totalorder %v708, %v1630
    %vm1645 = vcmp.le.s32.totalorder %v709, %v1630
    %vm1646 = vcmp.le.s32.totalorder %v710, %v1630
    %vm1647 = vmand %vm713, %vm1631
    %vm1648 = vmand %vm714, %vm1632
    %vm1649 = vmand %vm715, %vm1633
    %vm1650 = vmand %vm716, %vm1634
    %vm1651 = vmand %vm717, %vm1635
    %vm1652 = vmand %vm718, %vm1636
    %vm1653 = vmand %vm719, %vm1637
    %vm1654 = vmand %vm720, %vm1638
    %vm1655 = vmand %vm721, %vm1639
    %vm1656 = vmand %vm722, %vm1640
    %vm1657 = vmand %vm723, %vm1641
    %vm1658 = vmand %vm724, %vm1642
    %vm1659 = vmand %vm725, %vm1643
    %vm1660 = vmand %vm726, %vm1644
    %vm1661 = vmand %vm727, %vm1645
    %vm1662 = vmand %vm728, %vm1646
    %v1663 = vsel %vm1647, 1, 0
    %v1664 = vsel %vm1648, 1, 0
    %v1665 = vsel %vm1649, 1, 0
    %v1666 = vsel %vm1650, 1, 0
    %v1667 = vsel %vm1651, 1, 0
    %v1668 = vsel %vm1652, 1, 0
    %v1669 = vsel %vm1653, 1, 0
    %v1670 = vsel %vm1654, 1, 0
    %v1671 = vsel %vm1655, 1, 0
    %v1672 = vsel %vm1656, 1, 0
    %v1673 = vsel %vm1657, 1, 0
    %v1674 = vsel %vm1658, 1, 0
    %v1675 = vsel %vm1659, 1, 0
    %v1676 = vsel %vm1660, 1, 0
    %v1677 = vsel %vm1661, 1, 0
    %v1678 = vsel %vm1662, 1, 0
    %v1679 = vcvt.s32.f32 %v1663
    %v1680 = vcvt.s32.f32 %v1664
    %v1681 = vcvt.s32.f32 %v1665
    %v1682 = vcvt.s32.f32 %v1666
    %v1683 = vcvt.s32.f32 %v1667
    %v1684 = vcvt.s32.f32 %v1668
    %v1685 = vcvt.s32.f32 %v1669
    %v1686 = vcvt.s32.f32 %v1670
    %v1687 = vcvt.s32.f32 %v1671
    %v1688 = vcvt.s32.f32 %v1672
    %v1689 = vcvt.s32.f32 %v1673
    %v1690 = vcvt.s32.f32 %v1674
    %v1691 = vcvt.s32.f32 %v1675
    %v1692 = vcvt.s32.f32 %v1676
    %v1693 = vcvt.s32.f32 %v1677
    %v1694 = vcvt.s32.f32 %v1678
    %v1695 = vadd.f32 %v1679, %v1680
    %v1696 = vadd.f32 %v1695, %v1681
    %v1697 = vadd.f32 %v1696, %v1682
    %v1698 = vadd.f32 %v1697, %v1683
    %v1699 = vadd.f32 %v1698, %v1684
    %v1700 = vadd.f32 %v1699, %v1685
    %v1701 = vadd.f32 %v1700, %v1686
    %v1702 = vadd.f32 %v1701, %v1687
    %v1703 = vadd.f32 %v1702, %v1688
    %v1704 = vadd.f32 %v1703, %v1689
    %v1705 = vadd.f32 %v1704, %v1690
    %v1706 = vadd.f32 %v1705, %v1691
    %v1707 = vadd.f32 %v1706, %v1692
    %v1708 = vadd.f32 %v1707, %v1693
    %v1709 = vadd.f32 %v1708, %v1694
    %1710 = vadd.xlane.f32.xlu0 %v1709
    %v1711 = vpop.xlane.xlu0 %1710
    %v1712 = vrot.slane %v1711, 4
    %v1713 = vadd.f32 %v1711, %v1712
    %v1714 = vrot.slane %v1713, 2
    %v1715 = vadd.f32 %v1713, %v1714
    %v1716 = vrot.slane %v1715, 1
    %v1717 = vadd.f32 %v1715, %v1716
    %s1718 = vtos %v1717
    %s1719 = sld [smem:[#allocation2 + $0xc]]
    %v1720 = vstv %s1719
    %vm1721 = vcmp.le.s32.totalorder %v695, %v1720
    %vm1722 = vcmp.le.s32.totalorder %v696, %v1720
    %vm1723 = vcmp.le.s32.totalorder %v697, %v1720
    %vm1724 = vcmp.le.s32.totalorder %v698, %v1720
    %vm1725 = vcmp.le.s32.totalorder %v699, %v1720
    %vm1726 = vcmp.le.s32.totalorder %v700, %v1720
    %vm1727 = vcmp.le.s32.totalorder %v701, %v1720
    %vm1728 = vcmp.le.s32.totalorder %v702, %v1720
    %vm1729 = vcmp.le.s32.totalorder %v703, %v1720
    %vm1730 = vcmp.le.s32.totalorder %v704, %v1720
    %vm1731 = vcmp.le.s32.totalorder %v705, %v1720
    %vm1732 = vcmp.le.s32.totalorder %v706, %v1720
    %vm1733 = vcmp.le.s32.totalorder %v707, %v1720
    %vm1734 = vcmp.le.s32.totalorder %v708, %v1720
    %vm1735 = vcmp.le.s32.totalorder %v709, %v1720
    %vm1736 = vcmp.le.s32.totalorder %v710, %v1720
    %vm1737 = vmand %vm713, %vm1721
    %vm1738 = vmand %vm714, %vm1722
    %vm1739 = vmand %vm715, %vm1723
    %vm1740 = vmand %vm716, %vm1724
    %vm1741 = vmand %vm717, %vm1725
    %vm1742 = vmand %vm718, %vm1726
    %vm1743 = vmand %vm719, %vm1727
    %vm1744 = vmand %vm720, %vm1728
    %vm1745 = vmand %vm721, %vm1729
    %vm1746 = vmand %vm722, %vm1730
    %vm1747 = vmand %vm723, %vm1731
    %vm1748 = vmand %vm724, %vm1732
    %vm1749 = vmand %vm725, %vm1733
    %vm1750 = vmand %vm726, %vm1734
    %vm1751 = vmand %vm727, %vm1735
    %vm1752 = vmand %vm728, %vm1736
    %v1753 = vsel %vm1737, 1, 0
    %v1754 = vsel %vm1738, 1, 0
    %v1755 = vsel %vm1739, 1, 0
    %v1756 = vsel %vm1740, 1, 0
    %v1757 = vsel %vm1741, 1, 0
    %v1758 = vsel %vm1742, 1, 0
    %v1759 = vsel %vm1743, 1, 0
    %v1760 = vsel %vm1744, 1, 0
    %v1761 = vsel %vm1745, 1, 0
    %v1762 = vsel %vm1746, 1, 0
    %v1763 = vsel %vm1747, 1, 0
    %v1764 = vsel %vm1748, 1, 0
    %v1765 = vsel %vm1749, 1, 0
    %v1766 = vsel %vm1750, 1, 0
    %v1767 = vsel %vm1751, 1, 0
    %v1768 = vsel %vm1752, 1, 0
    %v1769 = vcvt.s32.f32 %v1753
    %v1770 = vcvt.s32.f32 %v1754
    %v1771 = vcvt.s32.f32 %v1755
    %v1772 = vcvt.s32.f32 %v1756
    %v1773 = vcvt.s32.f32 %v1757
    %v1774 = vcvt.s32.f32 %v1758
    %v1775 = vcvt.s32.f32 %v1759
    %v1776 = vcvt.s32.f32 %v1760
    %v1777 = vcvt.s32.f32 %v1761
    %v1778 = vcvt.s32.f32 %v1762
    %v1779 = vcvt.s32.f32 %v1763
    %v1780 = vcvt.s32.f32 %v1764
    %v1781 = vcvt.s32.f32 %v1765
    %v1782 = vcvt.s32.f32 %v1766
    %v1783 = vcvt.s32.f32 %v1767
    %v1784 = vcvt.s32.f32 %v1768
    %v1785 = vadd.f32 %v1769, %v1770
    %v1786 = vadd.f32 %v1785, %v1771
    %v1787 = vadd.f32 %v1786, %v1772
    %v1788 = vadd.f32 %v1787, %v1773
    %v1789 = vadd.f32 %v1788, %v1774
    %v1790 = vadd.f32 %v1789, %v1775
    %v1791 = vadd.f32 %v1790, %v1776
    %v1792 = vadd.f32 %v1791, %v1777
    %v1793 = vadd.f32 %v1792, %v1778
    %v1794 = vadd.f32 %v1793, %v1779
    %v1795 = vadd.f32 %v1794, %v1780
    %v1796 = vadd.f32 %v1795, %v1781
    %v1797 = vadd.f32 %v1796, %v1782
    %v1798 = vadd.f32 %v1797, %v1783
    %v1799 = vadd.f32 %v1798, %v1784
    %1800 = vadd.xlane.f32.xlu0 %v1799
    %v1801 = vpop.xlane.xlu0 %1800
    %v1802 = vrot.slane %v1801, 4
    %v1803 = vadd.f32 %v1801, %v1802
    %v1804 = vrot.slane %v1803, 2
    %v1805 = vadd.f32 %v1803, %v1804
    %v1806 = vrot.slane %v1805, 1
    %v1807 = vadd.f32 %v1805, %v1806
    %s1808 = vtos %v1807
    %s1809 = sld [smem:[#allocation2 + $0xd]]
    %v1810 = vstv %s1809
    %vm1811 = vcmp.le.s32.totalorder %v695, %v1810
    %vm1812 = vcmp.le.s32.totalorder %v696, %v1810
    %vm1813 = vcmp.le.s32.totalorder %v697, %v1810
    %vm1814 = vcmp.le.s32.totalorder %v698, %v1810
    %vm1815 = vcmp.le.s32.totalorder %v699, %v1810
    %vm1816 = vcmp.le.s32.totalorder %v700, %v1810
    %vm1817 = vcmp.le.s32.totalorder %v701, %v1810
    %vm1818 = vcmp.le.s32.totalorder %v702, %v1810
    %vm1819 = vcmp.le.s32.totalorder %v703, %v1810
    %vm1820 = vcmp.le.s32.totalorder %v704, %v1810
    %vm1821 = vcmp.le.s32.totalorder %v705, %v1810
    %vm1822 = vcmp.le.s32.totalorder %v706, %v1810
    %vm1823 = vcmp.le.s32.totalorder %v707, %v1810
    %vm1824 = vcmp.le.s32.totalorder %v708, %v1810
    %vm1825 = vcmp.le.s32.totalorder %v709, %v1810
    %vm1826 = vcmp.le.s32.totalorder %v710, %v1810
    %vm1827 = vmand %vm713, %vm1811
    %vm1828 = vmand %vm714, %vm1812
    %vm1829 = vmand %vm715, %vm1813
    %vm1830 = vmand %vm716, %vm1814
    %vm1831 = vmand %vm717, %vm1815
    %vm1832 = vmand %vm718, %vm1816
    %vm1833 = vmand %vm719, %vm1817
    %vm1834 = vmand %vm720, %vm1818
    %vm1835 = vmand %vm721, %vm1819
    %vm1836 = vmand %vm722, %vm1820
    %vm1837 = vmand %vm723, %vm1821
    %vm1838 = vmand %vm724, %vm1822
    %vm1839 = vmand %vm725, %vm1823
    %vm1840 = vmand %vm726, %vm1824
    %vm1841 = vmand %vm727, %vm1825
    %vm1842 = vmand %vm728, %vm1826
    %v1843 = vsel %vm1827, 1, 0
    %v1844 = vsel %vm1828, 1, 0
    %v1845 = vsel %vm1829, 1, 0
    %v1846 = vsel %vm1830, 1, 0
    %v1847 = vsel %vm1831, 1, 0
    %v1848 = vsel %vm1832, 1, 0
    %v1849 = vsel %vm1833, 1, 0
    %v1850 = vsel %vm1834, 1, 0
    %v1851 = vsel %vm1835, 1, 0
    %v1852 = vsel %vm1836, 1, 0
    %v1853 = vsel %vm1837, 1, 0
    %v1854 = vsel %vm1838, 1, 0
    %v1855 = vsel %vm1839, 1, 0
    %v1856 = vsel %vm1840, 1, 0
    %v1857 = vsel %vm1841, 1, 0
    %v1858 = vsel %vm1842, 1, 0
    %v1859 = vcvt.s32.f32 %v1843
    %v1860 = vcvt.s32.f32 %v1844
    %v1861 = vcvt.s32.f32 %v1845
    %v1862 = vcvt.s32.f32 %v1846
    %v1863 = vcvt.s32.f32 %v1847
    %v1864 = vcvt.s32.f32 %v1848
    %v1865 = vcvt.s32.f32 %v1849
    %v1866 = vcvt.s32.f32 %v1850
    %v1867 = vcvt.s32.f32 %v1851
    %v1868 = vcvt.s32.f32 %v1852
    %v1869 = vcvt.s32.f32 %v1853
    %v1870 = vcvt.s32.f32 %v1854
    %v1871 = vcvt.s32.f32 %v1855
    %v1872 = vcvt.s32.f32 %v1856
    %v1873 = vcvt.s32.f32 %v1857
    %v1874 = vcvt.s32.f32 %v1858
    %v1875 = vadd.f32 %v1859, %v1860
    %v1876 = vadd.f32 %v1875, %v1861
    %v1877 = vadd.f32 %v1876, %v1862
    %v1878 = vadd.f32 %v1877, %v1863
    %v1879 = vadd.f32 %v1878, %v1864
    %v1880 = vadd.f32 %v1879, %v1865
    %v1881 = vadd.f32 %v1880, %v1866
    %v1882 = vadd.f32 %v1881, %v1867
    %v1883 = vadd.f32 %v1882, %v1868
    %v1884 = vadd.f32 %v1883, %v1869
    %v1885 = vadd.f32 %v1884, %v1870
    %v1886 = vadd.f32 %v1885, %v1871
    %v1887 = vadd.f32 %v1886, %v1872
    %v1888 = vadd.f32 %v1887, %v1873
    %v1889 = vadd.f32 %v1888, %v1874
    %1890 = vadd.xlane.f32.xlu0 %v1889
    %v1891 = vpop.xlane.xlu0 %1890
    %v1892 = vrot.slane %v1891, 4
    %v1893 = vadd.f32 %v1891, %v1892
    %v1894 = vrot.slane %v1893, 2
    %v1895 = vadd.f32 %v1893, %v1894
    %v1896 = vrot.slane %v1895, 1
    %v1897 = vadd.f32 %v1895, %v1896
    %s1898 = vtos %v1897
    %s1899 = sld [smem:[#allocation2 + $0xe]]
    %v1900 = vstv %s1899
    %vm1901 = vcmp.le.s32.totalorder %v695, %v1900
    %vm1902 = vcmp.le.s32.totalorder %v696, %v1900
    %vm1903 = vcmp.le.s32.totalorder %v697, %v1900
    %vm1904 = vcmp.le.s32.totalorder %v698, %v1900
    %vm1905 = vcmp.le.s32.totalorder %v699, %v1900
    %vm1906 = vcmp.le.s32.totalorder %v700, %v1900
    %vm1907 = vcmp.le.s32.totalorder %v701, %v1900
    %vm1908 = vcmp.le.s32.totalorder %v702, %v1900
    %vm1909 = vcmp.le.s32.totalorder %v703, %v1900
    %vm1910 = vcmp.le.s32.totalorder %v704, %v1900
    %vm1911 = vcmp.le.s32.totalorder %v705, %v1900
    %vm1912 = vcmp.le.s32.totalorder %v706, %v1900
    %vm1913 = vcmp.le.s32.totalorder %v707, %v1900
    %vm1914 = vcmp.le.s32.totalorder %v708, %v1900
    %vm1915 = vcmp.le.s32.totalorder %v709, %v1900
    %vm1916 = vcmp.le.s32.totalorder %v710, %v1900
    %vm1917 = vmand %vm713, %vm1901
    %vm1918 = vmand %vm714, %vm1902
    %vm1919 = vmand %vm715, %vm1903
    %vm1920 = vmand %vm716, %vm1904
    %vm1921 = vmand %vm717, %vm1905
    %vm1922 = vmand %vm718, %vm1906
    %vm1923 = vmand %vm719, %vm1907
    %vm1924 = vmand %vm720, %vm1908
    %vm1925 = vmand %vm721, %vm1909
    %vm1926 = vmand %vm722, %vm1910
    %vm1927 = vmand %vm723, %vm1911
    %vm1928 = vmand %vm724, %vm1912
    %vm1929 = vmand %vm725, %vm1913
    %vm1930 = vmand %vm726, %vm1914
    %vm1931 = vmand %vm727, %vm1915
    %vm1932 = vmand %vm728, %vm1916
    %v1933 = vsel %vm1917, 1, 0
    %v1934 = vsel %vm1918, 1, 0
    %v1935 = vsel %vm1919, 1, 0
    %v1936 = vsel %vm1920, 1, 0
    %v1937 = vsel %vm1921, 1, 0
    %v1938 = vsel %vm1922, 1, 0
    %v1939 = vsel %vm1923, 1, 0
    %v1940 = vsel %vm1924, 1, 0
    %v1941 = vsel %vm1925, 1, 0
    %v1942 = vsel %vm1926, 1, 0
    %v1943 = vsel %vm1927, 1, 0
    %v1944 = vsel %vm1928, 1, 0
    %v1945 = vsel %vm1929, 1, 0
    %v1946 = vsel %vm1930, 1, 0
    %v1947 = vsel %vm1931, 1, 0
    %v1948 = vsel %vm1932, 1, 0
    %v1949 = vcvt.s32.f32 %v1933
    %v1950 = vcvt.s32.f32 %v1934
    %v1951 = vcvt.s32.f32 %v1935
    %v1952 = vcvt.s32.f32 %v1936
    %v1953 = vcvt.s32.f32 %v1937
    %v1954 = vcvt.s32.f32 %v1938
    %v1955 = vcvt.s32.f32 %v1939
    %v1956 = vcvt.s32.f32 %v1940
    %v1957 = vcvt.s32.f32 %v1941
    %v1958 = vcvt.s32.f32 %v1942
    %v1959 = vcvt.s32.f32 %v1943
    %v1960 = vcvt.s32.f32 %v1944
    %v1961 = vcvt.s32.f32 %v1945
    %v1962 = vcvt.s32.f32 %v1946
    %v1963 = vcvt.s32.f32 %v1947
    %v1964 = vcvt.s32.f32 %v1948
    %v1965 = vadd.f32 %v1949, %v1950
    %v1966 = vadd.f32 %v1965, %v1951
    %v1967 = vadd.f32 %v1966, %v1952
    %v1968 = vadd.f32 %v1967, %v1953
    %v1969 = vadd.f32 %v1968, %v1954
    %v1970 = vadd.f32 %v1969, %v1955
    %v1971 = vadd.f32 %v1970, %v1956
    %v1972 = vadd.f32 %v1971, %v1957
    %v1973 = vadd.f32 %v1972, %v1958
    %v1974 = vadd.f32 %v1973, %v1959
    %v1975 = vadd.f32 %v1974, %v1960
    %v1976 = vadd.f32 %v1975, %v1961
    %v1977 = vadd.f32 %v1976, %v1962
    %v1978 = vadd.f32 %v1977, %v1963
    %v1979 = vadd.f32 %v1978, %v1964
    %1980 = vadd.xlane.f32.xlu0 %v1979
    %v1981 = vpop.xlane.xlu0 %1980
    %v1982 = vrot.slane %v1981, 4
    %v1983 = vadd.f32 %v1981, %v1982
    %v1984 = vrot.slane %v1983, 2
    %v1985 = vadd.f32 %v1983, %v1984
    %v1986 = vrot.slane %v1985, 1
    %v1987 = vadd.f32 %v1985, %v1986
    %s1988 = vtos %v1987
    %s1989 = sld [smem:[#allocation2 + $0xf]]
    %v1990 = vstv %s1989
    %vm1991 = vcmp.le.s32.totalorder %v695, %v1990
    %vm1992 = vcmp.le.s32.totalorder %v696, %v1990
    %vm1993 = vcmp.le.s32.totalorder %v697, %v1990
    %vm1994 = vcmp.le.s32.totalorder %v698, %v1990
    %vm1995 = vcmp.le.s32.totalorder %v699, %v1990
    %vm1996 = vcmp.le.s32.totalorder %v700, %v1990
    %vm1997 = vcmp.le.s32.totalorder %v701, %v1990
    %vm1998 = vcmp.le.s32.totalorder %v702, %v1990
    %vm1999 = vcmp.le.s32.totalorder %v703, %v1990
    %vm2000 = vcmp.le.s32.totalorder %v704, %v1990
    %vm2001 = vcmp.le.s32.totalorder %v705, %v1990
    %vm2002 = vcmp.le.s32.totalorder %v706, %v1990
    %vm2003 = vcmp.le.s32.totalorder %v707, %v1990
    %vm2004 = vcmp.le.s32.totalorder %v708, %v1990
    %vm2005 = vcmp.le.s32.totalorder %v709, %v1990
    %vm2006 = vcmp.le.s32.totalorder %v710, %v1990
    %vm2007 = vmand %vm713, %vm1991
    %vm2008 = vmand %vm714, %vm1992
    %vm2009 = vmand %vm715, %vm1993
    %vm2010 = vmand %vm716, %vm1994
    %vm2011 = vmand %vm717, %vm1995
    %vm2012 = vmand %vm718, %vm1996
    %vm2013 = vmand %vm719, %vm1997
    %vm2014 = vmand %vm720, %vm1998
    %vm2015 = vmand %vm721, %vm1999
    %vm2016 = vmand %vm722, %vm2000
    %vm2017 = vmand %vm723, %vm2001
    %vm2018 = vmand %vm724, %vm2002
    %vm2019 = vmand %vm725, %vm2003
    %vm2020 = vmand %vm726, %vm2004
    %vm2021 = vmand %vm727, %vm2005
    %vm2022 = vmand %vm728, %vm2006
    %v2023 = vsel %vm2007, 1, 0
    %v2024 = vsel %vm2008, 1, 0
    %v2025 = vsel %vm2009, 1, 0
    %v2026 = vsel %vm2010, 1, 0
    %v2027 = vsel %vm2011, 1, 0
    %v2028 = vsel %vm2012, 1, 0
    %v2029 = vsel %vm2013, 1, 0
    %v2030 = vsel %vm2014, 1, 0
    %v2031 = vsel %vm2015, 1, 0
    %v2032 = vsel %vm2016, 1, 0
    %v2033 = vsel %vm2017, 1, 0
    %v2034 = vsel %vm2018, 1, 0
    %v2035 = vsel %vm2019, 1, 0
    %v2036 = vsel %vm2020, 1, 0
    %v2037 = vsel %vm2021, 1, 0
    %v2038 = vsel %vm2022, 1, 0
    %v2039 = vcvt.s32.f32 %v2023
    %v2040 = vcvt.s32.f32 %v2024
    %v2041 = vcvt.s32.f32 %v2025
    %v2042 = vcvt.s32.f32 %v2026
    %v2043 = vcvt.s32.f32 %v2027
    %v2044 = vcvt.s32.f32 %v2028
    %v2045 = vcvt.s32.f32 %v2029
    %v2046 = vcvt.s32.f32 %v2030
    %v2047 = vcvt.s32.f32 %v2031
    %v2048 = vcvt.s32.f32 %v2032
    %v2049 = vcvt.s32.f32 %v2033
    %v2050 = vcvt.s32.f32 %v2034
    %v2051 = vcvt.s32.f32 %v2035
    %v2052 = vcvt.s32.f32 %v2036
    %v2053 = vcvt.s32.f32 %v2037
    %v2054 = vcvt.s32.f32 %v2038
    %v2055 = vadd.f32 %v2039, %v2040
    %v2056 = vadd.f32 %v2055, %v2041
    %v2057 = vadd.f32 %v2056, %v2042
    %v2058 = vadd.f32 %v2057, %v2043
    %v2059 = vadd.f32 %v2058, %v2044
    %v2060 = vadd.f32 %v2059, %v2045
    %v2061 = vadd.f32 %v2060, %v2046
    %v2062 = vadd.f32 %v2061, %v2047
    %v2063 = vadd.f32 %v2062, %v2048
    %v2064 = vadd.f32 %v2063, %v2049
    %v2065 = vadd.f32 %v2064, %v2050
    %v2066 = vadd.f32 %v2065, %v2051
    %v2067 = vadd.f32 %v2066, %v2052
    %v2068 = vadd.f32 %v2067, %v2053
    %v2069 = vadd.f32 %v2068, %v2054
    %2070 = vadd.xlane.f32.xlu0 %v2069
    %v2071 = vpop.xlane.xlu0 %2070
    %v2072 = vrot.slane %v2071, 4
    %v2073 = vadd.f32 %v2071, %v2072
    %v2074 = vrot.slane %v2073, 2
    %v2075 = vadd.f32 %v2073, %v2074
    %v2076 = vrot.slane %v2075, 1
    %v2077 = vadd.f32 %v2075, %v2076
    %s2078 = vtos %v2077
    %vm2079 = vcmp.eq.s32.totalorder %v611, 0
    %v2080 = vstv %s818
    %v2081 = vsel %vm2079, %v2080, 0.0
    %vm2082 = vcmp.eq.s32.totalorder %v611, 1
    %v2083 = vstv %s908
    %v2084 = vsel %vm2082, %v2083, %v2081
    %vm2085 = vcmp.eq.s32.totalorder %v611, 2
    %v2086 = vstv %s998
    %v2087 = vsel %vm2085, %v2086, %v2084
    %vm2088 = vcmp.eq.s32.totalorder %v611, 3
    %v2089 = vstv %s1088
    %v2090 = vsel %vm2088, %v2089, %v2087
    %vm2091 = vcmp.eq.s32.totalorder %v611, 4
    %v2092 = vstv %s1178
    %v2093 = vsel %vm2091, %v2092, %v2090
    %vm2094 = vcmp.eq.s32.totalorder %v611, 5
    %v2095 = vstv %s1268
    %v2096 = vsel %vm2094, %v2095, %v2093
    %vm2097 = vcmp.eq.s32.totalorder %v611, 6
    %v2098 = vstv %s1358
    %v2099 = vsel %vm2097, %v2098, %v2096
    %vm2100 = vcmp.eq.s32.totalorder %v611, 7
    %v2101 = vstv %s1448
    %v2102 = vsel %vm2100, %v2101, %v2099
    %vm2103 = vcmp.eq.s32.totalorder %v611, 8
    %v2104 = vstv %s1538
    %v2105 = vsel %vm2103, %v2104, %v2102
    %vm2106 = vcmp.eq.s32.totalorder %v611, 9
    %v2107 = vstv %s1628
    %v2108 = vsel %vm2106, %v2107, %v2105
    %vm2109 = vcmp.eq.s32.totalorder %v611, 10
    %v2110 = vstv %s1718
    %v2111 = vsel %vm2109, %v2110, %v2108
    %vm2112 = vcmp.eq.s32.totalorder %v611, 11
    %v2113 = vstv %s1808
    %v2114 = vsel %vm2112, %v2113, %v2111
    %vm2115 = vcmp.eq.s32.totalorder %v611, 12
    %v2116 = vstv %s1898
    %v2117 = vsel %vm2115, %v2116, %v2114
    %vm2118 = vcmp.eq.s32.totalorder %v611, 13
    %v2119 = vstv %s1988
    %v2120 = vsel %vm2118, %v2119, %v2117
    %vm2121 = vcmp.eq.s32.totalorder %v611, 14
    %v2122 = vstv %s2078
    %v2123 = vsel %vm2121, %v2122, %v2120
    %2124 = vst [vmem:[%s7] sm:$0xff] %v2123
    // Predicated region
    $region34: #{body.12} parent=1 // pred_check
      _
    $region35: #{body.12} parent=1 // pred_check_branch
      %2126 = sbr.rel (0) target = $region37
    $region36: #{body.12} parent=1 // pred_region
      _
    $region37: #{body.12} parent=1 // pred_fallthru
      _
    // Predicated region
    $region38: #{body.12} parent=1 // pred_check
      _
    $region39: #{body.12} parent=1 // pred_check_branch
      %2128 = sbr.rel (0) target = $region41
    $region40: #{body.12} parent=1 // pred_region
      _
    $region41: #{body.12} parent=1 // pred_fallthru
      _
    %2129 = vsyncpa [#allocation3], 1

</llo_original>
